<compile_context>
chip_gen: v6e
topology: v6e:2x2x1
jax: 0.10.0
libtpu: 0.0.40
codegen_flags: <defaults>
</compile_context>

<pallas_src>
import numpy as np

import jax
import jax.numpy as jnp
from jax import lax
from jax.experimental import pallas as pl
from jax.experimental.pallas import tpu as pltpu


def _cbam_kernel(x_ref, w1t_ref, b1_ref, w2t_ref, b2_ref,
                 wcmax_ref, wcmean_ref, cbias_ref, o_ref):
    """TB batch samples per grid step.

    x_ref     : (TB, C, HW) VMEM
    w1t_ref   : (C, hid)    VMEM   fc1 weight, transposed
    b1_ref    : (1, hid)    VMEM
    w2t_ref   : (hid, C)    VMEM   fc2 weight, transposed
    b2_ref    : (1, C)      VMEM
    wcmax_ref : (HW, HW)    VMEM   masked Toeplitz (max-pool channel, BN-folded)
    wcmean_ref: (HW, HW)    VMEM   masked Toeplitz (mean-pool channel, BN-folded)
    cbias_ref : (1,)        SMEM   conv bias with eval-mode BN folded in
    o_ref     : (TB, C, HW) VMEM
    """
    x = x_ref[...].astype(jnp.float32)                           # (TB, C, HW)

    # ---------------- SE block (squeeze-and-excite), FCs on the MXU ----------
    gap = jnp.mean(x, axis=2)                                    # (TB, C)
    y1 = jnp.dot(gap, w1t_ref[...],
                 preferred_element_type=jnp.float32,
                 precision=lax.Precision.HIGHEST) + b1_ref[...]  # (TB, hid)
    y1 = jnp.maximum(y1, 0.0)                                    # ReLU
    y2 = jnp.dot(y1, w2t_ref[...],
                 preferred_element_type=jnp.float32,
                 precision=lax.Precision.HIGHEST) + b2_ref[...]  # (TB, C)
    s = jax.nn.sigmoid(y2)                                       # (TB, C)
    se = s[:, :, None] * x                                       # (TB, C, HW)

    # ---------------- ChannelPool: max & mean over channels ------------------
    cmax = jnp.max(se, axis=1)                                   # (TB, HW)
    cmean = jnp.mean(se, axis=1)                                 # (TB, HW)

    # ------- 7x7 conv (2 -> 1 ch), pad=3, BN folded: Toeplitz matmuls --------
    conv = (jnp.dot(cmax, wcmax_ref[...],
                    preferred_element_type=jnp.float32,
                    precision=lax.Precision.HIGHEST)
            + jnp.dot(cmean, wcmean_ref[...],
                      preferred_element_type=jnp.float32,
                      precision=lax.Precision.HIGHEST)
            + cbias_ref[0])                                      # (TB, HW)
    sa = jax.nn.sigmoid(conv)                                    # (TB, HW)
    o_ref[...] = (sa[:, None, :] * se).astype(o_ref.dtype)       # (TB, C, HW)


def _toeplitz_index_plan(H, W, k=7):
    """Static numpy index plan for a kxk 'same' cross-correlation on an HxW map.

    Returns (ii, jj, kk): for each valid (output j, tap (a,b)) pair,
      ii = flattened input index, jj = flattened output index, kk = tap index.
    """
    HW = H * W
    pad = (k - 1) // 2
    j = np.arange(HW)
    row, col = j // W, j % W
    ii_l, jj_l, kk_l = [], [], []
    for a in range(k):
        for b in range(k):
            r2, c2 = row + a - pad, col + b - pad
            valid = (r2 >= 0) & (r2 < H) & (c2 >= 0) & (c2 < W)
            ii_l.append((r2 * W + c2)[valid])
            jj_l.append(j[valid])
            kk_l.append(np.full(int(valid.sum()), a * k + b, np.int32))
    return (np.concatenate(ii_l).astype(np.int32),
            np.concatenate(jj_l).astype(np.int32),
            np.concatenate(kk_l))


def _build_toeplitz(w_eff, H, W):
    """Masked (HW, HW) Toeplitz matrices for the 7x7 'same' conv on each pooled map.

    Row index = flattened input position, column index = flattened output
    position, so `pooled_map @ T` reproduces PyTorch Conv2d (cross-correlation,
    zero padding) exactly.
    """
    HW = H * W
    ii, jj, kk = _toeplitz_index_plan(H, W, 7)
    w_max = w_eff[0, 0].reshape(49)
    w_mean = w_eff[0, 1].reshape(49)
    wcmax = jnp.zeros((HW, HW), jnp.float32).at[ii, jj].add(w_max[kk])
    wcmean = jnp.zeros((HW, HW), jnp.float32).at[ii, jj].add(w_mean[kk])
    return wcmax, wcmean


def cbam_pallas(x, p, *, batch_block=8):
    N, C, H, W = x.shape
    HW = H * W
    hid = p["w1"].shape[0]

    # Fold eval-mode BatchNorm2d(1) into the conv (single-channel affine).
    eps = 1e-5
    scale = p["bn_gamma"] / jnp.sqrt(p["bn_var"] + eps)
    shift = p["bn_beta"] - p["bn_mean"] * scale
    w_eff = (p["conv_w"] * scale).astype(jnp.float32)            # (1, 2, 7, 7)
    b_eff = (p["conv_b"] * scale + shift).reshape(1).astype(jnp.float32)
    wcmax, wcmean = _build_toeplitz(w_eff, H, W)                 # (HW, HW) x2

    # Several samples per grid step (amortize per-step overhead, fill sublanes).
    TB = min(N, batch_block)
    N_pad = pl.cdiv(N, TB) * TB
    x_flat = x.reshape(N, C, HW)
    if N_pad != N:
        x_flat = jnp.pad(x_flat, ((0, N_pad - N), (0, 0), (0, 0)))

    out = pl.pallas_call(
        _cbam_kernel,
        out_shape=jax.ShapeDtypeStruct((N_pad, C, HW), x.dtype),
        grid=(N_pad // TB,),
        in_specs=[
            pl.BlockSpec((TB, C, HW), lambda n: (n, 0, 0)),
            pl.BlockSpec((C, hid), lambda n: (0, 0)),
            pl.BlockSpec((1, hid), lambda n: (0, 0)),
            pl.BlockSpec((hid, C), lambda n: (0, 0)),
            pl.BlockSpec((1, C), lambda n: (0, 0)),
            pl.BlockSpec((HW, HW), lambda n: (0, 0)),
            pl.BlockSpec((HW, HW), lambda n: (0, 0)),
            pl.BlockSpec(memory_space=pltpu.MemorySpace.SMEM),
        ],
        out_specs=pl.BlockSpec((TB, C, HW), lambda n: (n, 0, 0)),
        compiler_params=pltpu.CompilerParams(
            dimension_semantics=("parallel",)),
    )(
        x_flat,
        p["w1"].T.astype(jnp.float32),                # (C, hid)
        p["b1"].reshape(1, hid).astype(jnp.float32),
        p["w2"].T.astype(jnp.float32),                # (hid, C)
        p["b2"].reshape(1, C).astype(jnp.float32),
        wcmax,
        wcmean,
        b_eff,
    )
    return out[:N].reshape(N, C, H, W)


def cbam_ref(x, p):
    """Pure-JAX reference (same semantics)."""
    gap = x.mean(axis=(2, 3))                                    # (n, c)
    y = jax.nn.relu(gap @ p["w1"].T + p["b1"])
    y = jax.nn.sigmoid(y @ p["w2"].T + p["b2"])
    se = y[:, :, None, None] * x
    cmax = se.max(axis=1, keepdims=True)
    cmean = se.mean(axis=1, keepdims=True)
    cp = jnp.concatenate([cmax, cmean], axis=1)                  # (n, 2, h, w)
    conv = lax.conv_general_dilated(
        cp, p["conv_w"], (1, 1), [(3, 3), (3, 3)],
        dimension_numbers=("NCHW", "OIHW", "NCHW"))
    conv = conv + p["conv_b"].reshape(1, 1, 1, 1)
    bn = p["bn_gamma"] * (conv - p["bn_mean"]) / jnp.sqrt(p["bn_var"] + 1e-5) \
        + p["bn_beta"]
    sa = jax.nn.sigmoid(bn)
    return sa * se


if __name__ == "__main__":
    N, C, H, W = 2, 32, 16, 16          # in_planes=32 -> hidden = 32 // 16 = 2
    hid = C // 16

    key = jax.random.PRNGKey(0)
    ks = jax.random.split(key, 7)
    x = jax.random.normal(ks[0], (N, C, H, W), jnp.float32)

    params = dict(
        w1=jax.random.normal(ks[1], (hid, C), jnp.float32) * 0.2,   # fc1 (out,in)
        b1=jax.random.normal(ks[2], (hid,), jnp.float32) * 0.1,
        w2=jax.random.normal(ks[3], (C, hid), jnp.float32) * 0.2,   # fc2 (out,in)
        b2=jax.random.normal(ks[4], (C,), jnp.float32) * 0.1,
        conv_w=jax.random.normal(ks[5], (1, 2, 7, 7), jnp.float32) * 0.1,
        conv_b=jax.random.normal(ks[6], (1,), jnp.float32) * 0.1,
        bn_gamma=jnp.float32(1.2),
        bn_beta=jnp.float32(0.1),
        bn_mean=jnp.float32(0.05),
        bn_var=jnp.float32(0.8),
    )

    out = jax.block_until_ready(cbam_pallas(x, params))
    ref = jax.block_until_ready(cbam_ref(x, params))

    assert out.shape == (N, C, H, W)
    max_err = float(jnp.max(jnp.abs(out - ref)))
    assert jnp.allclose(out, ref, rtol=1e-3, atol=1e-4), f"max_err={max_err}"
    print("KERNEL_OK")
</pallas_src>

<mosaic_0001>
module attributes {stable_mosaic.version = 11 : i64} {
  func.func @_cbam_kernel(%arg0: i32, %arg1: memref<2x32x256xf32, #tpu.memory_space<vmem>>, %arg2: memref<32x2xf32, #tpu.memory_space<vmem>>, %arg3: memref<1x2xf32, #tpu.memory_space<vmem>>, %arg4: memref<2x32xf32, #tpu.memory_space<vmem>>, %arg5: memref<1x32xf32, #tpu.memory_space<vmem>>, %arg6: memref<256x256xf32, #tpu.memory_space<vmem>>, %arg7: memref<256x256xf32, #tpu.memory_space<vmem>>, %arg8: memref<1xf32, #tpu.memory_space<smem>>, %arg9: memref<2x32x256xf32, #tpu.memory_space<vmem>>) attributes {dimension_semantics = [#tpu.dimension_semantics<parallel>], iteration_bounds = array<i64: 1>, scalar_prefetch = 0 : i64, scratch_operands = 0 : i64, tpu.core_type = #tpu.core_type<tc>, window_params = [{transform_indices = @transform_0, window_bounds = array<i64: 2, 32, 256>}, {pipeline_mode = #tpu.pipeline_mode<synchronous>, transform_indices = @transform_1, window_bounds = array<i64: 32, 2>}, {pipeline_mode = #tpu.pipeline_mode<synchronous>, transform_indices = @transform_2, window_bounds = array<i64: 1, 2>}, {pipeline_mode = #tpu.pipeline_mode<synchronous>, transform_indices = @transform_3, window_bounds = array<i64: 2, 32>}, {pipeline_mode = #tpu.pipeline_mode<synchronous>, transform_indices = @transform_4, window_bounds = array<i64: 1, 32>}, {pipeline_mode = #tpu.pipeline_mode<synchronous>, transform_indices = @transform_5, window_bounds = array<i64: 256, 256>}, {pipeline_mode = #tpu.pipeline_mode<synchronous>, transform_indices = @transform_6, window_bounds = array<i64: 256, 256>}, {transform_indices = @transform_7, window_bounds = array<i64: 1>}, {transform_indices = @transform_8, window_bounds = array<i64: 2, 32, 256>}]} {
    %c0 = arith.constant 0 : index
    %c0_0 = arith.constant 0 : index
    %c0_1 = arith.constant 0 : index
    %0 = vector.load %arg1[%c0, %c0_0, %c0_1] : memref<2x32x256xf32, #tpu.memory_space<vmem>>, vector<2x32x256xf32>
    %cst = arith.constant dense<0.000000e+00> : vector<2x32xf32>
    %1 = vector.multi_reduction <add>, %0, %cst [2] : vector<2x32x256xf32> to vector<2x32xf32>
    %cst_2 = arith.constant 2.560000e+02 : f32
    %2 = vector.broadcast %cst_2 : f32 to vector<2x32xf32>
    %3 = arith.divf %1, %2 : vector<2x32xf32>
    %c0_3 = arith.constant 0 : index
    %c0_4 = arith.constant 0 : index
    %4 = vector.load %arg2[%c0_3, %c0_4] : memref<32x2xf32, #tpu.memory_space<vmem>>, vector<32x2xf32>
    %cst_5 = arith.constant dense<0.000000e+00> : vector<2x2xf32>
    %5 = tpu.matmul %3, %4, %cst_5 {dimension_numbers = #tpu.dot_dimension_numbers<[1], [0], [0], [1], [0, 0, 1, 1], [], []>, precision = #tpu.contract_precision<fp32>} : vector<2x32xf32>, vector<32x2xf32>, vector<2x2xf32> -> vector<2x2xf32>
    %c0_6 = arith.constant 0 : index
    %c0_7 = arith.constant 0 : index
    %6 = vector.load %arg3[%c0_6, %c0_7] : memref<1x2xf32, #tpu.memory_space<vmem>>, vector<1x2xf32>
    %7 = vector.broadcast %6 : vector<1x2xf32> to vector<2x2xf32>
    %8 = arith.addf %5, %7 : vector<2x2xf32>
    %cst_8 = arith.constant 0.000000e+00 : f32
    %9 = vector.broadcast %cst_8 : f32 to vector<2x2xf32>
    %10 = arith.maximumf %8, %9 : vector<2x2xf32>
    %c0_9 = arith.constant 0 : index
    %c0_10 = arith.constant 0 : index
    %11 = vector.load %arg4[%c0_9, %c0_10] : memref<2x32xf32, #tpu.memory_space<vmem>>, vector<2x32xf32>
    %cst_11 = arith.constant dense<0.000000e+00> : vector<2x32xf32>
    %12 = tpu.matmul %10, %11, %cst_11 {dimension_numbers = #tpu.dot_dimension_numbers<[1], [0], [0], [1], [0, 0, 1, 1], [], []>, precision = #tpu.contract_precision<fp32>} : vector<2x2xf32>, vector<2x32xf32>, vector<2x32xf32> -> vector<2x32xf32>
    %c0_12 = arith.constant 0 : index
    %c0_13 = arith.constant 0 : index
    %13 = vector.load %arg5[%c0_12, %c0_13] : memref<1x32xf32, #tpu.memory_space<vmem>>, vector<1x32xf32>
    %14 = vector.broadcast %13 : vector<1x32xf32> to vector<2x32xf32>
    %15 = arith.addf %12, %14 : vector<2x32xf32>
    %16 = arith.negf %15 : vector<2x32xf32>
    %17 = math.exp %16 : vector<2x32xf32>
    %cst_14 = arith.constant 1.000000e+00 : f32
    %18 = vector.broadcast %cst_14 : f32 to vector<2x32xf32>
    %19 = arith.addf %18, %17 : vector<2x32xf32>
    %20 = arith.divf %18, %19 : vector<2x32xf32>
    %21 = vector.shape_cast %20 : vector<2x32xf32> to vector<2x32x1xf32>
    %22 = vector.broadcast %21 : vector<2x32x1xf32> to vector<2x32x256xf32>
    %23 = arith.mulf %22, %0 : vector<2x32x256xf32>
    %cst_15 = arith.constant dense<0xFF800000> : vector<2x256xf32>
    %24 = vector.multi_reduction <maximumf>, %23, %cst_15 [1] : vector<2x32x256xf32> to vector<2x256xf32>
    %cst_16 = arith.constant dense<0.000000e+00> : vector<2x256xf32>
    %25 = vector.multi_reduction <add>, %23, %cst_16 [1] : vector<2x32x256xf32> to vector<2x256xf32>
    %cst_17 = arith.constant 3.200000e+01 : f32
    %26 = vector.broadcast %cst_17 : f32 to vector<2x256xf32>
    %27 = arith.divf %25, %26 : vector<2x256xf32>
    %c0_18 = arith.constant 0 : index
    %c0_19 = arith.constant 0 : index
    %28 = vector.load %arg6[%c0_18, %c0_19] : memref<256x256xf32, #tpu.memory_space<vmem>>, vector<256x256xf32>
    %cst_20 = arith.constant dense<0.000000e+00> : vector<2x256xf32>
    %29 = tpu.matmul %24, %28, %cst_20 {dimension_numbers = #tpu.dot_dimension_numbers<[1], [0], [0], [1], [0, 0, 1, 1], [], []>, precision = #tpu.contract_precision<fp32>} : vector<2x256xf32>, vector<256x256xf32>, vector<2x256xf32> -> vector<2x256xf32>
    %c0_21 = arith.constant 0 : index
    %c0_22 = arith.constant 0 : index
    %30 = vector.load %arg7[%c0_21, %c0_22] : memref<256x256xf32, #tpu.memory_space<vmem>>, vector<256x256xf32>
    %cst_23 = arith.constant dense<0.000000e+00> : vector<2x256xf32>
    %31 = tpu.matmul %27, %30, %cst_23 {dimension_numbers = #tpu.dot_dimension_numbers<[1], [0], [0], [1], [0, 0, 1, 1], [], []>, precision = #tpu.contract_precision<fp32>} : vector<2x256xf32>, vector<256x256xf32>, vector<2x256xf32> -> vector<2x256xf32>
    %32 = arith.addf %29, %31 : vector<2x256xf32>
    %c0_24 = arith.constant 0 : index
    %33 = memref.load %arg8[%c0_24] : memref<1xf32, #tpu.memory_space<smem>>
    %34 = vector.broadcast %33 : f32 to vector<2x256xf32>
    %35 = arith.addf %32, %34 : vector<2x256xf32>
    %36 = arith.negf %35 : vector<2x256xf32>
    %37 = math.exp %36 : vector<2x256xf32>
    %cst_25 = arith.constant 1.000000e+00 : f32
    %38 = vector.broadcast %cst_25 : f32 to vector<2x256xf32>
    %39 = arith.addf %38, %37 : vector<2x256xf32>
    %40 = arith.divf %38, %39 : vector<2x256xf32>
    %41 = vector.shape_cast %40 : vector<2x256xf32> to vector<2x1x256xf32>
    %42 = vector.broadcast %41 : vector<2x1x256xf32> to vector<2x32x256xf32>
    %43 = arith.mulf %42, %23 : vector<2x32x256xf32>
    %c0_26 = arith.constant 0 : index
    %c0_27 = arith.constant 0 : index
    %c0_28 = arith.constant 0 : index
    %44 = vector.load %arg9[%c0_26, %c0_27, %c0_28] : memref<2x32x256xf32, #tpu.memory_space<vmem>>, vector<2x32x256xf32>
    tpu.vector_store %arg9[%c0_26, %c0_27, %c0_28], %43 {strides = array<i32>} : memref<2x32x256xf32, #tpu.memory_space<vmem>>, vector<2x32x256xf32>,
    return
  }
  func.func @transform_0(%arg0: i32) -> (i32, i32, i32) {
    %c0_i32 = arith.constant 0 : i32
    %c0_i32_0 = arith.constant 0 : i32
    %c0_i32_1 = arith.constant 0 : i32
    return %arg0, %c0_i32, %c0_i32_0 : i32, i32, i32
  }
  func.func @transform_1(%arg0: i32) -> (i32, i32) {
    %c0_i32 = arith.constant 0 : i32
    %c0_i32_0 = arith.constant 0 : i32
    %c0_i32_1 = arith.constant 0 : i32
    return %c0_i32, %c0_i32_0 : i32, i32
  }
  func.func @transform_2(%arg0: i32) -> (i32, i32) {
    %c0_i32 = arith.constant 0 : i32
    %c0_i32_0 = arith.constant 0 : i32
    %c0_i32_1 = arith.constant 0 : i32
    return %c0_i32, %c0_i32_0 : i32, i32
  }
  func.func @transform_3(%arg0: i32) -> (i32, i32) {
    %c0_i32 = arith.constant 0 : i32
    %c0_i32_0 = arith.constant 0 : i32
    %c0_i32_1 = arith.constant 0 : i32
    return %c0_i32, %c0_i32_0 : i32, i32
  }
  func.func @transform_4(%arg0: i32) -> (i32, i32) {
    %c0_i32 = arith.constant 0 : i32
    %c0_i32_0 = arith.constant 0 : i32
    %c0_i32_1 = arith.constant 0 : i32
    return %c0_i32, %c0_i32_0 : i32, i32
  }
  func.func @transform_5(%arg0: i32) -> (i32, i32) {
    %c0_i32 = arith.constant 0 : i32
    %c0_i32_0 = arith.constant 0 : i32
    %c0_i32_1 = arith.constant 0 : i32
    return %c0_i32, %c0_i32_0 : i32, i32
  }
  func.func @transform_6(%arg0: i32) -> (i32, i32) {
    %c0_i32 = arith.constant 0 : i32
    %c0_i32_0 = arith.constant 0 : i32
    %c0_i32_1 = arith.constant 0 : i32
    return %c0_i32, %c0_i32_0 : i32, i32
  }
  func.func @transform_7(%arg0: i32) -> i32 {
    %c0_i32 = arith.constant 0 : i32
    %c0_i32_0 = arith.constant 0 : i32
    return %c0_i32 : i32
  }
  func.func @transform_8(%arg0: i32) -> (i32, i32, i32) {
    %c0_i32 = arith.constant 0 : i32
    %c0_i32_0 = arith.constant 0 : i32
    %c0_i32_1 = arith.constant 0 : i32
    return %arg0, %c0_i32, %c0_i32_0 : i32, i32, i32
  }
}

</mosaic_0001>

<llo_original>
// kernel: tpu_custom_call.1
$region0: #{tpu_custom_call.1}
  #allocation0 [shape = 'u32[]', space=smem, size = 0x4, offset = 0x4, fixed_abs, tag = 'smem constant byte address 0x4 - core index']
  #allocation1 [shape = 'u32[144,128]{1,0:T(1,128)}', space=vmem, size = 0x12000, scoped, tag = 'internal scratch']
  #allocation2 [shape = 'f32[1]{0:T(128)S(6)}', space=smem, size = 0x200, scoped, tag = 'scoped memory for tpu_custom_call.1']
  %s0 = inlined_call_operand.hbm [shape: f32[2,32,256], index: 0, kind: input, shape index: {}]
  %s1 = inlined_call_operand.vmem [shape: f32[32,2], index: 1, kind: input, shape index: {}]
  %s2 = inlined_call_operand.vmem [shape: f32[1,2], index: 2, kind: input, shape index: {}]
  %s3 = inlined_call_operand.vmem [shape: f32[2,32], index: 3, kind: input, shape index: {}]
  %s4 = inlined_call_operand.vmem [shape: f32[1,32], index: 4, kind: input, shape index: {}]
  %s5 = inlined_call_operand.hbm [shape: f32[256,256], index: 5, kind: input, shape index: {}]
  %s6 = inlined_call_operand.hbm [shape: f32[256,256], index: 6, kind: input, shape index: {}]
  %s7 = inlined_call_operand.<no memory space> [shape: f32[1], index: 7, kind: input, shape index: {}]
  %s8 = inlined_call_operand.hbm [shape: f32[2,32,256], index: 8, kind: output, shape index: {}]
  %s9 = sld [smem:[#allocation0]]
  $region54: #{tpu_custom_call.1} parent=0
    _
  %s11 = ssub.s32 1, %s9
  %s12 = scalar_select 0, %s11, %s9
  %13 = sst [smem:[#allocation2]] %s7
  $region1: #{tpu_custom_call.1} parent=0
    #allocation3 [shape = 'u8[65536]{0}', space=vmem, size = 0x10000, scoped, tag = 'input window, operand 0, single buffered']
    #allocation4 [shape = 's32[1]{0}', space=sflag, size = 0x4, scoped, tag = 'scoped memory for tpu_custom_call.1']
    #allocation5 [shape = 's32[1]{0}', space=sflag, size = 0x4, scoped, tag = 'scoped memory for tpu_custom_call.1']
    #allocation6 [shape = 'u8[262144]{0}', space=vmem, size = 0x40000, scoped, tag = 'input window, operand 5, single buffered']
    #allocation7 [shape = 's32[1]{0}', space=sflag, size = 0x4, scoped, tag = 'scoped memory for tpu_custom_call.1']
    #allocation8 [shape = 'u8[262144]{0}', space=vmem, size = 0x40000, scoped, tag = 'input window, operand 6, single buffered']
    #allocation9 [shape = 'u8[65536]{0}', space=vmem, size = 0x10000, scoped, tag = 'output window, operand 0, single buffered']
    %14 = vsyncpa [#allocation4], 0
    %15 = vsyncpa [#allocation7], 0
    %16 = vsyncpa [#allocation5], 0
    // Predicated region
    $region2: #{tpu_custom_call.1} parent=1 // pred_check
      _
    $region3: #{tpu_custom_call.1} parent=1 // pred_check_branch
      %18 = sbr.rel (0) target = $region5
    $region4: #{tpu_custom_call.1} parent=1 // pred_region
      %s20 = ssub.s32 2048, 2048
      %21 = vsyncadd [#allocation4], %s20
      %s22 = sshll.u32 [#allocation3], 4
      %s23 = int_to_ptr.vmem [resolvable:$true] %s22
      %28 = dma.hbm_to_vmem [thread:$0]  %s0, 2048, %s23, [#allocation4], 256, 256, 16
    $region5: #{tpu_custom_call.1} parent=1 // pred_fallthru
      _
    // Predicated region
    $region6: #{tpu_custom_call.1} parent=1 // pred_check
      _
    $region7: #{tpu_custom_call.1} parent=1 // pred_check_branch
      %30 = sbr.rel (0) target = $region9
    $region8: #{tpu_custom_call.1} parent=1 // pred_region
      _
    $region9: #{tpu_custom_call.1} parent=1 // pred_fallthru
      _
    // Predicated region
    $region10: #{tpu_custom_call.1} parent=1 // pred_check
      _
    $region11: #{tpu_custom_call.1} parent=1 // pred_check_branch
      %32 = sbr.rel (0) target = $region13
    $region12: #{tpu_custom_call.1} parent=1 // pred_region
      _
    $region13: #{tpu_custom_call.1} parent=1 // pred_fallthru
      _
    // Predicated region
    $region14: #{tpu_custom_call.1} parent=1 // pred_check
      _
    $region15: #{tpu_custom_call.1} parent=1 // pred_check_branch
      %34 = sbr.rel (0) target = $region17
    $region16: #{tpu_custom_call.1} parent=1 // pred_region
      _
    $region17: #{tpu_custom_call.1} parent=1 // pred_fallthru
      _
    // Predicated region
    $region18: #{tpu_custom_call.1} parent=1 // pred_check
      _
    $region19: #{tpu_custom_call.1} parent=1 // pred_check_branch
      %36 = sbr.rel (0) target = $region21
    $region20: #{tpu_custom_call.1} parent=1 // pred_region
      _
    $region21: #{tpu_custom_call.1} parent=1 // pred_fallthru
      _
    // Predicated region
    $region22: #{tpu_custom_call.1} parent=1 // pred_check
      _
    $region23: #{tpu_custom_call.1} parent=1 // pred_check_branch
      %38 = sbr.rel (0) target = $region25
    $region24: #{tpu_custom_call.1} parent=1 // pred_region
      %s40 = ssub.s32 8192, 8192
      %41 = vsyncadd [#allocation7], %s40
      %s42 = sshll.u32 [#allocation6], 4
      %s43 = int_to_ptr.vmem [resolvable:$true] %s42
      %48 = dma.hbm_to_vmem [thread:$0]  %s5, 8192, %s43, [#allocation7], 256, 256, 16
    $region25: #{tpu_custom_call.1} parent=1 // pred_fallthru
      _
    // Predicated region
    $region26: #{tpu_custom_call.1} parent=1 // pred_check
      _
    $region27: #{tpu_custom_call.1} parent=1 // pred_check_branch
      %50 = sbr.rel (0) target = $region29
    $region28: #{tpu_custom_call.1} parent=1 // pred_region
      %s52 = ssub.s32 8192, 8192
      %53 = vsyncadd [#allocation7], %s52
      %s54 = sshll.u32 [#allocation8], 4
      %s55 = int_to_ptr.vmem [resolvable:$true] %s54
      %60 = dma.hbm_to_vmem [thread:$0]  %s6, 8192, %s55, [#allocation7], 256, 256, 16
    $region29: #{tpu_custom_call.1} parent=1 // pred_fallthru
      _
    // Predicated region
    $region30: #{tpu_custom_call.1} parent=1 // pred_check
      _
    $region31: #{tpu_custom_call.1} parent=1 // pred_check_branch
      %62 = sbr.rel (0) target = $region33
    $region32: #{tpu_custom_call.1} parent=1 // pred_region
      _
    $region33: #{tpu_custom_call.1} parent=1 // pred_fallthru
      _
    // Predicated region
    $region34: #{tpu_custom_call.1} parent=1 // pred_check
      _
    $region35: #{tpu_custom_call.1} parent=1 // pred_check_branch
      %64 = sbr.rel (0) target = $region37
    $region36: #{tpu_custom_call.1} parent=1 // pred_region
      %65 = dma.done [#allocation4], 2048
    $region37: #{tpu_custom_call.1} parent=1 // pred_fallthru
      _
    // Predicated region
    $region38: #{tpu_custom_call.1} parent=1 // pred_check
      _
    $region39: #{tpu_custom_call.1} parent=1 // pred_check_branch
      %67 = sbr.rel (0) target = $region41
    $region40: #{tpu_custom_call.1} parent=1 // pred_region
      %68 = dma.done [#allocation7], 8192
    $region41: #{tpu_custom_call.1} parent=1 // pred_fallthru
      _
    // Predicated region
    $region42: #{tpu_custom_call.1} parent=1 // pred_check
      _
    $region43: #{tpu_custom_call.1} parent=1 // pred_check_branch
      %70 = sbr.rel (0) target = $region45
    $region44: #{tpu_custom_call.1} parent=1 // pred_region
      %71 = dma.done [#allocation7], 8192
    $region45: #{tpu_custom_call.1} parent=1 // pred_fallthru
      _
    %v72 = vld [vmem:[#allocation3] sm:$0xff]
    %v73 = vld [vmem:[#allocation3 + $0x8] sm:$0xff]
    %v74 = vld [vmem:[#allocation3 + $0x10] sm:$0xff]
    %v75 = vld [vmem:[#allocation3 + $0x18] sm:$0xff]
    %v76 = vld [vmem:[#allocation3 + $0x20] sm:$0xff]
    %v77 = vld [vmem:[#allocation3 + $0x28] sm:$0xff]
    %v78 = vld [vmem:[#allocation3 + $0x30] sm:$0xff]
    %v79 = vld [vmem:[#allocation3 + $0x38] sm:$0xff]
    %v80 = vld [vmem:[#allocation3 + $0x40] sm:$0xff]
    %v81 = vld [vmem:[#allocation3 + $0x48] sm:$0xff]
    %v82 = vld [vmem:[#allocation3 + $0x50] sm:$0xff]
    %v83 = vld [vmem:[#allocation3 + $0x58] sm:$0xff]
    %v84 = vld [vmem:[#allocation3 + $0x60] sm:$0xff]
    %v85 = vld [vmem:[#allocation3 + $0x68] sm:$0xff]
    %v86 = vld [vmem:[#allocation3 + $0x70] sm:$0xff]
    %v87 = vld [vmem:[#allocation3 + $0x78] sm:$0xff]
    %v88 = vadd.f32 %v72, %v73
    %89 = vadd.xlane.f32.xlu0 %v88
    %v90 = vpop.xlane.xlu0 %89
    %v91 = vadd.f32 %v74, %v75
    %92 = vadd.xlane.f32.xlu0 %v91
    %v93 = vpop.xlane.xlu0 %92
    %v94 = vadd.f32 %v76, %v77
    %95 = vadd.xlane.f32.xlu0 %v94
    %v96 = vpop.xlane.xlu0 %95
    %v97 = vadd.f32 %v78, %v79
    %98 = vadd.xlane.f32.xlu0 %v97
    %v99 = vpop.xlane.xlu0 %98
    %v100 = vadd.f32 %v80, %v81
    %101 = vadd.xlane.f32.xlu0 %v100
    %v102 = vpop.xlane.xlu0 %101
    %v103 = vadd.f32 %v82, %v83
    %104 = vadd.xlane.f32.xlu0 %v103
    %v105 = vpop.xlane.xlu0 %104
    %v106 = vadd.f32 %v84, %v85
    %107 = vadd.xlane.f32.xlu0 %v106
    %v108 = vpop.xlane.xlu0 %107
    %v109 = vadd.f32 %v86, %v87
    %110 = vadd.xlane.f32.xlu0 %v109
    %v111 = vpop.xlane.xlu0 %110
    %v112 = vrcp.pop 256.0
    %v113 = vmul.f32 %v90, %v112
    %v114 = vmul.f32 %v93, %v112
    %v115 = vmul.f32 %v96, %v112
    %v116 = vmul.f32 %v99, %v112
    %v117 = vmul.f32 %v102, %v112
    %v118 = vmul.f32 %v105, %v112
    %v119 = vmul.f32 %v108, %v112
    %v120 = vmul.f32 %v111, %v112
    %v121 = vld [vmem:[%s1] sm:$0xff]
    %v122 = vld [vmem:[%s1 + $0x8] sm:$0xff]
    %v123 = vld [vmem:[%s1 + $0x10] sm:$0xff]
    %v124 = vld [vmem:[%s1 + $0x18] sm:$0xff]
    %v125 = vld [vmem:[%s2] sm:$0x1]
    %v127 = vlaneseq
    %v128 = vshrl.u32 %v127, 7
    %v129 = vsub.s32 0, %v128
    %v130 = vrot.slane %v125, %v129
    %v140 = vlaneseq
    %v141 = vand.u32 %v140, 127
    %v142 = vlaneseq
    %v143 = vshrl.u32 %v142, 7
    %v144 = vsub.s32 %v141, %v143
    %v145 = vrot.slane %v113, %v144
    %v146 = vadd.s32 %v141, 4294967288
    %v147 = vlaneseq
    %v148 = vshrl.u32 %v147, 7
    %v149 = vsub.s32 %v146, %v148
    %v150 = vrot.slane %v114, %v149
    %vm151 = vcmask 130112
    %v152 = vsel %vm151, %v150, %v145
    %v153 = vadd.s32 %v141, 4294967280
    %v154 = vlaneseq
    %v155 = vshrl.u32 %v154, 7
    %v156 = vsub.s32 %v153, %v155
    %v157 = vrot.slane %v115, %v156
    %vm158 = vcmask 195712
    %v159 = vsel %vm158, %v157, %v152
    %v160 = vadd.s32 %v141, 4294967272
    %v161 = vlaneseq
    %v162 = vshrl.u32 %v161, 7
    %v163 = vsub.s32 %v160, %v162
    %v164 = vrot.slane %v116, %v163
    %vm165 = vcmask 261312
    %v166 = vsel %vm165, %v164, %v159
    %v167 = vlaneseq
    %v168 = vshrl.u32 %v167, 7
    %v169 = vsub.s32 %v141, %v168
    %v170 = vrot.slane %v117, %v169
    %v171 = vlaneseq
    %v172 = vshrl.u32 %v171, 7
    %v173 = vsub.s32 %v146, %v172
    %v174 = vrot.slane %v118, %v173
    %v175 = vsel %vm151, %v174, %v170
    %v176 = vlaneseq
    %v177 = vshrl.u32 %v176, 7
    %v178 = vsub.s32 %v153, %v177
    %v179 = vrot.slane %v119, %v178
    %v180 = vsel %vm158, %v179, %v175
    %v181 = vlaneseq
    %v182 = vshrl.u32 %v181, 7
    %v183 = vsub.s32 %v160, %v182
    %v184 = vrot.slane %v120, %v183
    %v185 = vsel %vm165, %v184, %v180
    %vm186 = vcmask 1041409
    %v187 = vsel %vm186, %v185, %v166
    %vm188 = vcmask 261120
    %v189 = vsel %vm188, %v187, 0
    %191 = vmatprep.subr.mxu0 0.0
    %192 = vmatpush1.msra.mxu0 0.0
    %193 = vmatprep.subr.mxu0 0.0
    %194 = vmatpush1.msra.mxu0 0.0
    %195 = vmatprep.subr.mxu0 0.0
    %196 = vmatpush1.msra.mxu0 0.0
    %197 = vmatprep.subr.mxu0 0.0
    %198 = vmatpush1.msra.mxu0 0.0
    %199 = vmatprep.subr.mxu0 0.0
    %200 = vmatpush1.msra.mxu0 0.0
    %201 = vmatprep.subr.mxu0 0.0
    %202 = vmatpush1.msra.mxu0 0.0
    %203 = vmatprep.subr.mxu0 0.0
    %204 = vmatpush1.msra.mxu0 0.0
    %205 = vmatprep.subr.mxu0 0.0
    %206 = vmatpush1.msra.mxu0 0.0
    %207 = vmatprep.subr.mxu0 0.0
    %208 = vmatpush1.msra.mxu0 0.0
    %209 = vmatprep.subr.mxu0 0.0
    %210 = vmatpush1.msra.mxu0 0.0
    %211 = vmatprep.subr.mxu0 0.0
    %212 = vmatpush1.msra.mxu0 0.0
    %213 = vmatprep.subr.mxu0 0.0
    %214 = vmatpush1.msra.mxu0 0.0
    %215 = vmatprep.subr.mxu0 0.0
    %v216 = vand.u32 %v124, 4294901760
    %217 = vmatpush1.msra.mxu0 %v216
    %218 = vmatprep.subr.mxu0 0.0
    %v219 = vand.u32 %v123, 4294901760
    %220 = vmatpush1.msra.mxu0 %v219
    %221 = vmatprep.subr.mxu0 0.0
    %v222 = vand.u32 %v122, 4294901760
    %223 = vmatpush1.msra.mxu0 %v222
    %224 = vmatprep.subr.mxu0 0.0
    %v225 = vand.u32 %v121, 4294901760
    %226 = vmatpush1.msra.mxu0 %v225
    %227 = vmatprep.subr.mxu0 0.0
    %228 = vmatpush2.msra.mxu0 0.0
    %229 = vmatprep.subr.mxu0 0.0
    %230 = vmatpush2.msra.mxu0 0.0
    %231 = vmatprep.subr.mxu0 0.0
    %232 = vmatpush2.msra.mxu0 0.0
    %233 = vmatprep.subr.mxu0 0.0
    %234 = vmatpush2.msra.mxu0 0.0
    %235 = vmatprep.subr.mxu0 0.0
    %236 = vmatpush2.msra.mxu0 0.0
    %237 = vmatprep.subr.mxu0 0.0
    %238 = vmatpush2.msra.mxu0 0.0
    %239 = vmatprep.subr.mxu0 0.0
    %240 = vmatpush2.msra.mxu0 0.0
    %241 = vmatprep.subr.mxu0 0.0
    %242 = vmatpush2.msra.mxu0 0.0
    %243 = vmatprep.subr.mxu0 0.0
    %244 = vmatpush2.msra.mxu0 0.0
    %245 = vmatprep.subr.mxu0 0.0
    %246 = vmatpush2.msra.mxu0 0.0
    %247 = vmatprep.subr.mxu0 0.0
    %248 = vmatpush2.msra.mxu0 0.0
    %249 = vmatprep.subr.mxu0 0.0
    %250 = vmatpush2.msra.mxu0 0.0
    %251 = vmatprep.subr.mxu0 0.0
    %252 = vmatpush2.msra.mxu0 0.0
    %253 = vmatprep.subr.mxu0 0.0
    %254 = vmatpush2.msra.mxu0 0.0
    %255 = vmatprep.subr.mxu0 0.0
    %256 = vmatpush2.msra.mxu0 0.0
    %257 = vmatprep.subr.mxu0 0.0
    %258 = vmatpush2.msra.mxu0 0.0
    %259 = vmatprep.mubr.f32.mxu0 0.0
    %v260 = vand.u32 %v189, 4294901760
    %v261 = vsub.f32 %v189, %v260
    %v262 = vand.u32 %v261, 4294901760
    %v263 = vsub.f32 %v261, %v262
    %v264 = vand.u32 %v263, 4294901760
    %265 = vmatmul.mubr.f32.gmra.mxu0 %v264
    %v266 = vpop.f32.mrf.mxu0
    %v267 = vadd.f32 %v130, %v266
    %v268 = vpop.f32.mrf.mxu0
    %269 = vdwg.mxu0
    %270 = vmatprep.subr.mxu0 0.0
    %271 = vmatpush1.msra.mxu0 0.0
    %272 = vmatprep.subr.mxu0 0.0
    %273 = vmatpush1.msra.mxu0 0.0
    %274 = vmatprep.subr.mxu0 0.0
    %275 = vmatpush1.msra.mxu0 0.0
    %276 = vmatprep.subr.mxu0 0.0
    %277 = vmatpush1.msra.mxu0 0.0
    %278 = vmatprep.subr.mxu0 0.0
    %279 = vmatpush1.msra.mxu0 0.0
    %280 = vmatprep.subr.mxu0 0.0
    %281 = vmatpush1.msra.mxu0 0.0
    %282 = vmatprep.subr.mxu0 0.0
    %283 = vmatpush1.msra.mxu0 0.0
    %284 = vmatprep.subr.mxu0 0.0
    %285 = vmatpush1.msra.mxu0 0.0
    %286 = vmatprep.subr.mxu0 0.0
    %287 = vmatpush1.msra.mxu0 0.0
    %288 = vmatprep.subr.mxu0 0.0
    %289 = vmatpush1.msra.mxu0 0.0
    %290 = vmatprep.subr.mxu0 0.0
    %291 = vmatpush1.msra.mxu0 0.0
    %292 = vmatprep.subr.mxu0 0.0
    %293 = vmatpush1.msra.mxu0 0.0
    %294 = vmatprep.subr.mxu0 0.0
    %v295 = vand.u32 %v124, 4294901760
    %v296 = vsub.f32 %v124, %v295
    %v297 = vand.u32 %v296, 4294901760
    %v298 = vsub.f32 %v296, %v297
    %v299 = vand.u32 %v298, 4294901760
    %300 = vmatpush1.msra.mxu0 %v299
    %301 = vmatprep.subr.mxu0 0.0
    %v302 = vand.u32 %v123, 4294901760
    %v303 = vsub.f32 %v123, %v302
    %v304 = vand.u32 %v303, 4294901760
    %v305 = vsub.f32 %v303, %v304
    %v306 = vand.u32 %v305, 4294901760
    %307 = vmatpush1.msra.mxu0 %v306
    %308 = vmatprep.subr.mxu0 0.0
    %v309 = vand.u32 %v122, 4294901760
    %v310 = vsub.f32 %v122, %v309
    %v311 = vand.u32 %v310, 4294901760
    %v312 = vsub.f32 %v310, %v311
    %v313 = vand.u32 %v312, 4294901760
    %314 = vmatpush1.msra.mxu0 %v313
    %315 = vmatprep.subr.mxu0 0.0
    %v316 = vand.u32 %v121, 4294901760
    %v317 = vsub.f32 %v121, %v316
    %v318 = vand.u32 %v317, 4294901760
    %v319 = vsub.f32 %v317, %v318
    %v320 = vand.u32 %v319, 4294901760
    %321 = vmatpush1.msra.mxu0 %v320
    %322 = vmatprep.subr.mxu0 0.0
    %323 = vmatpush2.msra.mxu0 0.0
    %324 = vmatprep.subr.mxu0 0.0
    %325 = vmatpush2.msra.mxu0 0.0
    %326 = vmatprep.subr.mxu0 0.0
    %327 = vmatpush2.msra.mxu0 0.0
    %328 = vmatprep.subr.mxu0 0.0
    %329 = vmatpush2.msra.mxu0 0.0
    %330 = vmatprep.subr.mxu0 0.0
    %331 = vmatpush2.msra.mxu0 0.0
    %332 = vmatprep.subr.mxu0 0.0
    %333 = vmatpush2.msra.mxu0 0.0
    %334 = vmatprep.subr.mxu0 0.0
    %335 = vmatpush2.msra.mxu0 0.0
    %336 = vmatprep.subr.mxu0 0.0
    %337 = vmatpush2.msra.mxu0 0.0
    %338 = vmatprep.subr.mxu0 0.0
    %339 = vmatpush2.msra.mxu0 0.0
    %340 = vmatprep.subr.mxu0 0.0
    %341 = vmatpush2.msra.mxu0 0.0
    %342 = vmatprep.subr.mxu0 0.0
    %343 = vmatpush2.msra.mxu0 0.0
    %344 = vmatprep.subr.mxu0 0.0
    %345 = vmatpush2.msra.mxu0 0.0
    %346 = vmatprep.subr.mxu0 0.0
    %347 = vmatpush2.msra.mxu0 0.0
    %348 = vmatprep.subr.mxu0 0.0
    %349 = vmatpush2.msra.mxu0 0.0
    %350 = vmatprep.subr.mxu0 0.0
    %351 = vmatpush2.msra.mxu0 0.0
    %352 = vmatprep.subr.mxu0 0.0
    %353 = vmatpush2.msra.mxu0 0.0
    %354 = vmatprep.mubr.f32.mxu0 0.0
    %v355 = vand.u32 %v189, 4294901760
    %356 = vmatmul.mubr.f32.gmra.mxu0 %v355
    %v357 = vpop.f32.mrf.mxu0
    %v358 = vadd.f32 %v267, %v357
    %v359 = vpop.f32.mrf.mxu0
    %360 = vdwg.mxu0
    %361 = vmatprep.subr.mxu0 0.0
    %362 = vmatpush1.msra.mxu0 0.0
    %363 = vmatprep.subr.mxu0 0.0
    %364 = vmatpush1.msra.mxu0 0.0
    %365 = vmatprep.subr.mxu0 0.0
    %366 = vmatpush1.msra.mxu0 0.0
    %367 = vmatprep.subr.mxu0 0.0
    %368 = vmatpush1.msra.mxu0 0.0
    %369 = vmatprep.subr.mxu0 0.0
    %370 = vmatpush1.msra.mxu0 0.0
    %371 = vmatprep.subr.mxu0 0.0
    %372 = vmatpush1.msra.mxu0 0.0
    %373 = vmatprep.subr.mxu0 0.0
    %374 = vmatpush1.msra.mxu0 0.0
    %375 = vmatprep.subr.mxu0 0.0
    %376 = vmatpush1.msra.mxu0 0.0
    %377 = vmatprep.subr.mxu0 0.0
    %378 = vmatpush1.msra.mxu0 0.0
    %379 = vmatprep.subr.mxu0 0.0
    %380 = vmatpush1.msra.mxu0 0.0
    %381 = vmatprep.subr.mxu0 0.0
    %382 = vmatpush1.msra.mxu0 0.0
    %383 = vmatprep.subr.mxu0 0.0
    %384 = vmatpush1.msra.mxu0 0.0
    %385 = vmatprep.subr.mxu0 0.0
    %v386 = vand.u32 %v124, 4294901760
    %v387 = vsub.f32 %v124, %v386
    %388 = vmatpush1.msra.mxu0 %v387
    %389 = vmatprep.subr.mxu0 0.0
    %v390 = vand.u32 %v123, 4294901760
    %v391 = vsub.f32 %v123, %v390
    %392 = vmatpush1.msra.mxu0 %v391
    %393 = vmatprep.subr.mxu0 0.0
    %v394 = vand.u32 %v122, 4294901760
    %v395 = vsub.f32 %v122, %v394
    %396 = vmatpush1.msra.mxu0 %v395
    %397 = vmatprep.subr.mxu0 0.0
    %v398 = vand.u32 %v121, 4294901760
    %v399 = vsub.f32 %v121, %v398
    %400 = vmatpush1.msra.mxu0 %v399
    %401 = vmatprep.subr.mxu0 0.0
    %402 = vmatpush2.msra.mxu0 0.0
    %403 = vmatprep.subr.mxu0 0.0
    %404 = vmatpush2.msra.mxu0 0.0
    %405 = vmatprep.subr.mxu0 0.0
    %406 = vmatpush2.msra.mxu0 0.0
    %407 = vmatprep.subr.mxu0 0.0
    %408 = vmatpush2.msra.mxu0 0.0
    %409 = vmatprep.subr.mxu0 0.0
    %410 = vmatpush2.msra.mxu0 0.0
    %411 = vmatprep.subr.mxu0 0.0
    %412 = vmatpush2.msra.mxu0 0.0
    %413 = vmatprep.subr.mxu0 0.0
    %414 = vmatpush2.msra.mxu0 0.0
    %415 = vmatprep.subr.mxu0 0.0
    %416 = vmatpush2.msra.mxu0 0.0
    %417 = vmatprep.subr.mxu0 0.0
    %418 = vmatpush2.msra.mxu0 0.0
    %419 = vmatprep.subr.mxu0 0.0
    %420 = vmatpush2.msra.mxu0 0.0
    %421 = vmatprep.subr.mxu0 0.0
    %422 = vmatpush2.msra.mxu0 0.0
    %423 = vmatprep.subr.mxu0 0.0
    %424 = vmatpush2.msra.mxu0 0.0
    %425 = vmatprep.subr.mxu0 0.0
    %426 = vmatpush2.msra.mxu0 0.0
    %427 = vmatprep.subr.mxu0 0.0
    %428 = vmatpush2.msra.mxu0 0.0
    %429 = vmatprep.subr.mxu0 0.0
    %430 = vmatpush2.msra.mxu0 0.0
    %431 = vmatprep.subr.mxu0 0.0
    %432 = vmatpush2.msra.mxu0 0.0
    %433 = vmatprep.mubr.f32.mxu0 0.0
    %v434 = vand.u32 %v189, 4294901760
    %v435 = vsub.f32 %v189, %v434
    %436 = vmatmul.mubr.f32.gmra.mxu0 %v435
    %v437 = vpop.f32.mrf.mxu0
    %v438 = vadd.f32 %v358, %v437
    %v439 = vpop.f32.mrf.mxu0
    %440 = vdwg.mxu0
    %441 = vmatprep.subr.mxu0 0.0
    %442 = vmatpush1.msra.mxu0 0.0
    %443 = vmatprep.subr.mxu0 0.0
    %444 = vmatpush1.msra.mxu0 0.0
    %445 = vmatprep.subr.mxu0 0.0
    %446 = vmatpush1.msra.mxu0 0.0
    %447 = vmatprep.subr.mxu0 0.0
    %448 = vmatpush1.msra.mxu0 0.0
    %449 = vmatprep.subr.mxu0 0.0
    %450 = vmatpush1.msra.mxu0 0.0
    %451 = vmatprep.subr.mxu0 0.0
    %452 = vmatpush1.msra.mxu0 0.0
    %453 = vmatprep.subr.mxu0 0.0
    %454 = vmatpush1.msra.mxu0 0.0
    %455 = vmatprep.subr.mxu0 0.0
    %456 = vmatpush1.msra.mxu0 0.0
    %457 = vmatprep.subr.mxu0 0.0
    %458 = vmatpush1.msra.mxu0 0.0
    %459 = vmatprep.subr.mxu0 0.0
    %460 = vmatpush1.msra.mxu0 0.0
    %461 = vmatprep.subr.mxu0 0.0
    %462 = vmatpush1.msra.mxu0 0.0
    %463 = vmatprep.subr.mxu0 0.0
    %464 = vmatpush1.msra.mxu0 0.0
    %465 = vmatprep.subr.mxu0 0.0
    %v466 = vand.u32 %v124, 4294901760
    %467 = vmatpush1.msra.mxu0 %v466
    %468 = vmatprep.subr.mxu0 0.0
    %v469 = vand.u32 %v123, 4294901760
    %470 = vmatpush1.msra.mxu0 %v469
    %471 = vmatprep.subr.mxu0 0.0
    %v472 = vand.u32 %v122, 4294901760
    %473 = vmatpush1.msra.mxu0 %v472
    %474 = vmatprep.subr.mxu0 0.0
    %v475 = vand.u32 %v121, 4294901760
    %476 = vmatpush1.msra.mxu0 %v475
    %477 = vmatprep.subr.mxu0 0.0
    %478 = vmatpush2.msra.mxu0 0.0
    %479 = vmatprep.subr.mxu0 0.0
    %480 = vmatpush2.msra.mxu0 0.0
    %481 = vmatprep.subr.mxu0 0.0
    %482 = vmatpush2.msra.mxu0 0.0
    %483 = vmatprep.subr.mxu0 0.0
    %484 = vmatpush2.msra.mxu0 0.0
    %485 = vmatprep.subr.mxu0 0.0
    %486 = vmatpush2.msra.mxu0 0.0
    %487 = vmatprep.subr.mxu0 0.0
    %488 = vmatpush2.msra.mxu0 0.0
    %489 = vmatprep.subr.mxu0 0.0
    %490 = vmatpush2.msra.mxu0 0.0
    %491 = vmatprep.subr.mxu0 0.0
    %492 = vmatpush2.msra.mxu0 0.0
    %493 = vmatprep.subr.mxu0 0.0
    %494 = vmatpush2.msra.mxu0 0.0
    %495 = vmatprep.subr.mxu0 0.0
    %496 = vmatpush2.msra.mxu0 0.0
    %497 = vmatprep.subr.mxu0 0.0
    %498 = vmatpush2.msra.mxu0 0.0
    %499 = vmatprep.subr.mxu0 0.0
    %500 = vmatpush2.msra.mxu0 0.0
    %501 = vmatprep.subr.mxu0 0.0
    %502 = vmatpush2.msra.mxu0 0.0
    %503 = vmatprep.subr.mxu0 0.0
    %504 = vmatpush2.msra.mxu0 0.0
    %505 = vmatprep.subr.mxu0 0.0
    %506 = vmatpush2.msra.mxu0 0.0
    %507 = vmatprep.subr.mxu0 0.0
    %508 = vmatpush2.msra.mxu0 0.0
    %509 = vmatprep.mubr.f32.mxu0 0.0
    %v510 = vand.u32 %v189, 4294901760
    %v511 = vsub.f32 %v189, %v510
    %v512 = vand.u32 %v511, 4294901760
    %513 = vmatmul.mubr.f32.gmra.mxu0 %v512
    %v514 = vpop.f32.mrf.mxu0
    %v515 = vadd.f32 %v438, %v514
    %v516 = vpop.f32.mrf.mxu0
    %517 = vdwg.mxu0
    %518 = vmatprep.subr.mxu0 0.0
    %519 = vmatpush1.msra.mxu0 0.0
    %520 = vmatprep.subr.mxu0 0.0
    %521 = vmatpush1.msra.mxu0 0.0
    %522 = vmatprep.subr.mxu0 0.0
    %523 = vmatpush1.msra.mxu0 0.0
    %524 = vmatprep.subr.mxu0 0.0
    %525 = vmatpush1.msra.mxu0 0.0
    %526 = vmatprep.subr.mxu0 0.0
    %527 = vmatpush1.msra.mxu0 0.0
    %528 = vmatprep.subr.mxu0 0.0
    %529 = vmatpush1.msra.mxu0 0.0
    %530 = vmatprep.subr.mxu0 0.0
    %531 = vmatpush1.msra.mxu0 0.0
    %532 = vmatprep.subr.mxu0 0.0
    %533 = vmatpush1.msra.mxu0 0.0
    %534 = vmatprep.subr.mxu0 0.0
    %535 = vmatpush1.msra.mxu0 0.0
    %536 = vmatprep.subr.mxu0 0.0
    %537 = vmatpush1.msra.mxu0 0.0
    %538 = vmatprep.subr.mxu0 0.0
    %539 = vmatpush1.msra.mxu0 0.0
    %540 = vmatprep.subr.mxu0 0.0
    %541 = vmatpush1.msra.mxu0 0.0
    %542 = vmatprep.subr.mxu0 0.0
    %v543 = vand.u32 %v124, 4294901760
    %v544 = vsub.f32 %v124, %v543
    %v545 = vand.u32 %v544, 4294901760
    %546 = vmatpush1.msra.mxu0 %v545
    %547 = vmatprep.subr.mxu0 0.0
    %v548 = vand.u32 %v123, 4294901760
    %v549 = vsub.f32 %v123, %v548
    %v550 = vand.u32 %v549, 4294901760
    %551 = vmatpush1.msra.mxu0 %v550
    %552 = vmatprep.subr.mxu0 0.0
    %v553 = vand.u32 %v122, 4294901760
    %v554 = vsub.f32 %v122, %v553
    %v555 = vand.u32 %v554, 4294901760
    %556 = vmatpush1.msra.mxu0 %v555
    %557 = vmatprep.subr.mxu0 0.0
    %v558 = vand.u32 %v121, 4294901760
    %v559 = vsub.f32 %v121, %v558
    %v560 = vand.u32 %v559, 4294901760
    %561 = vmatpush1.msra.mxu0 %v560
    %562 = vmatprep.subr.mxu0 0.0
    %563 = vmatpush2.msra.mxu0 0.0
    %564 = vmatprep.subr.mxu0 0.0
    %565 = vmatpush2.msra.mxu0 0.0
    %566 = vmatprep.subr.mxu0 0.0
    %567 = vmatpush2.msra.mxu0 0.0
    %568 = vmatprep.subr.mxu0 0.0
    %569 = vmatpush2.msra.mxu0 0.0
    %570 = vmatprep.subr.mxu0 0.0
    %571 = vmatpush2.msra.mxu0 0.0
    %572 = vmatprep.subr.mxu0 0.0
    %573 = vmatpush2.msra.mxu0 0.0
    %574 = vmatprep.subr.mxu0 0.0
    %575 = vmatpush2.msra.mxu0 0.0
    %576 = vmatprep.subr.mxu0 0.0
    %577 = vmatpush2.msra.mxu0 0.0
    %578 = vmatprep.subr.mxu0 0.0
    %579 = vmatpush2.msra.mxu0 0.0
    %580 = vmatprep.subr.mxu0 0.0
    %581 = vmatpush2.msra.mxu0 0.0
    %582 = vmatprep.subr.mxu0 0.0
    %583 = vmatpush2.msra.mxu0 0.0
    %584 = vmatprep.subr.mxu0 0.0
    %585 = vmatpush2.msra.mxu0 0.0
    %586 = vmatprep.subr.mxu0 0.0
    %587 = vmatpush2.msra.mxu0 0.0
    %588 = vmatprep.subr.mxu0 0.0
    %589 = vmatpush2.msra.mxu0 0.0
    %590 = vmatprep.subr.mxu0 0.0
    %591 = vmatpush2.msra.mxu0 0.0
    %592 = vmatprep.subr.mxu0 0.0
    %593 = vmatpush2.msra.mxu0 0.0
    %594 = vmatprep.mubr.f32.mxu0 0.0
    %v595 = vand.u32 %v189, 4294901760
    %596 = vmatmul.mubr.f32.gmra.mxu0 %v595
    %v597 = vpop.f32.mrf.mxu0
    %v598 = vadd.f32 %v515, %v597
    %v599 = vpop.f32.mrf.mxu0
    %600 = vdwg.mxu0
    %601 = vmatprep.subr.mxu0 0.0
    %602 = vmatpush1.msra.mxu0 0.0
    %603 = vmatprep.subr.mxu0 0.0
    %604 = vmatpush1.msra.mxu0 0.0
    %605 = vmatprep.subr.mxu0 0.0
    %606 = vmatpush1.msra.mxu0 0.0
    %607 = vmatprep.subr.mxu0 0.0
    %608 = vmatpush1.msra.mxu0 0.0
    %609 = vmatprep.subr.mxu0 0.0
    %610 = vmatpush1.msra.mxu0 0.0
    %611 = vmatprep.subr.mxu0 0.0
    %612 = vmatpush1.msra.mxu0 0.0
    %613 = vmatprep.subr.mxu0 0.0
    %614 = vmatpush1.msra.mxu0 0.0
    %615 = vmatprep.subr.mxu0 0.0
    %616 = vmatpush1.msra.mxu0 0.0
    %617 = vmatprep.subr.mxu0 0.0
    %618 = vmatpush1.msra.mxu0 0.0
    %619 = vmatprep.subr.mxu0 0.0
    %620 = vmatpush1.msra.mxu0 0.0
    %621 = vmatprep.subr.mxu0 0.0
    %622 = vmatpush1.msra.mxu0 0.0
    %623 = vmatprep.subr.mxu0 0.0
    %624 = vmatpush1.msra.mxu0 0.0
    %625 = vmatprep.subr.mxu0 0.0
    %v626 = vand.u32 %v124, 4294901760
    %627 = vmatpush1.msra.mxu0 %v626
    %628 = vmatprep.subr.mxu0 0.0
    %v629 = vand.u32 %v123, 4294901760
    %630 = vmatpush1.msra.mxu0 %v629
    %631 = vmatprep.subr.mxu0 0.0
    %v632 = vand.u32 %v122, 4294901760
    %633 = vmatpush1.msra.mxu0 %v632
    %634 = vmatprep.subr.mxu0 0.0
    %v635 = vand.u32 %v121, 4294901760
    %636 = vmatpush1.msra.mxu0 %v635
    %637 = vmatprep.subr.mxu0 0.0
    %638 = vmatpush2.msra.mxu0 0.0
    %639 = vmatprep.subr.mxu0 0.0
    %640 = vmatpush2.msra.mxu0 0.0
    %641 = vmatprep.subr.mxu0 0.0
    %642 = vmatpush2.msra.mxu0 0.0
    %643 = vmatprep.subr.mxu0 0.0
    %644 = vmatpush2.msra.mxu0 0.0
    %645 = vmatprep.subr.mxu0 0.0
    %646 = vmatpush2.msra.mxu0 0.0
    %647 = vmatprep.subr.mxu0 0.0
    %648 = vmatpush2.msra.mxu0 0.0
    %649 = vmatprep.subr.mxu0 0.0
    %650 = vmatpush2.msra.mxu0 0.0
    %651 = vmatprep.subr.mxu0 0.0
    %652 = vmatpush2.msra.mxu0 0.0
    %653 = vmatprep.subr.mxu0 0.0
    %654 = vmatpush2.msra.mxu0 0.0
    %655 = vmatprep.subr.mxu0 0.0
    %656 = vmatpush2.msra.mxu0 0.0
    %657 = vmatprep.subr.mxu0 0.0
    %658 = vmatpush2.msra.mxu0 0.0
    %659 = vmatprep.subr.mxu0 0.0
    %660 = vmatpush2.msra.mxu0 0.0
    %661 = vmatprep.subr.mxu0 0.0
    %662 = vmatpush2.msra.mxu0 0.0
    %663 = vmatprep.subr.mxu0 0.0
    %664 = vmatpush2.msra.mxu0 0.0
    %665 = vmatprep.subr.mxu0 0.0
    %666 = vmatpush2.msra.mxu0 0.0
    %667 = vmatprep.subr.mxu0 0.0
    %668 = vmatpush2.msra.mxu0 0.0
    %669 = vmatprep.mubr.f32.mxu0 0.0
    %v670 = vand.u32 %v189, 4294901760
    %671 = vmatmul.mubr.f32.gmra.mxu0 %v670
    %v672 = vpop.f32.mrf.mxu0
    %v673 = vadd.f32 %v598, %v672
    %v674 = vpop.f32.mrf.mxu0
    %675 = vdwg.mxu0
    %v676 = vmax.f32 %v673, 0.0
    %v677 = vld [vmem:[%s3] sm:$0x3]
    %v678 = vld [vmem:[%s4] sm:$0x1]
    %v680 = vlaneseq
    %v681 = vshrl.u32 %v680, 7
    %v682 = vsub.s32 0, %v681
    %v683 = vrot.slane %v678, %v682
    %vm685 = vcmask 15360
    %v687 = vsel %vm685, %v676, 0
    %vm689 = vcmask 1041408
    %v691 = vsel %vm689, %v677, 0
    %693 = vmatprep.subr.mxu0 0.0
    %694 = vmatpush1.msra.mxu0 0.0
    %695 = vmatprep.subr.mxu0 0.0
    %696 = vmatpush1.msra.mxu0 0.0
    %697 = vmatprep.subr.mxu0 0.0
    %698 = vmatpush1.msra.mxu0 0.0
    %699 = vmatprep.subr.mxu0 0.0
    %700 = vmatpush1.msra.mxu0 0.0
    %701 = vmatprep.subr.mxu0 0.0
    %702 = vmatpush1.msra.mxu0 0.0
    %703 = vmatprep.subr.mxu0 0.0
    %704 = vmatpush1.msra.mxu0 0.0
    %705 = vmatprep.subr.mxu0 0.0
    %706 = vmatpush1.msra.mxu0 0.0
    %707 = vmatprep.subr.mxu0 0.0
    %708 = vmatpush1.msra.mxu0 0.0
    %709 = vmatprep.subr.mxu0 0.0
    %710 = vmatpush1.msra.mxu0 0.0
    %711 = vmatprep.subr.mxu0 0.0
    %712 = vmatpush1.msra.mxu0 0.0
    %713 = vmatprep.subr.mxu0 0.0
    %714 = vmatpush1.msra.mxu0 0.0
    %715 = vmatprep.subr.mxu0 0.0
    %716 = vmatpush1.msra.mxu0 0.0
    %717 = vmatprep.subr.mxu0 0.0
    %718 = vmatpush1.msra.mxu0 0.0
    %719 = vmatprep.subr.mxu0 0.0
    %720 = vmatpush1.msra.mxu0 0.0
    %721 = vmatprep.subr.mxu0 0.0
    %722 = vmatpush1.msra.mxu0 0.0
    %723 = vmatprep.subr.mxu0 0.0
    %v724 = vand.u32 %v691, 4294901760
    %725 = vmatpush1.msra.mxu0 %v724
    %726 = vmatprep.subr.mxu0 0.0
    %727 = vmatpush2.msra.mxu0 0.0
    %728 = vmatprep.subr.mxu0 0.0
    %729 = vmatpush2.msra.mxu0 0.0
    %730 = vmatprep.subr.mxu0 0.0
    %731 = vmatpush2.msra.mxu0 0.0
    %732 = vmatprep.subr.mxu0 0.0
    %733 = vmatpush2.msra.mxu0 0.0
    %734 = vmatprep.subr.mxu0 0.0
    %735 = vmatpush2.msra.mxu0 0.0
    %736 = vmatprep.subr.mxu0 0.0
    %737 = vmatpush2.msra.mxu0 0.0
    %738 = vmatprep.subr.mxu0 0.0
    %739 = vmatpush2.msra.mxu0 0.0
    %740 = vmatprep.subr.mxu0 0.0
    %741 = vmatpush2.msra.mxu0 0.0
    %742 = vmatprep.subr.mxu0 0.0
    %743 = vmatpush2.msra.mxu0 0.0
    %744 = vmatprep.subr.mxu0 0.0
    %745 = vmatpush2.msra.mxu0 0.0
    %746 = vmatprep.subr.mxu0 0.0
    %747 = vmatpush2.msra.mxu0 0.0
    %748 = vmatprep.subr.mxu0 0.0
    %749 = vmatpush2.msra.mxu0 0.0
    %750 = vmatprep.subr.mxu0 0.0
    %751 = vmatpush2.msra.mxu0 0.0
    %752 = vmatprep.subr.mxu0 0.0
    %753 = vmatpush2.msra.mxu0 0.0
    %754 = vmatprep.subr.mxu0 0.0
    %755 = vmatpush2.msra.mxu0 0.0
    %756 = vmatprep.subr.mxu0 0.0
    %757 = vmatpush2.msra.mxu0 0.0
    %758 = vmatprep.mubr.f32.mxu0 0.0
    %v759 = vand.u32 %v687, 4294901760
    %v760 = vsub.f32 %v687, %v759
    %v761 = vand.u32 %v760, 4294901760
    %v762 = vsub.f32 %v760, %v761
    %v763 = vand.u32 %v762, 4294901760
    %764 = vmatmul.mubr.f32.gmra.mxu0 %v763
    %v765 = vpop.f32.mrf.mxu0
    %v766 = vadd.f32 %v683, %v765
    %v767 = vpop.f32.mrf.mxu0
    %768 = vdwg.mxu0
    %769 = vmatprep.subr.mxu0 0.0
    %770 = vmatpush1.msra.mxu0 0.0
    %771 = vmatprep.subr.mxu0 0.0
    %772 = vmatpush1.msra.mxu0 0.0
    %773 = vmatprep.subr.mxu0 0.0
    %774 = vmatpush1.msra.mxu0 0.0
    %775 = vmatprep.subr.mxu0 0.0
    %776 = vmatpush1.msra.mxu0 0.0
    %777 = vmatprep.subr.mxu0 0.0
    %778 = vmatpush1.msra.mxu0 0.0
    %779 = vmatprep.subr.mxu0 0.0
    %780 = vmatpush1.msra.mxu0 0.0
    %781 = vmatprep.subr.mxu0 0.0
    %782 = vmatpush1.msra.mxu0 0.0
    %783 = vmatprep.subr.mxu0 0.0
    %784 = vmatpush1.msra.mxu0 0.0
    %785 = vmatprep.subr.mxu0 0.0
    %786 = vmatpush1.msra.mxu0 0.0
    %787 = vmatprep.subr.mxu0 0.0
    %788 = vmatpush1.msra.mxu0 0.0
    %789 = vmatprep.subr.mxu0 0.0
    %790 = vmatpush1.msra.mxu0 0.0
    %791 = vmatprep.subr.mxu0 0.0
    %792 = vmatpush1.msra.mxu0 0.0
    %793 = vmatprep.subr.mxu0 0.0
    %794 = vmatpush1.msra.mxu0 0.0
    %795 = vmatprep.subr.mxu0 0.0
    %796 = vmatpush1.msra.mxu0 0.0
    %797 = vmatprep.subr.mxu0 0.0
    %798 = vmatpush1.msra.mxu0 0.0
    %799 = vmatprep.subr.mxu0 0.0
    %v800 = vand.u32 %v691, 4294901760
    %v801 = vsub.f32 %v691, %v800
    %v802 = vand.u32 %v801, 4294901760
    %v803 = vsub.f32 %v801, %v802
    %v804 = vand.u32 %v803, 4294901760
    %805 = vmatpush1.msra.mxu0 %v804
    %806 = vmatprep.subr.mxu0 0.0
    %807 = vmatpush2.msra.mxu0 0.0
    %808 = vmatprep.subr.mxu0 0.0
    %809 = vmatpush2.msra.mxu0 0.0
    %810 = vmatprep.subr.mxu0 0.0
    %811 = vmatpush2.msra.mxu0 0.0
    %812 = vmatprep.subr.mxu0 0.0
    %813 = vmatpush2.msra.mxu0 0.0
    %814 = vmatprep.subr.mxu0 0.0
    %815 = vmatpush2.msra.mxu0 0.0
    %816 = vmatprep.subr.mxu0 0.0
    %817 = vmatpush2.msra.mxu0 0.0
    %818 = vmatprep.subr.mxu0 0.0
    %819 = vmatpush2.msra.mxu0 0.0
    %820 = vmatprep.subr.mxu0 0.0
    %821 = vmatpush2.msra.mxu0 0.0
    %822 = vmatprep.subr.mxu0 0.0
    %823 = vmatpush2.msra.mxu0 0.0
    %824 = vmatprep.subr.mxu0 0.0
    %825 = vmatpush2.msra.mxu0 0.0
    %826 = vmatprep.subr.mxu0 0.0
    %827 = vmatpush2.msra.mxu0 0.0
    %828 = vmatprep.subr.mxu0 0.0
    %829 = vmatpush2.msra.mxu0 0.0
    %830 = vmatprep.subr.mxu0 0.0
    %831 = vmatpush2.msra.mxu0 0.0
    %832 = vmatprep.subr.mxu0 0.0
    %833 = vmatpush2.msra.mxu0 0.0
    %834 = vmatprep.subr.mxu0 0.0
    %835 = vmatpush2.msra.mxu0 0.0
    %836 = vmatprep.subr.mxu0 0.0
    %837 = vmatpush2.msra.mxu0 0.0
    %838 = vmatprep.mubr.f32.mxu0 0.0
    %v839 = vand.u32 %v687, 4294901760
    %840 = vmatmul.mubr.f32.gmra.mxu0 %v839
    %v841 = vpop.f32.mrf.mxu0
    %v842 = vadd.f32 %v766, %v841
    %v843 = vpop.f32.mrf.mxu0
    %844 = vdwg.mxu0
    %845 = vmatprep.subr.mxu0 0.0
    %846 = vmatpush1.msra.mxu0 0.0
    %847 = vmatprep.subr.mxu0 0.0
    %848 = vmatpush1.msra.mxu0 0.0
    %849 = vmatprep.subr.mxu0 0.0
    %850 = vmatpush1.msra.mxu0 0.0
    %851 = vmatprep.subr.mxu0 0.0
    %852 = vmatpush1.msra.mxu0 0.0
    %853 = vmatprep.subr.mxu0 0.0
    %854 = vmatpush1.msra.mxu0 0.0
    %855 = vmatprep.subr.mxu0 0.0
    %856 = vmatpush1.msra.mxu0 0.0
    %857 = vmatprep.subr.mxu0 0.0
    %858 = vmatpush1.msra.mxu0 0.0
    %859 = vmatprep.subr.mxu0 0.0
    %860 = vmatpush1.msra.mxu0 0.0
    %861 = vmatprep.subr.mxu0 0.0
    %862 = vmatpush1.msra.mxu0 0.0
    %863 = vmatprep.subr.mxu0 0.0
    %864 = vmatpush1.msra.mxu0 0.0
    %865 = vmatprep.subr.mxu0 0.0
    %866 = vmatpush1.msra.mxu0 0.0
    %867 = vmatprep.subr.mxu0 0.0
    %868 = vmatpush1.msra.mxu0 0.0
    %869 = vmatprep.subr.mxu0 0.0
    %870 = vmatpush1.msra.mxu0 0.0
    %871 = vmatprep.subr.mxu0 0.0
    %872 = vmatpush1.msra.mxu0 0.0
    %873 = vmatprep.subr.mxu0 0.0
    %874 = vmatpush1.msra.mxu0 0.0
    %875 = vmatprep.subr.mxu0 0.0
    %v876 = vand.u32 %v691, 4294901760
    %v877 = vsub.f32 %v691, %v876
    %878 = vmatpush1.msra.mxu0 %v877
    %879 = vmatprep.subr.mxu0 0.0
    %880 = vmatpush2.msra.mxu0 0.0
    %881 = vmatprep.subr.mxu0 0.0
    %882 = vmatpush2.msra.mxu0 0.0
    %883 = vmatprep.subr.mxu0 0.0
    %884 = vmatpush2.msra.mxu0 0.0
    %885 = vmatprep.subr.mxu0 0.0
    %886 = vmatpush2.msra.mxu0 0.0
    %887 = vmatprep.subr.mxu0 0.0
    %888 = vmatpush2.msra.mxu0 0.0
    %889 = vmatprep.subr.mxu0 0.0
    %890 = vmatpush2.msra.mxu0 0.0
    %891 = vmatprep.subr.mxu0 0.0
    %892 = vmatpush2.msra.mxu0 0.0
    %893 = vmatprep.subr.mxu0 0.0
    %894 = vmatpush2.msra.mxu0 0.0
    %895 = vmatprep.subr.mxu0 0.0
    %896 = vmatpush2.msra.mxu0 0.0
    %897 = vmatprep.subr.mxu0 0.0
    %898 = vmatpush2.msra.mxu0 0.0
    %899 = vmatprep.subr.mxu0 0.0
    %900 = vmatpush2.msra.mxu0 0.0
    %901 = vmatprep.subr.mxu0 0.0
    %902 = vmatpush2.msra.mxu0 0.0
    %903 = vmatprep.subr.mxu0 0.0
    %904 = vmatpush2.msra.mxu0 0.0
    %905 = vmatprep.subr.mxu0 0.0
    %906 = vmatpush2.msra.mxu0 0.0
    %907 = vmatprep.subr.mxu0 0.0
    %908 = vmatpush2.msra.mxu0 0.0
    %909 = vmatprep.subr.mxu0 0.0
    %910 = vmatpush2.msra.mxu0 0.0
    %911 = vmatprep.mubr.f32.mxu0 0.0
    %v912 = vand.u32 %v687, 4294901760
    %v913 = vsub.f32 %v687, %v912
    %914 = vmatmul.mubr.f32.gmra.mxu0 %v913
    %v915 = vpop.f32.mrf.mxu0
    %v916 = vadd.f32 %v842, %v915
    %v917 = vpop.f32.mrf.mxu0
    %918 = vdwg.mxu0
    %919 = vmatprep.subr.mxu0 0.0
    %920 = vmatpush1.msra.mxu0 0.0
    %921 = vmatprep.subr.mxu0 0.0
    %922 = vmatpush1.msra.mxu0 0.0
    %923 = vmatprep.subr.mxu0 0.0
    %924 = vmatpush1.msra.mxu0 0.0
    %925 = vmatprep.subr.mxu0 0.0
    %926 = vmatpush1.msra.mxu0 0.0
    %927 = vmatprep.subr.mxu0 0.0
    %928 = vmatpush1.msra.mxu0 0.0
    %929 = vmatprep.subr.mxu0 0.0
    %930 = vmatpush1.msra.mxu0 0.0
    %931 = vmatprep.subr.mxu0 0.0
    %932 = vmatpush1.msra.mxu0 0.0
    %933 = vmatprep.subr.mxu0 0.0
    %934 = vmatpush1.msra.mxu0 0.0
    %935 = vmatprep.subr.mxu0 0.0
    %936 = vmatpush1.msra.mxu0 0.0
    %937 = vmatprep.subr.mxu0 0.0
    %938 = vmatpush1.msra.mxu0 0.0
    %939 = vmatprep.subr.mxu0 0.0
    %940 = vmatpush1.msra.mxu0 0.0
    %941 = vmatprep.subr.mxu0 0.0
    %942 = vmatpush1.msra.mxu0 0.0
    %943 = vmatprep.subr.mxu0 0.0
    %944 = vmatpush1.msra.mxu0 0.0
    %945 = vmatprep.subr.mxu0 0.0
    %946 = vmatpush1.msra.mxu0 0.0
    %947 = vmatprep.subr.mxu0 0.0
    %948 = vmatpush1.msra.mxu0 0.0
    %949 = vmatprep.subr.mxu0 0.0
    %v950 = vand.u32 %v691, 4294901760
    %951 = vmatpush1.msra.mxu0 %v950
    %952 = vmatprep.subr.mxu0 0.0
    %953 = vmatpush2.msra.mxu0 0.0
    %954 = vmatprep.subr.mxu0 0.0
    %955 = vmatpush2.msra.mxu0 0.0
    %956 = vmatprep.subr.mxu0 0.0
    %957 = vmatpush2.msra.mxu0 0.0
    %958 = vmatprep.subr.mxu0 0.0
    %959 = vmatpush2.msra.mxu0 0.0
    %960 = vmatprep.subr.mxu0 0.0
    %961 = vmatpush2.msra.mxu0 0.0
    %962 = vmatprep.subr.mxu0 0.0
    %963 = vmatpush2.msra.mxu0 0.0
    %964 = vmatprep.subr.mxu0 0.0
    %965 = vmatpush2.msra.mxu0 0.0
    %966 = vmatprep.subr.mxu0 0.0
    %967 = vmatpush2.msra.mxu0 0.0
    %968 = vmatprep.subr.mxu0 0.0
    %969 = vmatpush2.msra.mxu0 0.0
    %970 = vmatprep.subr.mxu0 0.0
    %971 = vmatpush2.msra.mxu0 0.0
    %972 = vmatprep.subr.mxu0 0.0
    %973 = vmatpush2.msra.mxu0 0.0
    %974 = vmatprep.subr.mxu0 0.0
    %975 = vmatpush2.msra.mxu0 0.0
    %976 = vmatprep.subr.mxu0 0.0
    %977 = vmatpush2.msra.mxu0 0.0
    %978 = vmatprep.subr.mxu0 0.0
    %979 = vmatpush2.msra.mxu0 0.0
    %980 = vmatprep.subr.mxu0 0.0
    %981 = vmatpush2.msra.mxu0 0.0
    %982 = vmatprep.subr.mxu0 0.0
    %983 = vmatpush2.msra.mxu0 0.0
    %984 = vmatprep.mubr.f32.mxu0 0.0
    %v985 = vand.u32 %v687, 4294901760
    %v986 = vsub.f32 %v687, %v985
    %v987 = vand.u32 %v986, 4294901760
    %988 = vmatmul.mubr.f32.gmra.mxu0 %v987
    %v989 = vpop.f32.mrf.mxu0
    %v990 = vadd.f32 %v916, %v989
    %v991 = vpop.f32.mrf.mxu0
    %992 = vdwg.mxu0
    %993 = vmatprep.subr.mxu0 0.0
    %994 = vmatpush1.msra.mxu0 0.0
    %995 = vmatprep.subr.mxu0 0.0
    %996 = vmatpush1.msra.mxu0 0.0
    %997 = vmatprep.subr.mxu0 0.0
    %998 = vmatpush1.msra.mxu0 0.0
    %999 = vmatprep.subr.mxu0 0.0
    %1000 = vmatpush1.msra.mxu0 0.0
    %1001 = vmatprep.subr.mxu0 0.0
    %1002 = vmatpush1.msra.mxu0 0.0
    %1003 = vmatprep.subr.mxu0 0.0
    %1004 = vmatpush1.msra.mxu0 0.0
    %1005 = vmatprep.subr.mxu0 0.0
    %1006 = vmatpush1.msra.mxu0 0.0
    %1007 = vmatprep.subr.mxu0 0.0
    %1008 = vmatpush1.msra.mxu0 0.0
    %1009 = vmatprep.subr.mxu0 0.0
    %1010 = vmatpush1.msra.mxu0 0.0
    %1011 = vmatprep.subr.mxu0 0.0
    %1012 = vmatpush1.msra.mxu0 0.0
    %1013 = vmatprep.subr.mxu0 0.0
    %1014 = vmatpush1.msra.mxu0 0.0
    %1015 = vmatprep.subr.mxu0 0.0
    %1016 = vmatpush1.msra.mxu0 0.0
    %1017 = vmatprep.subr.mxu0 0.0
    %1018 = vmatpush1.msra.mxu0 0.0
    %1019 = vmatprep.subr.mxu0 0.0
    %1020 = vmatpush1.msra.mxu0 0.0
    %1021 = vmatprep.subr.mxu0 0.0
    %1022 = vmatpush1.msra.mxu0 0.0
    %1023 = vmatprep.subr.mxu0 0.0
    %v1024 = vand.u32 %v691, 4294901760
    %v1025 = vsub.f32 %v691, %v1024
    %v1026 = vand.u32 %v1025, 4294901760
    %1027 = vmatpush1.msra.mxu0 %v1026
    %1028 = vmatprep.subr.mxu0 0.0
    %1029 = vmatpush2.msra.mxu0 0.0
    %1030 = vmatprep.subr.mxu0 0.0
    %1031 = vmatpush2.msra.mxu0 0.0
    %1032 = vmatprep.subr.mxu0 0.0
    %1033 = vmatpush2.msra.mxu0 0.0
    %1034 = vmatprep.subr.mxu0 0.0
    %1035 = vmatpush2.msra.mxu0 0.0
    %1036 = vmatprep.subr.mxu0 0.0
    %1037 = vmatpush2.msra.mxu0 0.0
    %1038 = vmatprep.subr.mxu0 0.0
    %1039 = vmatpush2.msra.mxu0 0.0
    %1040 = vmatprep.subr.mxu0 0.0
    %1041 = vmatpush2.msra.mxu0 0.0
    %1042 = vmatprep.subr.mxu0 0.0
    %1043 = vmatpush2.msra.mxu0 0.0
    %1044 = vmatprep.subr.mxu0 0.0
    %1045 = vmatpush2.msra.mxu0 0.0
    %1046 = vmatprep.subr.mxu0 0.0
    %1047 = vmatpush2.msra.mxu0 0.0
    %1048 = vmatprep.subr.mxu0 0.0
    %1049 = vmatpush2.msra.mxu0 0.0
    %1050 = vmatprep.subr.mxu0 0.0
    %1051 = vmatpush2.msra.mxu0 0.0
    %1052 = vmatprep.subr.mxu0 0.0
    %1053 = vmatpush2.msra.mxu0 0.0
    %1054 = vmatprep.subr.mxu0 0.0
    %1055 = vmatpush2.msra.mxu0 0.0
    %1056 = vmatprep.subr.mxu0 0.0
    %1057 = vmatpush2.msra.mxu0 0.0
    %1058 = vmatprep.subr.mxu0 0.0
    %1059 = vmatpush2.msra.mxu0 0.0
    %1060 = vmatprep.mubr.f32.mxu0 0.0
    %v1061 = vand.u32 %v687, 4294901760
    %1062 = vmatmul.mubr.f32.gmra.mxu0 %v1061
    %v1063 = vpop.f32.mrf.mxu0
    %v1064 = vadd.f32 %v990, %v1063
    %v1065 = vpop.f32.mrf.mxu0
    %1066 = vdwg.mxu0
    %1067 = vmatprep.subr.mxu0 0.0
    %1068 = vmatpush1.msra.mxu0 0.0
    %1069 = vmatprep.subr.mxu0 0.0
    %1070 = vmatpush1.msra.mxu0 0.0
    %1071 = vmatprep.subr.mxu0 0.0
    %1072 = vmatpush1.msra.mxu0 0.0
    %1073 = vmatprep.subr.mxu0 0.0
    %1074 = vmatpush1.msra.mxu0 0.0
    %1075 = vmatprep.subr.mxu0 0.0
    %1076 = vmatpush1.msra.mxu0 0.0
    %1077 = vmatprep.subr.mxu0 0.0
    %1078 = vmatpush1.msra.mxu0 0.0
    %1079 = vmatprep.subr.mxu0 0.0
    %1080 = vmatpush1.msra.mxu0 0.0
    %1081 = vmatprep.subr.mxu0 0.0
    %1082 = vmatpush1.msra.mxu0 0.0
    %1083 = vmatprep.subr.mxu0 0.0
    %1084 = vmatpush1.msra.mxu0 0.0
    %1085 = vmatprep.subr.mxu0 0.0
    %1086 = vmatpush1.msra.mxu0 0.0
    %1087 = vmatprep.subr.mxu0 0.0
    %1088 = vmatpush1.msra.mxu0 0.0
    %1089 = vmatprep.subr.mxu0 0.0
    %1090 = vmatpush1.msra.mxu0 0.0
    %1091 = vmatprep.subr.mxu0 0.0
    %1092 = vmatpush1.msra.mxu0 0.0
    %1093 = vmatprep.subr.mxu0 0.0
    %1094 = vmatpush1.msra.mxu0 0.0
    %1095 = vmatprep.subr.mxu0 0.0
    %1096 = vmatpush1.msra.mxu0 0.0
    %1097 = vmatprep.subr.mxu0 0.0
    %v1098 = vand.u32 %v691, 4294901760
    %1099 = vmatpush1.msra.mxu0 %v1098
    %1100 = vmatprep.subr.mxu0 0.0
    %1101 = vmatpush2.msra.mxu0 0.0
    %1102 = vmatprep.subr.mxu0 0.0
    %1103 = vmatpush2.msra.mxu0 0.0
    %1104 = vmatprep.subr.mxu0 0.0
    %1105 = vmatpush2.msra.mxu0 0.0
    %1106 = vmatprep.subr.mxu0 0.0
    %1107 = vmatpush2.msra.mxu0 0.0
    %1108 = vmatprep.subr.mxu0 0.0
    %1109 = vmatpush2.msra.mxu0 0.0
    %1110 = vmatprep.subr.mxu0 0.0
    %1111 = vmatpush2.msra.mxu0 0.0
    %1112 = vmatprep.subr.mxu0 0.0
    %1113 = vmatpush2.msra.mxu0 0.0
    %1114 = vmatprep.subr.mxu0 0.0
    %1115 = vmatpush2.msra.mxu0 0.0
    %1116 = vmatprep.subr.mxu0 0.0
    %1117 = vmatpush2.msra.mxu0 0.0
    %1118 = vmatprep.subr.mxu0 0.0
    %1119 = vmatpush2.msra.mxu0 0.0
    %1120 = vmatprep.subr.mxu0 0.0
    %1121 = vmatpush2.msra.mxu0 0.0
    %1122 = vmatprep.subr.mxu0 0.0
    %1123 = vmatpush2.msra.mxu0 0.0
    %1124 = vmatprep.subr.mxu0 0.0
    %1125 = vmatpush2.msra.mxu0 0.0
    %1126 = vmatprep.subr.mxu0 0.0
    %1127 = vmatpush2.msra.mxu0 0.0
    %1128 = vmatprep.subr.mxu0 0.0
    %1129 = vmatpush2.msra.mxu0 0.0
    %1130 = vmatprep.subr.mxu0 0.0
    %1131 = vmatpush2.msra.mxu0 0.0
    %1132 = vmatprep.mubr.f32.mxu0 0.0
    %v1133 = vand.u32 %v687, 4294901760
    %1134 = vmatmul.mubr.f32.gmra.mxu0 %v1133
    %v1135 = vpop.f32.mrf.mxu0
    %v1136 = vadd.f32 %v1064, %v1135
    %v1137 = vpop.f32.mrf.mxu0
    %1138 = vdwg.mxu0
    %v1139 = vxor.u32 %v1136, 2147483648
    %v1140 = vmul.f32 %v1139, 1.442695
    %v1141 = vpow.pop %v1140
    %v1142 = vadd.f32 %v1141, 1.0
    %v1143 = vrcp.pop %v1142
    %v1144 = vmul.f32 1.0, %v1143
    %v1145 = vlaneseq
    %v1146 = vshrl.u32 %v1145, 7
    %v1147 = vsub.s32 0, %v1146
    %v1148 = vrot.slane %v1144, %v1147
    %1150 = vbcast.lane.b32.xlu0 %v1148, 256
    %v1151 = vpop.permute.xlu0 %1150
    %s1153 = sor.u32 256, 8
    %1154 = vbcast.lane.b32.xlu0 %v1148, %s1153
    %v1155 = vpop.permute.xlu0 %1154
    %s1157 = sor.u32 256, 16
    %1158 = vbcast.lane.b32.xlu0 %v1148, %s1157
    %v1159 = vpop.permute.xlu0 %1158
    %s1161 = sor.u32 256, 24
    %1162 = vbcast.lane.b32.xlu0 %v1148, %s1161
    %v1163 = vpop.permute.xlu0 %1162
    %v1164 = vlaneseq
    %v1165 = vshrl.u32 %v1164, 7
    %v1166 = vsub.s32 1, %v1165
    %v1167 = vrot.slane %v1144, %v1166
    %1169 = vbcast.lane.b32.xlu0 %v1167, 256
    %v1170 = vpop.permute.xlu0 %1169
    %s1172 = sor.u32 256, 8
    %1173 = vbcast.lane.b32.xlu0 %v1167, %s1172
    %v1174 = vpop.permute.xlu0 %1173
    %s1176 = sor.u32 256, 16
    %1177 = vbcast.lane.b32.xlu0 %v1167, %s1176
    %v1178 = vpop.permute.xlu0 %1177
    %s1180 = sor.u32 256, 24
    %1181 = vbcast.lane.b32.xlu0 %v1167, %s1180
    %v1182 = vpop.permute.xlu0 %1181
    %v1183 = vmul.f32 %v1151, %v72
    %v1184 = vmul.f32 %v1151, %v73
    %v1185 = vmul.f32 %v1155, %v74
    %v1186 = vmul.f32 %v1155, %v75
    %v1187 = vmul.f32 %v1159, %v76
    %v1188 = vmul.f32 %v1159, %v77
    %v1189 = vmul.f32 %v1163, %v78
    %v1190 = vmul.f32 %v1163, %v79
    %v1191 = vmul.f32 %v1170, %v80
    %v1192 = vmul.f32 %v1170, %v81
    %v1193 = vmul.f32 %v1174, %v82
    %v1194 = vmul.f32 %v1174, %v83
    %v1195 = vmul.f32 %v1178, %v84
    %v1196 = vmul.f32 %v1178, %v85
    %v1197 = vmul.f32 %v1182, %v86
    %v1198 = vmul.f32 %v1182, %v87
    %v1199 = vmax.f32 %v1183, %v1185
    %v1200 = vmax.f32 %v1199, %v1187
    %v1201 = vmax.f32 %v1200, %v1189
    %v1202 = vrot.slane %v1201, 4
    %v1203 = vmax.f32 %v1201, %v1202
    %v1204 = vrot.slane %v1203, 2
    %v1205 = vmax.f32 %v1203, %v1204
    %v1206 = vrot.slane %v1205, 1
    %v1207 = vmax.f32 %v1205, %v1206
    %v1208 = vmax.f32 %v1184, %v1186
    %v1209 = vmax.f32 %v1208, %v1188
    %v1210 = vmax.f32 %v1209, %v1190
    %v1211 = vrot.slane %v1210, 4
    %v1212 = vmax.f32 %v1210, %v1211
    %v1213 = vrot.slane %v1212, 2
    %v1214 = vmax.f32 %v1212, %v1213
    %v1215 = vrot.slane %v1214, 1
    %v1216 = vmax.f32 %v1214, %v1215
    %v1217 = vmax.f32 %v1191, %v1193
    %v1218 = vmax.f32 %v1217, %v1195
    %v1219 = vmax.f32 %v1218, %v1197
    %v1220 = vrot.slane %v1219, 4
    %v1221 = vmax.f32 %v1219, %v1220
    %v1222 = vrot.slane %v1221, 2
    %v1223 = vmax.f32 %v1221, %v1222
    %v1224 = vrot.slane %v1223, 1
    %v1225 = vmax.f32 %v1223, %v1224
    %v1226 = vmax.f32 %v1192, %v1194
    %v1227 = vmax.f32 %v1226, %v1196
    %v1228 = vmax.f32 %v1227, %v1198
    %v1229 = vrot.slane %v1228, 4
    %v1230 = vmax.f32 %v1228, %v1229
    %v1231 = vrot.slane %v1230, 2
    %v1232 = vmax.f32 %v1230, %v1231
    %v1233 = vrot.slane %v1232, 1
    %v1234 = vmax.f32 %v1232, %v1233
    %v1235 = vadd.f32 %v1183, %v1185
    %v1236 = vadd.f32 %v1235, %v1187
    %v1237 = vadd.f32 %v1236, %v1189
    %v1238 = vrot.slane %v1237, 4
    %v1239 = vadd.f32 %v1237, %v1238
    %v1240 = vrot.slane %v1239, 2
    %v1241 = vadd.f32 %v1239, %v1240
    %v1242 = vrot.slane %v1241, 1
    %v1243 = vadd.f32 %v1241, %v1242
    %v1244 = vadd.f32 %v1184, %v1186
    %v1245 = vadd.f32 %v1244, %v1188
    %v1246 = vadd.f32 %v1245, %v1190
    %v1247 = vrot.slane %v1246, 4
    %v1248 = vadd.f32 %v1246, %v1247
    %v1249 = vrot.slane %v1248, 2
    %v1250 = vadd.f32 %v1248, %v1249
    %v1251 = vrot.slane %v1250, 1
    %v1252 = vadd.f32 %v1250, %v1251
    %v1253 = vadd.f32 %v1191, %v1193
    %v1254 = vadd.f32 %v1253, %v1195
    %v1255 = vadd.f32 %v1254, %v1197
    %v1256 = vrot.slane %v1255, 4
    %v1257 = vadd.f32 %v1255, %v1256
    %v1258 = vrot.slane %v1257, 2
    %v1259 = vadd.f32 %v1257, %v1258
    %v1260 = vrot.slane %v1259, 1
    %v1261 = vadd.f32 %v1259, %v1260
    %v1262 = vadd.f32 %v1192, %v1194
    %v1263 = vadd.f32 %v1262, %v1196
    %v1264 = vadd.f32 %v1263, %v1198
    %v1265 = vrot.slane %v1264, 4
    %v1266 = vadd.f32 %v1264, %v1265
    %v1267 = vrot.slane %v1266, 2
    %v1268 = vadd.f32 %v1266, %v1267
    %v1269 = vrot.slane %v1268, 1
    %v1270 = vadd.f32 %v1268, %v1269
    %v1271 = vrcp.pop 32.0
    %v1272 = vmul.f32 %v1243, %v1271
    %v1273 = vmul.f32 %v1252, %v1271
    %v1274 = vmul.f32 %v1261, %v1271
    %v1275 = vmul.f32 %v1270, %v1271
    %v1276 = vld [vmem:[#allocation6] sm:$0xff]
    %v1277 = vld [vmem:[#allocation6 + $0x8] sm:$0xff]
    %v1278 = vld [vmem:[#allocation6 + $0x10] sm:$0xff]
    %v1279 = vld [vmem:[#allocation6 + $0x18] sm:$0xff]
    %v1280 = vld [vmem:[#allocation6 + $0x20] sm:$0xff]
    %v1281 = vld [vmem:[#allocation6 + $0x28] sm:$0xff]
    %v1282 = vld [vmem:[#allocation6 + $0x30] sm:$0xff]
    %v1283 = vld [vmem:[#allocation6 + $0x38] sm:$0xff]
    %v1284 = vld [vmem:[#allocation6 + $0x40] sm:$0xff]
    %v1285 = vld [vmem:[#allocation6 + $0x48] sm:$0xff]
    %v1286 = vld [vmem:[#allocation6 + $0x50] sm:$0xff]
    %v1287 = vld [vmem:[#allocation6 + $0x58] sm:$0xff]
    %v1288 = vld [vmem:[#allocation6 + $0x60] sm:$0xff]
    %v1289 = vld [vmem:[#allocation6 + $0x68] sm:$0xff]
    %v1290 = vld [vmem:[#allocation6 + $0x70] sm:$0xff]
    %v1291 = vld [vmem:[#allocation6 + $0x78] sm:$0xff]
    %v1292 = vld [vmem:[#allocation6 + $0x80] sm:$0xff]
    %v1293 = vld [vmem:[#allocation6 + $0x88] sm:$0xff]
    %v1294 = vld [vmem:[#allocation6 + $0x90] sm:$0xff]
    %v1295 = vld [vmem:[#allocation6 + $0x98] sm:$0xff]
    %v1296 = vld [vmem:[#allocation6 + $0xa0] sm:$0xff]
    %v1297 = vld [vmem:[#allocation6 + $0xa8] sm:$0xff]
    %v1298 = vld [vmem:[#allocation6 + $0xb0] sm:$0xff]
    %v1299 = vld [vmem:[#allocation6 + $0xb8] sm:$0xff]
    %v1300 = vld [vmem:[#allocation6 + $0xc0] sm:$0xff]
    %v1301 = vld [vmem:[#allocation6 + $0xc8] sm:$0xff]
    %v1302 = vld [vmem:[#allocation6 + $0xd0] sm:$0xff]
    %v1303 = vld [vmem:[#allocation6 + $0xd8] sm:$0xff]
    %v1304 = vld [vmem:[#allocation6 + $0xe0] sm:$0xff]
    %v1305 = vld [vmem:[#allocation6 + $0xe8] sm:$0xff]
    %v1306 = vld [vmem:[#allocation6 + $0xf0] sm:$0xff]
    %v1307 = vld [vmem:[#allocation6 + $0xf8] sm:$0xff]
    %v1308 = vld [vmem:[#allocation6 + $0x100] sm:$0xff]
    %v1309 = vld [vmem:[#allocation6 + $0x108] sm:$0xff]
    %v1310 = vld [vmem:[#allocation6 + $0x110] sm:$0xff]
    %v1311 = vld [vmem:[#allocation6 + $0x118] sm:$0xff]
    %v1312 = vld [vmem:[#allocation6 + $0x120] sm:$0xff]
    %v1313 = vld [vmem:[#allocation6 + $0x128] sm:$0xff]
    %v1314 = vld [vmem:[#allocation6 + $0x130] sm:$0xff]
    %v1315 = vld [vmem:[#allocation6 + $0x138] sm:$0xff]
    %v1316 = vld [vmem:[#allocation6 + $0x140] sm:$0xff]
    %v1317 = vld [vmem:[#allocation6 + $0x148] sm:$0xff]
    %v1318 = vld [vmem:[#allocation6 + $0x150] sm:$0xff]
    %v1319 = vld [vmem:[#allocation6 + $0x158] sm:$0xff]
    %v1320 = vld [vmem:[#allocation6 + $0x160] sm:$0xff]
    %v1321 = vld [vmem:[#allocation6 + $0x168] sm:$0xff]
    %v1322 = vld [vmem:[#allocation6 + $0x170] sm:$0xff]
    %v1323 = vld [vmem:[#allocation6 + $0x178] sm:$0xff]
    %v1324 = vld [vmem:[#allocation6 + $0x180] sm:$0xff]
    %v1325 = vld [vmem:[#allocation6 + $0x188] sm:$0xff]
    %v1326 = vld [vmem:[#allocation6 + $0x190] sm:$0xff]
    %v1327 = vld [vmem:[#allocation6 + $0x198] sm:$0xff]
    %v1328 = vld [vmem:[#allocation6 + $0x1a0] sm:$0xff]
    %v1329 = vld [vmem:[#allocation6 + $0x1a8] sm:$0xff]
    %v1330 = vld [vmem:[#allocation6 + $0x1b0] sm:$0xff]
    %v1331 = vld [vmem:[#allocation6 + $0x1b8] sm:$0xff]
    %v1332 = vld [vmem:[#allocation6 + $0x1c0] sm:$0xff]
    %v1333 = vld [vmem:[#allocation6 + $0x1c8] sm:$0xff]
    %v1334 = vld [vmem:[#allocation6 + $0x1d0] sm:$0xff]
    %v1335 = vld [vmem:[#allocation6 + $0x1d8] sm:$0xff]
    %v1336 = vld [vmem:[#allocation6 + $0x1e0] sm:$0xff]
    %v1337 = vld [vmem:[#allocation6 + $0x1e8] sm:$0xff]
    %v1338 = vld [vmem:[#allocation6 + $0x1f0] sm:$0xff]
    %v1339 = vld [vmem:[#allocation6 + $0x1f8] sm:$0xff]
    %v1340 = vld [vmem:[#allocation8] sm:$0xff]
    %v1341 = vld [vmem:[#allocation8 + $0x8] sm:$0xff]
    %v1342 = vld [vmem:[#allocation8 + $0x10] sm:$0xff]
    %v1343 = vld [vmem:[#allocation8 + $0x18] sm:$0xff]
    %v1344 = vld [vmem:[#allocation8 + $0x20] sm:$0xff]
    %v1345 = vld [vmem:[#allocation8 + $0x28] sm:$0xff]
    %v1346 = vld [vmem:[#allocation8 + $0x30] sm:$0xff]
    %v1347 = vld [vmem:[#allocation8 + $0x38] sm:$0xff]
    %v1348 = vld [vmem:[#allocation8 + $0x40] sm:$0xff]
    %v1349 = vld [vmem:[#allocation8 + $0x48] sm:$0xff]
    %v1350 = vld [vmem:[#allocation8 + $0x50] sm:$0xff]
    %v1351 = vld [vmem:[#allocation8 + $0x58] sm:$0xff]
    %v1352 = vld [vmem:[#allocation8 + $0x60] sm:$0xff]
    %v1353 = vld [vmem:[#allocation8 + $0x68] sm:$0xff]
    %v1354 = vld [vmem:[#allocation8 + $0x70] sm:$0xff]
    %v1355 = vld [vmem:[#allocation8 + $0x78] sm:$0xff]
    %v1356 = vld [vmem:[#allocation8 + $0x80] sm:$0xff]
    %v1357 = vld [vmem:[#allocation8 + $0x88] sm:$0xff]
    %v1358 = vld [vmem:[#allocation8 + $0x90] sm:$0xff]
    %v1359 = vld [vmem:[#allocation8 + $0x98] sm:$0xff]
    %v1360 = vld [vmem:[#allocation8 + $0xa0] sm:$0xff]
    %v1361 = vld [vmem:[#allocation8 + $0xa8] sm:$0xff]
    %v1362 = vld [vmem:[#allocation8 + $0xb0] sm:$0xff]
    %v1363 = vld [vmem:[#allocation8 + $0xb8] sm:$0xff]
    %v1364 = vld [vmem:[#allocation8 + $0xc0] sm:$0xff]
    %v1365 = vld [vmem:[#allocation8 + $0xc8] sm:$0xff]
    %v1366 = vld [vmem:[#allocation8 + $0xd0] sm:$0xff]
    %v1367 = vld [vmem:[#allocation8 + $0xd8] sm:$0xff]
    %v1368 = vld [vmem:[#allocation8 + $0xe0] sm:$0xff]
    %v1369 = vld [vmem:[#allocation8 + $0xe8] sm:$0xff]
    %v1370 = vld [vmem:[#allocation8 + $0xf0] sm:$0xff]
    %v1371 = vld [vmem:[#allocation8 + $0xf8] sm:$0xff]
    %v1372 = vld [vmem:[#allocation8 + $0x100] sm:$0xff]
    %v1373 = vld [vmem:[#allocation8 + $0x108] sm:$0xff]
    %v1374 = vld [vmem:[#allocation8 + $0x110] sm:$0xff]
    %v1375 = vld [vmem:[#allocation8 + $0x118] sm:$0xff]
    %v1376 = vld [vmem:[#allocation8 + $0x120] sm:$0xff]
    %v1377 = vld [vmem:[#allocation8 + $0x128] sm:$0xff]
    %v1378 = vld [vmem:[#allocation8 + $0x130] sm:$0xff]
    %v1379 = vld [vmem:[#allocation8 + $0x138] sm:$0xff]
    %v1380 = vld [vmem:[#allocation8 + $0x140] sm:$0xff]
    %v1381 = vld [vmem:[#allocation8 + $0x148] sm:$0xff]
    %v1382 = vld [vmem:[#allocation8 + $0x150] sm:$0xff]
    %v1383 = vld [vmem:[#allocation8 + $0x158] sm:$0xff]
    %v1384 = vld [vmem:[#allocation8 + $0x160] sm:$0xff]
    %v1385 = vld [vmem:[#allocation8 + $0x168] sm:$0xff]
    %v1386 = vld [vmem:[#allocation8 + $0x170] sm:$0xff]
    %v1387 = vld [vmem:[#allocation8 + $0x178] sm:$0xff]
    %v1388 = vld [vmem:[#allocation8 + $0x180] sm:$0xff]
    %v1389 = vld [vmem:[#allocation8 + $0x188] sm:$0xff]
    %v1390 = vld [vmem:[#allocation8 + $0x190] sm:$0xff]
    %v1391 = vld [vmem:[#allocation8 + $0x198] sm:$0xff]
    %v1392 = vld [vmem:[#allocation8 + $0x1a0] sm:$0xff]
    %v1393 = vld [vmem:[#allocation8 + $0x1a8] sm:$0xff]
    %v1394 = vld [vmem:[#allocation8 + $0x1b0] sm:$0xff]
    %v1395 = vld [vmem:[#allocation8 + $0x1b8] sm:$0xff]
    %v1396 = vld [vmem:[#allocation8 + $0x1c0] sm:$0xff]
    %v1397 = vld [vmem:[#allocation8 + $0x1c8] sm:$0xff]
    %v1398 = vld [vmem:[#allocation8 + $0x1d0] sm:$0xff]
    %v1399 = vld [vmem:[#allocation8 + $0x1d8] sm:$0xff]
    %v1400 = vld [vmem:[#allocation8 + $0x1e0] sm:$0xff]
    %v1401 = vld [vmem:[#allocation8 + $0x1e8] sm:$0xff]
    %v1402 = vld [vmem:[#allocation8 + $0x1f0] sm:$0xff]
    %v1403 = vld [vmem:[#allocation8 + $0x1f8] sm:$0xff]
    %v1408 = vsel %vm186, %v1274, %v1272
    %v1409 = vsel %vm186, %v1275, %v1273
    %v1412 = vand.u32 %v1371, 4294901760
    %1413 = vmatprep.subr.mxu0 %v1412
    %v1414 = vand.u32 %v1370, 4294901760
    %1415 = vmatpush1.msra.mxu0 %v1414
    %v1416 = vand.u32 %v1369, 4294901760
    %1417 = vmatprep.subr.mxu0 %v1416
    %v1418 = vand.u32 %v1368, 4294901760
    %1419 = vmatpush1.msra.mxu0 %v1418
    %v1420 = vand.u32 %v1367, 4294901760
    %1421 = vmatprep.subr.mxu0 %v1420
    %v1422 = vand.u32 %v1366, 4294901760
    %1423 = vmatpush1.msra.mxu0 %v1422
    %v1424 = vand.u32 %v1365, 4294901760
    %1425 = vmatprep.subr.mxu0 %v1424
    %v1426 = vand.u32 %v1364, 4294901760
    %1427 = vmatpush1.msra.mxu0 %v1426
    %v1428 = vand.u32 %v1363, 4294901760
    %1429 = vmatprep.subr.mxu0 %v1428
    %v1430 = vand.u32 %v1362, 4294901760
    %1431 = vmatpush1.msra.mxu0 %v1430
    %v1432 = vand.u32 %v1361, 4294901760
    %1433 = vmatprep.subr.mxu0 %v1432
    %v1434 = vand.u32 %v1360, 4294901760
    %1435 = vmatpush1.msra.mxu0 %v1434
    %v1436 = vand.u32 %v1359, 4294901760
    %1437 = vmatprep.subr.mxu0 %v1436
    %v1438 = vand.u32 %v1358, 4294901760
    %1439 = vmatpush1.msra.mxu0 %v1438
    %v1440 = vand.u32 %v1357, 4294901760
    %1441 = vmatprep.subr.mxu0 %v1440
    %v1442 = vand.u32 %v1356, 4294901760
    %1443 = vmatpush1.msra.mxu0 %v1442
    %v1444 = vand.u32 %v1355, 4294901760
    %1445 = vmatprep.subr.mxu0 %v1444
    %v1446 = vand.u32 %v1354, 4294901760
    %1447 = vmatpush1.msra.mxu0 %v1446
    %v1448 = vand.u32 %v1353, 4294901760
    %1449 = vmatprep.subr.mxu0 %v1448
    %v1450 = vand.u32 %v1352, 4294901760
    %1451 = vmatpush1.msra.mxu0 %v1450
    %v1452 = vand.u32 %v1351, 4294901760
    %1453 = vmatprep.subr.mxu0 %v1452
    %v1454 = vand.u32 %v1350, 4294901760
    %1455 = vmatpush1.msra.mxu0 %v1454
    %v1456 = vand.u32 %v1349, 4294901760
    %1457 = vmatprep.subr.mxu0 %v1456
    %v1458 = vand.u32 %v1348, 4294901760
    %1459 = vmatpush1.msra.mxu0 %v1458
    %v1460 = vand.u32 %v1347, 4294901760
    %1461 = vmatprep.subr.mxu0 %v1460
    %v1462 = vand.u32 %v1346, 4294901760
    %1463 = vmatpush1.msra.mxu0 %v1462
    %v1464 = vand.u32 %v1345, 4294901760
    %1465 = vmatprep.subr.mxu0 %v1464
    %v1466 = vand.u32 %v1344, 4294901760
    %1467 = vmatpush1.msra.mxu0 %v1466
    %v1468 = vand.u32 %v1343, 4294901760
    %1469 = vmatprep.subr.mxu0 %v1468
    %v1470 = vand.u32 %v1342, 4294901760
    %1471 = vmatpush1.msra.mxu0 %v1470
    %v1472 = vand.u32 %v1341, 4294901760
    %1473 = vmatprep.subr.mxu0 %v1472
    %v1474 = vand.u32 %v1340, 4294901760
    %1475 = vmatpush1.msra.mxu0 %v1474
    %v1476 = vand.u32 %v1403, 4294901760
    %1477 = vmatprep.subr.mxu0 %v1476
    %v1478 = vand.u32 %v1402, 4294901760
    %1479 = vmatpush2.msra.mxu0 %v1478
    %v1480 = vand.u32 %v1401, 4294901760
    %1481 = vmatprep.subr.mxu0 %v1480
    %v1482 = vand.u32 %v1400, 4294901760
    %1483 = vmatpush2.msra.mxu0 %v1482
    %v1484 = vand.u32 %v1399, 4294901760
    %1485 = vmatprep.subr.mxu0 %v1484
    %v1486 = vand.u32 %v1398, 4294901760
    %1487 = vmatpush2.msra.mxu0 %v1486
    %v1488 = vand.u32 %v1397, 4294901760
    %1489 = vmatprep.subr.mxu0 %v1488
    %v1490 = vand.u32 %v1396, 4294901760
    %1491 = vmatpush2.msra.mxu0 %v1490
    %v1492 = vand.u32 %v1395, 4294901760
    %1493 = vmatprep.subr.mxu0 %v1492
    %v1494 = vand.u32 %v1394, 4294901760
    %1495 = vmatpush2.msra.mxu0 %v1494
    %v1496 = vand.u32 %v1393, 4294901760
    %1497 = vmatprep.subr.mxu0 %v1496
    %v1498 = vand.u32 %v1392, 4294901760
    %1499 = vmatpush2.msra.mxu0 %v1498
    %v1500 = vand.u32 %v1391, 4294901760
    %1501 = vmatprep.subr.mxu0 %v1500
    %v1502 = vand.u32 %v1390, 4294901760
    %1503 = vmatpush2.msra.mxu0 %v1502
    %v1504 = vand.u32 %v1389, 4294901760
    %1505 = vmatprep.subr.mxu0 %v1504
    %v1506 = vand.u32 %v1388, 4294901760
    %1507 = vmatpush2.msra.mxu0 %v1506
    %v1508 = vand.u32 %v1387, 4294901760
    %1509 = vmatprep.subr.mxu0 %v1508
    %v1510 = vand.u32 %v1386, 4294901760
    %1511 = vmatpush2.msra.mxu0 %v1510
    %v1512 = vand.u32 %v1385, 4294901760
    %1513 = vmatprep.subr.mxu0 %v1512
    %v1514 = vand.u32 %v1384, 4294901760
    %1515 = vmatpush2.msra.mxu0 %v1514
    %v1516 = vand.u32 %v1383, 4294901760
    %1517 = vmatprep.subr.mxu0 %v1516
    %v1518 = vand.u32 %v1382, 4294901760
    %1519 = vmatpush2.msra.mxu0 %v1518
    %v1520 = vand.u32 %v1381, 4294901760
    %1521 = vmatprep.subr.mxu0 %v1520
    %v1522 = vand.u32 %v1380, 4294901760
    %1523 = vmatpush2.msra.mxu0 %v1522
    %v1524 = vand.u32 %v1379, 4294901760
    %1525 = vmatprep.subr.mxu0 %v1524
    %v1526 = vand.u32 %v1378, 4294901760
    %1527 = vmatpush2.msra.mxu0 %v1526
    %v1528 = vand.u32 %v1377, 4294901760
    %1529 = vmatprep.subr.mxu0 %v1528
    %v1530 = vand.u32 %v1376, 4294901760
    %1531 = vmatpush2.msra.mxu0 %v1530
    %v1532 = vand.u32 %v1375, 4294901760
    %1533 = vmatprep.subr.mxu0 %v1532
    %v1534 = vand.u32 %v1374, 4294901760
    %1535 = vmatpush2.msra.mxu0 %v1534
    %v1536 = vand.u32 %v1373, 4294901760
    %1537 = vmatprep.subr.mxu0 %v1536
    %v1538 = vand.u32 %v1372, 4294901760
    %1539 = vmatpush2.msra.mxu0 %v1538
    %v1540 = vand.u32 %v1409, 4294901760
    %v1541 = vsub.f32 %v1409, %v1540
    %v1542 = vand.u32 %v1541, 4294901760
    %v1543 = vsub.f32 %v1541, %v1542
    %v1544 = vand.u32 %v1543, 4294901760
    %1545 = vmatprep.mubr.f32.mxu0 %v1544
    %v1546 = vand.u32 %v1408, 4294901760
    %v1547 = vsub.f32 %v1408, %v1546
    %v1548 = vand.u32 %v1547, 4294901760
    %v1549 = vsub.f32 %v1547, %v1548
    %v1550 = vand.u32 %v1549, 4294901760
    %1551 = vmatmul.mubr.f32.gmra.mxu0 %v1550
    %v1552 = vpop.f32.mrf.mxu0
    %v1553 = vadd.f32 0.0, %v1552
    %v1554 = vpop.f32.mrf.mxu0
    %v1555 = vadd.f32 0.0, %v1554
    %1556 = vdwg.mxu0
    %v1557 = vand.u32 %v1371, 4294901760
    %v1558 = vsub.f32 %v1371, %v1557
    %v1559 = vand.u32 %v1558, 4294901760
    %v1560 = vsub.f32 %v1558, %v1559
    %v1561 = vand.u32 %v1560, 4294901760
    %1562 = vmatprep.subr.mxu0 %v1561
    %v1563 = vand.u32 %v1370, 4294901760
    %v1564 = vsub.f32 %v1370, %v1563
    %v1565 = vand.u32 %v1564, 4294901760
    %v1566 = vsub.f32 %v1564, %v1565
    %v1567 = vand.u32 %v1566, 4294901760
    %1568 = vmatpush1.msra.mxu0 %v1567
    %v1569 = vand.u32 %v1369, 4294901760
    %v1570 = vsub.f32 %v1369, %v1569
    %v1571 = vand.u32 %v1570, 4294901760
    %v1572 = vsub.f32 %v1570, %v1571
    %v1573 = vand.u32 %v1572, 4294901760
    %1574 = vmatprep.subr.mxu0 %v1573
    %v1575 = vand.u32 %v1368, 4294901760
    %v1576 = vsub.f32 %v1368, %v1575
    %v1577 = vand.u32 %v1576, 4294901760
    %v1578 = vsub.f32 %v1576, %v1577
    %v1579 = vand.u32 %v1578, 4294901760
    %1580 = vmatpush1.msra.mxu0 %v1579
    %v1581 = vand.u32 %v1367, 4294901760
    %v1582 = vsub.f32 %v1367, %v1581
    %v1583 = vand.u32 %v1582, 4294901760
    %v1584 = vsub.f32 %v1582, %v1583
    %v1585 = vand.u32 %v1584, 4294901760
    %1586 = vmatprep.subr.mxu0 %v1585
    %v1587 = vand.u32 %v1366, 4294901760
    %v1588 = vsub.f32 %v1366, %v1587
    %v1589 = vand.u32 %v1588, 4294901760
    %v1590 = vsub.f32 %v1588, %v1589
    %v1591 = vand.u32 %v1590, 4294901760
    %1592 = vmatpush1.msra.mxu0 %v1591
    %v1593 = vand.u32 %v1365, 4294901760
    %v1594 = vsub.f32 %v1365, %v1593
    %v1595 = vand.u32 %v1594, 4294901760
    %v1596 = vsub.f32 %v1594, %v1595
    %v1597 = vand.u32 %v1596, 4294901760
    %1598 = vmatprep.subr.mxu0 %v1597
    %v1599 = vand.u32 %v1364, 4294901760
    %v1600 = vsub.f32 %v1364, %v1599
    %v1601 = vand.u32 %v1600, 4294901760
    %v1602 = vsub.f32 %v1600, %v1601
    %v1603 = vand.u32 %v1602, 4294901760
    %1604 = vmatpush1.msra.mxu0 %v1603
    %v1605 = vand.u32 %v1363, 4294901760
    %v1606 = vsub.f32 %v1363, %v1605
    %v1607 = vand.u32 %v1606, 4294901760
    %v1608 = vsub.f32 %v1606, %v1607
    %v1609 = vand.u32 %v1608, 4294901760
    %1610 = vmatprep.subr.mxu0 %v1609
    %v1611 = vand.u32 %v1362, 4294901760
    %v1612 = vsub.f32 %v1362, %v1611
    %v1613 = vand.u32 %v1612, 4294901760
    %v1614 = vsub.f32 %v1612, %v1613
    %v1615 = vand.u32 %v1614, 4294901760
    %1616 = vmatpush1.msra.mxu0 %v1615
    %v1617 = vand.u32 %v1361, 4294901760
    %v1618 = vsub.f32 %v1361, %v1617
    %v1619 = vand.u32 %v1618, 4294901760
    %v1620 = vsub.f32 %v1618, %v1619
    %v1621 = vand.u32 %v1620, 4294901760
    %1622 = vmatprep.subr.mxu0 %v1621
    %v1623 = vand.u32 %v1360, 4294901760
    %v1624 = vsub.f32 %v1360, %v1623
    %v1625 = vand.u32 %v1624, 4294901760
    %v1626 = vsub.f32 %v1624, %v1625
    %v1627 = vand.u32 %v1626, 4294901760
    %1628 = vmatpush1.msra.mxu0 %v1627
    %v1629 = vand.u32 %v1359, 4294901760
    %v1630 = vsub.f32 %v1359, %v1629
    %v1631 = vand.u32 %v1630, 4294901760
    %v1632 = vsub.f32 %v1630, %v1631
    %v1633 = vand.u32 %v1632, 4294901760
    %1634 = vmatprep.subr.mxu0 %v1633
    %v1635 = vand.u32 %v1358, 4294901760
    %v1636 = vsub.f32 %v1358, %v1635
    %v1637 = vand.u32 %v1636, 4294901760
    %v1638 = vsub.f32 %v1636, %v1637
    %v1639 = vand.u32 %v1638, 4294901760
    %1640 = vmatpush1.msra.mxu0 %v1639
    %v1641 = vand.u32 %v1357, 4294901760
    %v1642 = vsub.f32 %v1357, %v1641
    %v1643 = vand.u32 %v1642, 4294901760
    %v1644 = vsub.f32 %v1642, %v1643
    %v1645 = vand.u32 %v1644, 4294901760
    %1646 = vmatprep.subr.mxu0 %v1645
    %v1647 = vand.u32 %v1356, 4294901760
    %v1648 = vsub.f32 %v1356, %v1647
    %v1649 = vand.u32 %v1648, 4294901760
    %v1650 = vsub.f32 %v1648, %v1649
    %v1651 = vand.u32 %v1650, 4294901760
    %1652 = vmatpush1.msra.mxu0 %v1651
    %v1653 = vand.u32 %v1355, 4294901760
    %v1654 = vsub.f32 %v1355, %v1653
    %v1655 = vand.u32 %v1654, 4294901760
    %v1656 = vsub.f32 %v1654, %v1655
    %v1657 = vand.u32 %v1656, 4294901760
    %1658 = vmatprep.subr.mxu0 %v1657
    %v1659 = vand.u32 %v1354, 4294901760
    %v1660 = vsub.f32 %v1354, %v1659
    %v1661 = vand.u32 %v1660, 4294901760
    %v1662 = vsub.f32 %v1660, %v1661
    %v1663 = vand.u32 %v1662, 4294901760
    %1664 = vmatpush1.msra.mxu0 %v1663
    %v1665 = vand.u32 %v1353, 4294901760
    %v1666 = vsub.f32 %v1353, %v1665
    %v1667 = vand.u32 %v1666, 4294901760
    %v1668 = vsub.f32 %v1666, %v1667
    %v1669 = vand.u32 %v1668, 4294901760
    %1670 = vmatprep.subr.mxu0 %v1669
    %v1671 = vand.u32 %v1352, 4294901760
    %v1672 = vsub.f32 %v1352, %v1671
    %v1673 = vand.u32 %v1672, 4294901760
    %v1674 = vsub.f32 %v1672, %v1673
    %v1675 = vand.u32 %v1674, 4294901760
    %1676 = vmatpush1.msra.mxu0 %v1675
    %v1677 = vand.u32 %v1351, 4294901760
    %v1678 = vsub.f32 %v1351, %v1677
    %v1679 = vand.u32 %v1678, 4294901760
    %v1680 = vsub.f32 %v1678, %v1679
    %v1681 = vand.u32 %v1680, 4294901760
    %1682 = vmatprep.subr.mxu0 %v1681
    %v1683 = vand.u32 %v1350, 4294901760
    %v1684 = vsub.f32 %v1350, %v1683
    %v1685 = vand.u32 %v1684, 4294901760
    %v1686 = vsub.f32 %v1684, %v1685
    %v1687 = vand.u32 %v1686, 4294901760
    %1688 = vmatpush1.msra.mxu0 %v1687
    %v1689 = vand.u32 %v1349, 4294901760
    %v1690 = vsub.f32 %v1349, %v1689
    %v1691 = vand.u32 %v1690, 4294901760
    %v1692 = vsub.f32 %v1690, %v1691
    %v1693 = vand.u32 %v1692, 4294901760
    %1694 = vmatprep.subr.mxu0 %v1693
    %v1695 = vand.u32 %v1348, 4294901760
    %v1696 = vsub.f32 %v1348, %v1695
    %v1697 = vand.u32 %v1696, 4294901760
    %v1698 = vsub.f32 %v1696, %v1697
    %v1699 = vand.u32 %v1698, 4294901760
    %1700 = vmatpush1.msra.mxu0 %v1699
    %v1701 = vand.u32 %v1347, 4294901760
    %v1702 = vsub.f32 %v1347, %v1701
    %v1703 = vand.u32 %v1702, 4294901760
    %v1704 = vsub.f32 %v1702, %v1703
    %v1705 = vand.u32 %v1704, 4294901760
    %1706 = vmatprep.subr.mxu0 %v1705
    %v1707 = vand.u32 %v1346, 4294901760
    %v1708 = vsub.f32 %v1346, %v1707
    %v1709 = vand.u32 %v1708, 4294901760
    %v1710 = vsub.f32 %v1708, %v1709
    %v1711 = vand.u32 %v1710, 4294901760
    %1712 = vmatpush1.msra.mxu0 %v1711
    %v1713 = vand.u32 %v1345, 4294901760
    %v1714 = vsub.f32 %v1345, %v1713
    %v1715 = vand.u32 %v1714, 4294901760
    %v1716 = vsub.f32 %v1714, %v1715
    %v1717 = vand.u32 %v1716, 4294901760
    %1718 = vmatprep.subr.mxu0 %v1717
    %v1719 = vand.u32 %v1344, 4294901760
    %v1720 = vsub.f32 %v1344, %v1719
    %v1721 = vand.u32 %v1720, 4294901760
    %v1722 = vsub.f32 %v1720, %v1721
    %v1723 = vand.u32 %v1722, 4294901760
    %1724 = vmatpush1.msra.mxu0 %v1723
    %v1725 = vand.u32 %v1343, 4294901760
    %v1726 = vsub.f32 %v1343, %v1725
    %v1727 = vand.u32 %v1726, 4294901760
    %v1728 = vsub.f32 %v1726, %v1727
    %v1729 = vand.u32 %v1728, 4294901760
    %1730 = vmatprep.subr.mxu0 %v1729
    %v1731 = vand.u32 %v1342, 4294901760
    %v1732 = vsub.f32 %v1342, %v1731
    %v1733 = vand.u32 %v1732, 4294901760
    %v1734 = vsub.f32 %v1732, %v1733
    %v1735 = vand.u32 %v1734, 4294901760
    %1736 = vmatpush1.msra.mxu0 %v1735
    %v1737 = vand.u32 %v1341, 4294901760
    %v1738 = vsub.f32 %v1341, %v1737
    %v1739 = vand.u32 %v1738, 4294901760
    %v1740 = vsub.f32 %v1738, %v1739
    %v1741 = vand.u32 %v1740, 4294901760
    %1742 = vmatprep.subr.mxu0 %v1741
    %v1743 = vand.u32 %v1340, 4294901760
    %v1744 = vsub.f32 %v1340, %v1743
    %v1745 = vand.u32 %v1744, 4294901760
    %v1746 = vsub.f32 %v1744, %v1745
    %v1747 = vand.u32 %v1746, 4294901760
    %1748 = vmatpush1.msra.mxu0 %v1747
    %v1749 = vand.u32 %v1403, 4294901760
    %v1750 = vsub.f32 %v1403, %v1749
    %v1751 = vand.u32 %v1750, 4294901760
    %v1752 = vsub.f32 %v1750, %v1751
    %v1753 = vand.u32 %v1752, 4294901760
    %1754 = vmatprep.subr.mxu0 %v1753
    %v1755 = vand.u32 %v1402, 4294901760
    %v1756 = vsub.f32 %v1402, %v1755
    %v1757 = vand.u32 %v1756, 4294901760
    %v1758 = vsub.f32 %v1756, %v1757
    %v1759 = vand.u32 %v1758, 4294901760
    %1760 = vmatpush2.msra.mxu0 %v1759
    %v1761 = vand.u32 %v1401, 4294901760
    %v1762 = vsub.f32 %v1401, %v1761
    %v1763 = vand.u32 %v1762, 4294901760
    %v1764 = vsub.f32 %v1762, %v1763
    %v1765 = vand.u32 %v1764, 4294901760
    %1766 = vmatprep.subr.mxu0 %v1765
    %v1767 = vand.u32 %v1400, 4294901760
    %v1768 = vsub.f32 %v1400, %v1767
    %v1769 = vand.u32 %v1768, 4294901760
    %v1770 = vsub.f32 %v1768, %v1769
    %v1771 = vand.u32 %v1770, 4294901760
    %1772 = vmatpush2.msra.mxu0 %v1771
    %v1773 = vand.u32 %v1399, 4294901760
    %v1774 = vsub.f32 %v1399, %v1773
    %v1775 = vand.u32 %v1774, 4294901760
    %v1776 = vsub.f32 %v1774, %v1775
    %v1777 = vand.u32 %v1776, 4294901760
    %1778 = vmatprep.subr.mxu0 %v1777
    %v1779 = vand.u32 %v1398, 4294901760
    %v1780 = vsub.f32 %v1398, %v1779
    %v1781 = vand.u32 %v1780, 4294901760
    %v1782 = vsub.f32 %v1780, %v1781
    %v1783 = vand.u32 %v1782, 4294901760
    %1784 = vmatpush2.msra.mxu0 %v1783
    %v1785 = vand.u32 %v1397, 4294901760
    %v1786 = vsub.f32 %v1397, %v1785
    %v1787 = vand.u32 %v1786, 4294901760
    %v1788 = vsub.f32 %v1786, %v1787
    %v1789 = vand.u32 %v1788, 4294901760
    %1790 = vmatprep.subr.mxu0 %v1789
    %v1791 = vand.u32 %v1396, 4294901760
    %v1792 = vsub.f32 %v1396, %v1791
    %v1793 = vand.u32 %v1792, 4294901760
    %v1794 = vsub.f32 %v1792, %v1793
    %v1795 = vand.u32 %v1794, 4294901760
    %1796 = vmatpush2.msra.mxu0 %v1795
    %v1797 = vand.u32 %v1395, 4294901760
    %v1798 = vsub.f32 %v1395, %v1797
    %v1799 = vand.u32 %v1798, 4294901760
    %v1800 = vsub.f32 %v1798, %v1799
    %v1801 = vand.u32 %v1800, 4294901760
    %1802 = vmatprep.subr.mxu0 %v1801
    %v1803 = vand.u32 %v1394, 4294901760
    %v1804 = vsub.f32 %v1394, %v1803
    %v1805 = vand.u32 %v1804, 4294901760
    %v1806 = vsub.f32 %v1804, %v1805
    %v1807 = vand.u32 %v1806, 4294901760
    %1808 = vmatpush2.msra.mxu0 %v1807
    %v1809 = vand.u32 %v1393, 4294901760
    %v1810 = vsub.f32 %v1393, %v1809
    %v1811 = vand.u32 %v1810, 4294901760
    %v1812 = vsub.f32 %v1810, %v1811
    %v1813 = vand.u32 %v1812, 4294901760
    %1814 = vmatprep.subr.mxu0 %v1813
    %v1815 = vand.u32 %v1392, 4294901760
    %v1816 = vsub.f32 %v1392, %v1815
    %v1817 = vand.u32 %v1816, 4294901760
    %v1818 = vsub.f32 %v1816, %v1817
    %v1819 = vand.u32 %v1818, 4294901760
    %1820 = vmatpush2.msra.mxu0 %v1819
    %v1821 = vand.u32 %v1391, 4294901760
    %v1822 = vsub.f32 %v1391, %v1821
    %v1823 = vand.u32 %v1822, 4294901760
    %v1824 = vsub.f32 %v1822, %v1823
    %v1825 = vand.u32 %v1824, 4294901760
    %1826 = vmatprep.subr.mxu0 %v1825
    %v1827 = vand.u32 %v1390, 4294901760
    %v1828 = vsub.f32 %v1390, %v1827
    %v1829 = vand.u32 %v1828, 4294901760
    %v1830 = vsub.f32 %v1828, %v1829
    %v1831 = vand.u32 %v1830, 4294901760
    %1832 = vmatpush2.msra.mxu0 %v1831
    %v1833 = vand.u32 %v1389, 4294901760
    %v1834 = vsub.f32 %v1389, %v1833
    %v1835 = vand.u32 %v1834, 4294901760
    %v1836 = vsub.f32 %v1834, %v1835
    %v1837 = vand.u32 %v1836, 4294901760
    %1838 = vmatprep.subr.mxu0 %v1837
    %v1839 = vand.u32 %v1388, 4294901760
    %v1840 = vsub.f32 %v1388, %v1839
    %v1841 = vand.u32 %v1840, 4294901760
    %v1842 = vsub.f32 %v1840, %v1841
    %v1843 = vand.u32 %v1842, 4294901760
    %1844 = vmatpush2.msra.mxu0 %v1843
    %v1845 = vand.u32 %v1387, 4294901760
    %v1846 = vsub.f32 %v1387, %v1845
    %v1847 = vand.u32 %v1846, 4294901760
    %v1848 = vsub.f32 %v1846, %v1847
    %v1849 = vand.u32 %v1848, 4294901760
    %1850 = vmatprep.subr.mxu0 %v1849
    %v1851 = vand.u32 %v1386, 4294901760
    %v1852 = vsub.f32 %v1386, %v1851
    %v1853 = vand.u32 %v1852, 4294901760
    %v1854 = vsub.f32 %v1852, %v1853
    %v1855 = vand.u32 %v1854, 4294901760
    %1856 = vmatpush2.msra.mxu0 %v1855
    %v1857 = vand.u32 %v1385, 4294901760
    %v1858 = vsub.f32 %v1385, %v1857
    %v1859 = vand.u32 %v1858, 4294901760
    %v1860 = vsub.f32 %v1858, %v1859
    %v1861 = vand.u32 %v1860, 4294901760
    %1862 = vmatprep.subr.mxu0 %v1861
    %v1863 = vand.u32 %v1384, 4294901760
    %v1864 = vsub.f32 %v1384, %v1863
    %v1865 = vand.u32 %v1864, 4294901760
    %v1866 = vsub.f32 %v1864, %v1865
    %v1867 = vand.u32 %v1866, 4294901760
    %1868 = vmatpush2.msra.mxu0 %v1867
    %v1869 = vand.u32 %v1383, 4294901760
    %v1870 = vsub.f32 %v1383, %v1869
    %v1871 = vand.u32 %v1870, 4294901760
    %v1872 = vsub.f32 %v1870, %v1871
    %v1873 = vand.u32 %v1872, 4294901760
    %1874 = vmatprep.subr.mxu0 %v1873
    %v1875 = vand.u32 %v1382, 4294901760
    %v1876 = vsub.f32 %v1382, %v1875
    %v1877 = vand.u32 %v1876, 4294901760
    %v1878 = vsub.f32 %v1876, %v1877
    %v1879 = vand.u32 %v1878, 4294901760
    %1880 = vmatpush2.msra.mxu0 %v1879
    %v1881 = vand.u32 %v1381, 4294901760
    %v1882 = vsub.f32 %v1381, %v1881
    %v1883 = vand.u32 %v1882, 4294901760
    %v1884 = vsub.f32 %v1882, %v1883
    %v1885 = vand.u32 %v1884, 4294901760
    %1886 = vmatprep.subr.mxu0 %v1885
    %v1887 = vand.u32 %v1380, 4294901760
    %v1888 = vsub.f32 %v1380, %v1887
    %v1889 = vand.u32 %v1888, 4294901760
    %v1890 = vsub.f32 %v1888, %v1889
    %v1891 = vand.u32 %v1890, 4294901760
    %1892 = vmatpush2.msra.mxu0 %v1891
    %v1893 = vand.u32 %v1379, 4294901760
    %v1894 = vsub.f32 %v1379, %v1893
    %v1895 = vand.u32 %v1894, 4294901760
    %v1896 = vsub.f32 %v1894, %v1895
    %v1897 = vand.u32 %v1896, 4294901760
    %1898 = vmatprep.subr.mxu0 %v1897
    %v1899 = vand.u32 %v1378, 4294901760
    %v1900 = vsub.f32 %v1378, %v1899
    %v1901 = vand.u32 %v1900, 4294901760
    %v1902 = vsub.f32 %v1900, %v1901
    %v1903 = vand.u32 %v1902, 4294901760
    %1904 = vmatpush2.msra.mxu0 %v1903
    %v1905 = vand.u32 %v1377, 4294901760
    %v1906 = vsub.f32 %v1377, %v1905
    %v1907 = vand.u32 %v1906, 4294901760
    %v1908 = vsub.f32 %v1906, %v1907
    %v1909 = vand.u32 %v1908, 4294901760
    %1910 = vmatprep.subr.mxu0 %v1909
    %v1911 = vand.u32 %v1376, 4294901760
    %v1912 = vsub.f32 %v1376, %v1911
    %v1913 = vand.u32 %v1912, 4294901760
    %v1914 = vsub.f32 %v1912, %v1913
    %v1915 = vand.u32 %v1914, 4294901760
    %1916 = vmatpush2.msra.mxu0 %v1915
    %v1917 = vand.u32 %v1375, 4294901760
    %v1918 = vsub.f32 %v1375, %v1917
    %v1919 = vand.u32 %v1918, 4294901760
    %v1920 = vsub.f32 %v1918, %v1919
    %v1921 = vand.u32 %v1920, 4294901760
    %1922 = vmatprep.subr.mxu0 %v1921
    %v1923 = vand.u32 %v1374, 4294901760
    %v1924 = vsub.f32 %v1374, %v1923
    %v1925 = vand.u32 %v1924, 4294901760
    %v1926 = vsub.f32 %v1924, %v1925
    %v1927 = vand.u32 %v1926, 4294901760
    %1928 = vmatpush2.msra.mxu0 %v1927
    %v1929 = vand.u32 %v1373, 4294901760
    %v1930 = vsub.f32 %v1373, %v1929
    %v1931 = vand.u32 %v1930, 4294901760
    %v1932 = vsub.f32 %v1930, %v1931
    %v1933 = vand.u32 %v1932, 4294901760
    %1934 = vmatprep.subr.mxu0 %v1933
    %v1935 = vand.u32 %v1372, 4294901760
    %v1936 = vsub.f32 %v1372, %v1935
    %v1937 = vand.u32 %v1936, 4294901760
    %v1938 = vsub.f32 %v1936, %v1937
    %v1939 = vand.u32 %v1938, 4294901760
    %1940 = vmatpush2.msra.mxu0 %v1939
    %v1941 = vand.u32 %v1409, 4294901760
    %1942 = vmatprep.mubr.f32.mxu0 %v1941
    %v1943 = vand.u32 %v1408, 4294901760
    %1944 = vmatmul.mubr.f32.gmra.mxu0 %v1943
    %v1945 = vpop.f32.mrf.mxu0
    %v1946 = vadd.f32 %v1553, %v1945
    %v1947 = vpop.f32.mrf.mxu0
    %v1948 = vadd.f32 %v1555, %v1947
    %1949 = vdwg.mxu0
    %v1950 = vand.u32 %v1371, 4294901760
    %v1951 = vsub.f32 %v1371, %v1950
    %1952 = vmatprep.subr.mxu0 %v1951
    %v1953 = vand.u32 %v1370, 4294901760
    %v1954 = vsub.f32 %v1370, %v1953
    %1955 = vmatpush1.msra.mxu0 %v1954
    %v1956 = vand.u32 %v1369, 4294901760
    %v1957 = vsub.f32 %v1369, %v1956
    %1958 = vmatprep.subr.mxu0 %v1957
    %v1959 = vand.u32 %v1368, 4294901760
    %v1960 = vsub.f32 %v1368, %v1959
    %1961 = vmatpush1.msra.mxu0 %v1960
    %v1962 = vand.u32 %v1367, 4294901760
    %v1963 = vsub.f32 %v1367, %v1962
    %1964 = vmatprep.subr.mxu0 %v1963
    %v1965 = vand.u32 %v1366, 4294901760
    %v1966 = vsub.f32 %v1366, %v1965
    %1967 = vmatpush1.msra.mxu0 %v1966
    %v1968 = vand.u32 %v1365, 4294901760
    %v1969 = vsub.f32 %v1365, %v1968
    %1970 = vmatprep.subr.mxu0 %v1969
    %v1971 = vand.u32 %v1364, 4294901760
    %v1972 = vsub.f32 %v1364, %v1971
    %1973 = vmatpush1.msra.mxu0 %v1972
    %v1974 = vand.u32 %v1363, 4294901760
    %v1975 = vsub.f32 %v1363, %v1974
    %1976 = vmatprep.subr.mxu0 %v1975
    %v1977 = vand.u32 %v1362, 4294901760
    %v1978 = vsub.f32 %v1362, %v1977
    %1979 = vmatpush1.msra.mxu0 %v1978
    %v1980 = vand.u32 %v1361, 4294901760
    %v1981 = vsub.f32 %v1361, %v1980
    %1982 = vmatprep.subr.mxu0 %v1981
    %v1983 = vand.u32 %v1360, 4294901760
    %v1984 = vsub.f32 %v1360, %v1983
    %1985 = vmatpush1.msra.mxu0 %v1984
    %v1986 = vand.u32 %v1359, 4294901760
    %v1987 = vsub.f32 %v1359, %v1986
    %1988 = vmatprep.subr.mxu0 %v1987
    %v1989 = vand.u32 %v1358, 4294901760
    %v1990 = vsub.f32 %v1358, %v1989
    %1991 = vmatpush1.msra.mxu0 %v1990
    %v1992 = vand.u32 %v1357, 4294901760
    %v1993 = vsub.f32 %v1357, %v1992
    %1994 = vmatprep.subr.mxu0 %v1993
    %v1995 = vand.u32 %v1356, 4294901760
    %v1996 = vsub.f32 %v1356, %v1995
    %1997 = vmatpush1.msra.mxu0 %v1996
    %v1998 = vand.u32 %v1355, 4294901760
    %v1999 = vsub.f32 %v1355, %v1998
    %2000 = vmatprep.subr.mxu0 %v1999
    %v2001 = vand.u32 %v1354, 4294901760
    %v2002 = vsub.f32 %v1354, %v2001
    %2003 = vmatpush1.msra.mxu0 %v2002
    %v2004 = vand.u32 %v1353, 4294901760
    %v2005 = vsub.f32 %v1353, %v2004
    %2006 = vmatprep.subr.mxu0 %v2005
    %v2007 = vand.u32 %v1352, 4294901760
    %v2008 = vsub.f32 %v1352, %v2007
    %2009 = vmatpush1.msra.mxu0 %v2008
    %v2010 = vand.u32 %v1351, 4294901760
    %v2011 = vsub.f32 %v1351, %v2010
    %2012 = vmatprep.subr.mxu0 %v2011
    %v2013 = vand.u32 %v1350, 4294901760
    %v2014 = vsub.f32 %v1350, %v2013
    %2015 = vmatpush1.msra.mxu0 %v2014
    %v2016 = vand.u32 %v1349, 4294901760
    %v2017 = vsub.f32 %v1349, %v2016
    %2018 = vmatprep.subr.mxu0 %v2017
    %v2019 = vand.u32 %v1348, 4294901760
    %v2020 = vsub.f32 %v1348, %v2019
    %2021 = vmatpush1.msra.mxu0 %v2020
    %v2022 = vand.u32 %v1347, 4294901760
    %v2023 = vsub.f32 %v1347, %v2022
    %2024 = vmatprep.subr.mxu0 %v2023
    %v2025 = vand.u32 %v1346, 4294901760
    %v2026 = vsub.f32 %v1346, %v2025
    %2027 = vmatpush1.msra.mxu0 %v2026
    %v2028 = vand.u32 %v1345, 4294901760
    %v2029 = vsub.f32 %v1345, %v2028
    %2030 = vmatprep.subr.mxu0 %v2029
    %v2031 = vand.u32 %v1344, 4294901760
    %v2032 = vsub.f32 %v1344, %v2031
    %2033 = vmatpush1.msra.mxu0 %v2032
    %v2034 = vand.u32 %v1343, 4294901760
    %v2035 = vsub.f32 %v1343, %v2034
    %2036 = vmatprep.subr.mxu0 %v2035
    %v2037 = vand.u32 %v1342, 4294901760
    %v2038 = vsub.f32 %v1342, %v2037
    %2039 = vmatpush1.msra.mxu0 %v2038
    %v2040 = vand.u32 %v1341, 4294901760
    %v2041 = vsub.f32 %v1341, %v2040
    %2042 = vmatprep.subr.mxu0 %v2041
    %v2043 = vand.u32 %v1340, 4294901760
    %v2044 = vsub.f32 %v1340, %v2043
    %2045 = vmatpush1.msra.mxu0 %v2044
    %v2046 = vand.u32 %v1403, 4294901760
    %v2047 = vsub.f32 %v1403, %v2046
    %2048 = vmatprep.subr.mxu0 %v2047
    %v2049 = vand.u32 %v1402, 4294901760
    %v2050 = vsub.f32 %v1402, %v2049
    %2051 = vmatpush2.msra.mxu0 %v2050
    %v2052 = vand.u32 %v1401, 4294901760
    %v2053 = vsub.f32 %v1401, %v2052
    %2054 = vmatprep.subr.mxu0 %v2053
    %v2055 = vand.u32 %v1400, 4294901760
    %v2056 = vsub.f32 %v1400, %v2055
    %2057 = vmatpush2.msra.mxu0 %v2056
    %v2058 = vand.u32 %v1399, 4294901760
    %v2059 = vsub.f32 %v1399, %v2058
    %2060 = vmatprep.subr.mxu0 %v2059
    %v2061 = vand.u32 %v1398, 4294901760
    %v2062 = vsub.f32 %v1398, %v2061
    %2063 = vmatpush2.msra.mxu0 %v2062
    %v2064 = vand.u32 %v1397, 4294901760
    %v2065 = vsub.f32 %v1397, %v2064
    %2066 = vmatprep.subr.mxu0 %v2065
    %v2067 = vand.u32 %v1396, 4294901760
    %v2068 = vsub.f32 %v1396, %v2067
    %2069 = vmatpush2.msra.mxu0 %v2068
    %v2070 = vand.u32 %v1395, 4294901760
    %v2071 = vsub.f32 %v1395, %v2070
    %2072 = vmatprep.subr.mxu0 %v2071
    %v2073 = vand.u32 %v1394, 4294901760
    %v2074 = vsub.f32 %v1394, %v2073
    %2075 = vmatpush2.msra.mxu0 %v2074
    %v2076 = vand.u32 %v1393, 4294901760
    %v2077 = vsub.f32 %v1393, %v2076
    %2078 = vmatprep.subr.mxu0 %v2077
    %v2079 = vand.u32 %v1392, 4294901760
    %v2080 = vsub.f32 %v1392, %v2079
    %2081 = vmatpush2.msra.mxu0 %v2080
    %v2082 = vand.u32 %v1391, 4294901760
    %v2083 = vsub.f32 %v1391, %v2082
    %2084 = vmatprep.subr.mxu0 %v2083
    %v2085 = vand.u32 %v1390, 4294901760
    %v2086 = vsub.f32 %v1390, %v2085
    %2087 = vmatpush2.msra.mxu0 %v2086
    %v2088 = vand.u32 %v1389, 4294901760
    %v2089 = vsub.f32 %v1389, %v2088
    %2090 = vmatprep.subr.mxu0 %v2089
    %v2091 = vand.u32 %v1388, 4294901760
    %v2092 = vsub.f32 %v1388, %v2091
    %2093 = vmatpush2.msra.mxu0 %v2092
    %v2094 = vand.u32 %v1387, 4294901760
    %v2095 = vsub.f32 %v1387, %v2094
    %2096 = vmatprep.subr.mxu0 %v2095
    %v2097 = vand.u32 %v1386, 4294901760
    %v2098 = vsub.f32 %v1386, %v2097
    %2099 = vmatpush2.msra.mxu0 %v2098
    %v2100 = vand.u32 %v1385, 4294901760
    %v2101 = vsub.f32 %v1385, %v2100
    %2102 = vmatprep.subr.mxu0 %v2101
    %v2103 = vand.u32 %v1384, 4294901760
    %v2104 = vsub.f32 %v1384, %v2103
    %2105 = vmatpush2.msra.mxu0 %v2104
    %v2106 = vand.u32 %v1383, 4294901760
    %v2107 = vsub.f32 %v1383, %v2106
    %2108 = vmatprep.subr.mxu0 %v2107
    %v2109 = vand.u32 %v1382, 4294901760
    %v2110 = vsub.f32 %v1382, %v2109
    %2111 = vmatpush2.msra.mxu0 %v2110
    %v2112 = vand.u32 %v1381, 4294901760
    %v2113 = vsub.f32 %v1381, %v2112
    %2114 = vmatprep.subr.mxu0 %v2113
    %v2115 = vand.u32 %v1380, 4294901760
    %v2116 = vsub.f32 %v1380, %v2115
    %2117 = vmatpush2.msra.mxu0 %v2116
    %v2118 = vand.u32 %v1379, 4294901760
    %v2119 = vsub.f32 %v1379, %v2118
    %2120 = vmatprep.subr.mxu0 %v2119
    %v2121 = vand.u32 %v1378, 4294901760
    %v2122 = vsub.f32 %v1378, %v2121
    %2123 = vmatpush2.msra.mxu0 %v2122
    %v2124 = vand.u32 %v1377, 4294901760
    %v2125 = vsub.f32 %v1377, %v2124
    %2126 = vmatprep.subr.mxu0 %v2125
    %v2127 = vand.u32 %v1376, 4294901760
    %v2128 = vsub.f32 %v1376, %v2127
    %2129 = vmatpush2.msra.mxu0 %v2128
    %v2130 = vand.u32 %v1375, 4294901760
    %v2131 = vsub.f32 %v1375, %v2130
    %2132 = vmatprep.subr.mxu0 %v2131
    %v2133 = vand.u32 %v1374, 4294901760
    %v2134 = vsub.f32 %v1374, %v2133
    %2135 = vmatpush2.msra.mxu0 %v2134
    %v2136 = vand.u32 %v1373, 4294901760
    %v2137 = vsub.f32 %v1373, %v2136
    %2138 = vmatprep.subr.mxu0 %v2137
    %v2139 = vand.u32 %v1372, 4294901760
    %v2140 = vsub.f32 %v1372, %v2139
    %2141 = vmatpush2.msra.mxu0 %v2140
    %v2142 = vand.u32 %v1409, 4294901760
    %v2143 = vsub.f32 %v1409, %v2142
    %2144 = vmatprep.mubr.f32.mxu0 %v2143
    %v2145 = vand.u32 %v1408, 4294901760
    %v2146 = vsub.f32 %v1408, %v2145
    %2147 = vmatmul.mubr.f32.gmra.mxu0 %v2146
    %v2148 = vpop.f32.mrf.mxu0
    %v2149 = vadd.f32 %v1946, %v2148
    %v2150 = vpop.f32.mrf.mxu0
    %v2151 = vadd.f32 %v1948, %v2150
    %2152 = vdwg.mxu0
    %v2153 = vand.u32 %v1371, 4294901760
    %2154 = vmatprep.subr.mxu0 %v2153
    %v2155 = vand.u32 %v1370, 4294901760
    %2156 = vmatpush1.msra.mxu0 %v2155
    %v2157 = vand.u32 %v1369, 4294901760
    %2158 = vmatprep.subr.mxu0 %v2157
    %v2159 = vand.u32 %v1368, 4294901760
    %2160 = vmatpush1.msra.mxu0 %v2159
    %v2161 = vand.u32 %v1367, 4294901760
    %2162 = vmatprep.subr.mxu0 %v2161
    %v2163 = vand.u32 %v1366, 4294901760
    %2164 = vmatpush1.msra.mxu0 %v2163
    %v2165 = vand.u32 %v1365, 4294901760
    %2166 = vmatprep.subr.mxu0 %v2165
    %v2167 = vand.u32 %v1364, 4294901760
    %2168 = vmatpush1.msra.mxu0 %v2167
    %v2169 = vand.u32 %v1363, 4294901760
    %2170 = vmatprep.subr.mxu0 %v2169
    %v2171 = vand.u32 %v1362, 4294901760
    %2172 = vmatpush1.msra.mxu0 %v2171
    %v2173 = vand.u32 %v1361, 4294901760
    %2174 = vmatprep.subr.mxu0 %v2173
    %v2175 = vand.u32 %v1360, 4294901760
    %2176 = vmatpush1.msra.mxu0 %v2175
    %v2177 = vand.u32 %v1359, 4294901760
    %2178 = vmatprep.subr.mxu0 %v2177
    %v2179 = vand.u32 %v1358, 4294901760
    %2180 = vmatpush1.msra.mxu0 %v2179
    %v2181 = vand.u32 %v1357, 4294901760
    %2182 = vmatprep.subr.mxu0 %v2181
    %v2183 = vand.u32 %v1356, 4294901760
    %2184 = vmatpush1.msra.mxu0 %v2183
    %v2185 = vand.u32 %v1355, 4294901760
    %2186 = vmatprep.subr.mxu0 %v2185
    %v2187 = vand.u32 %v1354, 4294901760
    %2188 = vmatpush1.msra.mxu0 %v2187
    %v2189 = vand.u32 %v1353, 4294901760
    %2190 = vmatprep.subr.mxu0 %v2189
    %v2191 = vand.u32 %v1352, 4294901760
    %2192 = vmatpush1.msra.mxu0 %v2191
    %v2193 = vand.u32 %v1351, 4294901760
    %2194 = vmatprep.subr.mxu0 %v2193
    %v2195 = vand.u32 %v1350, 4294901760
    %2196 = vmatpush1.msra.mxu0 %v2195
    %v2197 = vand.u32 %v1349, 4294901760
    %2198 = vmatprep.subr.mxu0 %v2197
    %v2199 = vand.u32 %v1348, 4294901760
    %2200 = vmatpush1.msra.mxu0 %v2199
    %v2201 = vand.u32 %v1347, 4294901760
    %2202 = vmatprep.subr.mxu0 %v2201
    %v2203 = vand.u32 %v1346, 4294901760
    %2204 = vmatpush1.msra.mxu0 %v2203
    %v2205 = vand.u32 %v1345, 4294901760
    %2206 = vmatprep.subr.mxu0 %v2205
    %v2207 = vand.u32 %v1344, 4294901760
    %2208 = vmatpush1.msra.mxu0 %v2207
    %v2209 = vand.u32 %v1343, 4294901760
    %2210 = vmatprep.subr.mxu0 %v2209
    %v2211 = vand.u32 %v1342, 4294901760
    %2212 = vmatpush1.msra.mxu0 %v2211
    %v2213 = vand.u32 %v1341, 4294901760
    %2214 = vmatprep.subr.mxu0 %v2213
    %v2215 = vand.u32 %v1340, 4294901760
    %2216 = vmatpush1.msra.mxu0 %v2215
    %v2217 = vand.u32 %v1403, 4294901760
    %2218 = vmatprep.subr.mxu0 %v2217
    %v2219 = vand.u32 %v1402, 4294901760
    %2220 = vmatpush2.msra.mxu0 %v2219
    %v2221 = vand.u32 %v1401, 4294901760
    %2222 = vmatprep.subr.mxu0 %v2221
    %v2223 = vand.u32 %v1400, 4294901760
    %2224 = vmatpush2.msra.mxu0 %v2223
    %v2225 = vand.u32 %v1399, 4294901760
    %2226 = vmatprep.subr.mxu0 %v2225
    %v2227 = vand.u32 %v1398, 4294901760
    %2228 = vmatpush2.msra.mxu0 %v2227
    %v2229 = vand.u32 %v1397, 4294901760
    %2230 = vmatprep.subr.mxu0 %v2229
    %v2231 = vand.u32 %v1396, 4294901760
    %2232 = vmatpush2.msra.mxu0 %v2231
    %v2233 = vand.u32 %v1395, 4294901760
    %2234 = vmatprep.subr.mxu0 %v2233
    %v2235 = vand.u32 %v1394, 4294901760
    %2236 = vmatpush2.msra.mxu0 %v2235
    %v2237 = vand.u32 %v1393, 4294901760
    %2238 = vmatprep.subr.mxu0 %v2237
    %v2239 = vand.u32 %v1392, 4294901760
    %2240 = vmatpush2.msra.mxu0 %v2239
    %v2241 = vand.u32 %v1391, 4294901760
    %2242 = vmatprep.subr.mxu0 %v2241
    %v2243 = vand.u32 %v1390, 4294901760
    %2244 = vmatpush2.msra.mxu0 %v2243
    %v2245 = vand.u32 %v1389, 4294901760
    %2246 = vmatprep.subr.mxu0 %v2245
    %v2247 = vand.u32 %v1388, 4294901760
    %2248 = vmatpush2.msra.mxu0 %v2247
    %v2249 = vand.u32 %v1387, 4294901760
    %2250 = vmatprep.subr.mxu0 %v2249
    %v2251 = vand.u32 %v1386, 4294901760
    %2252 = vmatpush2.msra.mxu0 %v2251
    %v2253 = vand.u32 %v1385, 4294901760
    %2254 = vmatprep.subr.mxu0 %v2253
    %v2255 = vand.u32 %v1384, 4294901760
    %2256 = vmatpush2.msra.mxu0 %v2255
    %v2257 = vand.u32 %v1383, 4294901760
    %2258 = vmatprep.subr.mxu0 %v2257
    %v2259 = vand.u32 %v1382, 4294901760
    %2260 = vmatpush2.msra.mxu0 %v2259
    %v2261 = vand.u32 %v1381, 4294901760
    %2262 = vmatprep.subr.mxu0 %v2261
    %v2263 = vand.u32 %v1380, 4294901760
    %2264 = vmatpush2.msra.mxu0 %v2263
    %v2265 = vand.u32 %v1379, 4294901760
    %2266 = vmatprep.subr.mxu0 %v2265
    %v2267 = vand.u32 %v1378, 4294901760
    %2268 = vmatpush2.msra.mxu0 %v2267
    %v2269 = vand.u32 %v1377, 4294901760
    %2270 = vmatprep.subr.mxu0 %v2269
    %v2271 = vand.u32 %v1376, 4294901760
    %2272 = vmatpush2.msra.mxu0 %v2271
    %v2273 = vand.u32 %v1375, 4294901760
    %2274 = vmatprep.subr.mxu0 %v2273
    %v2275 = vand.u32 %v1374, 4294901760
    %2276 = vmatpush2.msra.mxu0 %v2275
    %v2277 = vand.u32 %v1373, 4294901760
    %2278 = vmatprep.subr.mxu0 %v2277
    %v2279 = vand.u32 %v1372, 4294901760
    %2280 = vmatpush2.msra.mxu0 %v2279
    %v2281 = vand.u32 %v1409, 4294901760
    %v2282 = vsub.f32 %v1409, %v2281
    %v2283 = vand.u32 %v2282, 4294901760
    %2284 = vmatprep.mubr.f32.mxu0 %v2283
    %v2285 = vand.u32 %v1408, 4294901760
    %v2286 = vsub.f32 %v1408, %v2285
    %v2287 = vand.u32 %v2286, 4294901760
    %2288 = vmatmul.mubr.f32.gmra.mxu0 %v2287
    %v2289 = vpop.f32.mrf.mxu0
    %v2290 = vadd.f32 %v2149, %v2289
    %v2291 = vpop.f32.mrf.mxu0
    %v2292 = vadd.f32 %v2151, %v2291
    %2293 = vdwg.mxu0
    %v2294 = vand.u32 %v1371, 4294901760
    %v2295 = vsub.f32 %v1371, %v2294
    %v2296 = vand.u32 %v2295, 4294901760
    %2297 = vmatprep.subr.mxu0 %v2296
    %v2298 = vand.u32 %v1370, 4294901760
    %v2299 = vsub.f32 %v1370, %v2298
    %v2300 = vand.u32 %v2299, 4294901760
    %2301 = vmatpush1.msra.mxu0 %v2300
    %v2302 = vand.u32 %v1369, 4294901760
    %v2303 = vsub.f32 %v1369, %v2302
    %v2304 = vand.u32 %v2303, 4294901760
    %2305 = vmatprep.subr.mxu0 %v2304
    %v2306 = vand.u32 %v1368, 4294901760
    %v2307 = vsub.f32 %v1368, %v2306
    %v2308 = vand.u32 %v2307, 4294901760
    %2309 = vmatpush1.msra.mxu0 %v2308
    %v2310 = vand.u32 %v1367, 4294901760
    %v2311 = vsub.f32 %v1367, %v2310
    %v2312 = vand.u32 %v2311, 4294901760
    %2313 = vmatprep.subr.mxu0 %v2312
    %v2314 = vand.u32 %v1366, 4294901760
    %v2315 = vsub.f32 %v1366, %v2314
    %v2316 = vand.u32 %v2315, 4294901760
    %2317 = vmatpush1.msra.mxu0 %v2316
    %v2318 = vand.u32 %v1365, 4294901760
    %v2319 = vsub.f32 %v1365, %v2318
    %v2320 = vand.u32 %v2319, 4294901760
    %2321 = vmatprep.subr.mxu0 %v2320
    %v2322 = vand.u32 %v1364, 4294901760
    %v2323 = vsub.f32 %v1364, %v2322
    %v2324 = vand.u32 %v2323, 4294901760
    %2325 = vmatpush1.msra.mxu0 %v2324
    %v2326 = vand.u32 %v1363, 4294901760
    %v2327 = vsub.f32 %v1363, %v2326
    %v2328 = vand.u32 %v2327, 4294901760
    %2329 = vmatprep.subr.mxu0 %v2328
    %v2330 = vand.u32 %v1362, 4294901760
    %v2331 = vsub.f32 %v1362, %v2330
    %v2332 = vand.u32 %v2331, 4294901760
    %2333 = vmatpush1.msra.mxu0 %v2332
    %v2334 = vand.u32 %v1361, 4294901760
    %v2335 = vsub.f32 %v1361, %v2334
    %v2336 = vand.u32 %v2335, 4294901760
    %2337 = vmatprep.subr.mxu0 %v2336
    %v2338 = vand.u32 %v1360, 4294901760
    %v2339 = vsub.f32 %v1360, %v2338
    %v2340 = vand.u32 %v2339, 4294901760
    %2341 = vmatpush1.msra.mxu0 %v2340
    %v2342 = vand.u32 %v1359, 4294901760
    %v2343 = vsub.f32 %v1359, %v2342
    %v2344 = vand.u32 %v2343, 4294901760
    %2345 = vmatprep.subr.mxu0 %v2344
    %v2346 = vand.u32 %v1358, 4294901760
    %v2347 = vsub.f32 %v1358, %v2346
    %v2348 = vand.u32 %v2347, 4294901760
    %2349 = vmatpush1.msra.mxu0 %v2348
    %v2350 = vand.u32 %v1357, 4294901760
    %v2351 = vsub.f32 %v1357, %v2350
    %v2352 = vand.u32 %v2351, 4294901760
    %2353 = vmatprep.subr.mxu0 %v2352
    %v2354 = vand.u32 %v1356, 4294901760
    %v2355 = vsub.f32 %v1356, %v2354
    %v2356 = vand.u32 %v2355, 4294901760
    %2357 = vmatpush1.msra.mxu0 %v2356
    %v2358 = vand.u32 %v1355, 4294901760
    %v2359 = vsub.f32 %v1355, %v2358
    %v2360 = vand.u32 %v2359, 4294901760
    %2361 = vmatprep.subr.mxu0 %v2360
    %v2362 = vand.u32 %v1354, 4294901760
    %v2363 = vsub.f32 %v1354, %v2362
    %v2364 = vand.u32 %v2363, 4294901760
    %2365 = vmatpush1.msra.mxu0 %v2364
    %v2366 = vand.u32 %v1353, 4294901760
    %v2367 = vsub.f32 %v1353, %v2366
    %v2368 = vand.u32 %v2367, 4294901760
    %2369 = vmatprep.subr.mxu0 %v2368
    %v2370 = vand.u32 %v1352, 4294901760
    %v2371 = vsub.f32 %v1352, %v2370
    %v2372 = vand.u32 %v2371, 4294901760
    %2373 = vmatpush1.msra.mxu0 %v2372
    %v2374 = vand.u32 %v1351, 4294901760
    %v2375 = vsub.f32 %v1351, %v2374
    %v2376 = vand.u32 %v2375, 4294901760
    %2377 = vmatprep.subr.mxu0 %v2376
    %v2378 = vand.u32 %v1350, 4294901760
    %v2379 = vsub.f32 %v1350, %v2378
    %v2380 = vand.u32 %v2379, 4294901760
    %2381 = vmatpush1.msra.mxu0 %v2380
    %v2382 = vand.u32 %v1349, 4294901760
    %v2383 = vsub.f32 %v1349, %v2382
    %v2384 = vand.u32 %v2383, 4294901760
    %2385 = vmatprep.subr.mxu0 %v2384
    %v2386 = vand.u32 %v1348, 4294901760
    %v2387 = vsub.f32 %v1348, %v2386
    %v2388 = vand.u32 %v2387, 4294901760
    %2389 = vmatpush1.msra.mxu0 %v2388
    %v2390 = vand.u32 %v1347, 4294901760
    %v2391 = vsub.f32 %v1347, %v2390
    %v2392 = vand.u32 %v2391, 4294901760
    %2393 = vmatprep.subr.mxu0 %v2392
    %v2394 = vand.u32 %v1346, 4294901760
    %v2395 = vsub.f32 %v1346, %v2394
    %v2396 = vand.u32 %v2395, 4294901760
    %2397 = vmatpush1.msra.mxu0 %v2396
    %v2398 = vand.u32 %v1345, 4294901760
    %v2399 = vsub.f32 %v1345, %v2398
    %v2400 = vand.u32 %v2399, 4294901760
    %2401 = vmatprep.subr.mxu0 %v2400
    %v2402 = vand.u32 %v1344, 4294901760
    %v2403 = vsub.f32 %v1344, %v2402
    %v2404 = vand.u32 %v2403, 4294901760
    %2405 = vmatpush1.msra.mxu0 %v2404
    %v2406 = vand.u32 %v1343, 4294901760
    %v2407 = vsub.f32 %v1343, %v2406
    %v2408 = vand.u32 %v2407, 4294901760
    %2409 = vmatprep.subr.mxu0 %v2408
    %v2410 = vand.u32 %v1342, 4294901760
    %v2411 = vsub.f32 %v1342, %v2410
    %v2412 = vand.u32 %v2411, 4294901760
    %2413 = vmatpush1.msra.mxu0 %v2412
    %v2414 = vand.u32 %v1341, 4294901760
    %v2415 = vsub.f32 %v1341, %v2414
    %v2416 = vand.u32 %v2415, 4294901760
    %2417 = vmatprep.subr.mxu0 %v2416
    %v2418 = vand.u32 %v1340, 4294901760
    %v2419 = vsub.f32 %v1340, %v2418
    %v2420 = vand.u32 %v2419, 4294901760
    %2421 = vmatpush1.msra.mxu0 %v2420
    %v2422 = vand.u32 %v1403, 4294901760
    %v2423 = vsub.f32 %v1403, %v2422
    %v2424 = vand.u32 %v2423, 4294901760
    %2425 = vmatprep.subr.mxu0 %v2424
    %v2426 = vand.u32 %v1402, 4294901760
    %v2427 = vsub.f32 %v1402, %v2426
    %v2428 = vand.u32 %v2427, 4294901760
    %2429 = vmatpush2.msra.mxu0 %v2428
    %v2430 = vand.u32 %v1401, 4294901760
    %v2431 = vsub.f32 %v1401, %v2430
    %v2432 = vand.u32 %v2431, 4294901760
    %2433 = vmatprep.subr.mxu0 %v2432
    %v2434 = vand.u32 %v1400, 4294901760
    %v2435 = vsub.f32 %v1400, %v2434
    %v2436 = vand.u32 %v2435, 4294901760
    %2437 = vmatpush2.msra.mxu0 %v2436
    %v2438 = vand.u32 %v1399, 4294901760
    %v2439 = vsub.f32 %v1399, %v2438
    %v2440 = vand.u32 %v2439, 4294901760
    %2441 = vmatprep.subr.mxu0 %v2440
    %v2442 = vand.u32 %v1398, 4294901760
    %v2443 = vsub.f32 %v1398, %v2442
    %v2444 = vand.u32 %v2443, 4294901760
    %2445 = vmatpush2.msra.mxu0 %v2444
    %v2446 = vand.u32 %v1397, 4294901760
    %v2447 = vsub.f32 %v1397, %v2446
    %v2448 = vand.u32 %v2447, 4294901760
    %2449 = vmatprep.subr.mxu0 %v2448
    %v2450 = vand.u32 %v1396, 4294901760
    %v2451 = vsub.f32 %v1396, %v2450
    %v2452 = vand.u32 %v2451, 4294901760
    %2453 = vmatpush2.msra.mxu0 %v2452
    %v2454 = vand.u32 %v1395, 4294901760
    %v2455 = vsub.f32 %v1395, %v2454
    %v2456 = vand.u32 %v2455, 4294901760
    %2457 = vmatprep.subr.mxu0 %v2456
    %v2458 = vand.u32 %v1394, 4294901760
    %v2459 = vsub.f32 %v1394, %v2458
    %v2460 = vand.u32 %v2459, 4294901760
    %2461 = vmatpush2.msra.mxu0 %v2460
    %v2462 = vand.u32 %v1393, 4294901760
    %v2463 = vsub.f32 %v1393, %v2462
    %v2464 = vand.u32 %v2463, 4294901760
    %2465 = vmatprep.subr.mxu0 %v2464
    %v2466 = vand.u32 %v1392, 4294901760
    %v2467 = vsub.f32 %v1392, %v2466
    %v2468 = vand.u32 %v2467, 4294901760
    %2469 = vmatpush2.msra.mxu0 %v2468
    %v2470 = vand.u32 %v1391, 4294901760
    %v2471 = vsub.f32 %v1391, %v2470
    %v2472 = vand.u32 %v2471, 4294901760
    %2473 = vmatprep.subr.mxu0 %v2472
    %v2474 = vand.u32 %v1390, 4294901760
    %v2475 = vsub.f32 %v1390, %v2474
    %v2476 = vand.u32 %v2475, 4294901760
    %2477 = vmatpush2.msra.mxu0 %v2476
    %v2478 = vand.u32 %v1389, 4294901760
    %v2479 = vsub.f32 %v1389, %v2478
    %v2480 = vand.u32 %v2479, 4294901760
    %2481 = vmatprep.subr.mxu0 %v2480
    %v2482 = vand.u32 %v1388, 4294901760
    %v2483 = vsub.f32 %v1388, %v2482
    %v2484 = vand.u32 %v2483, 4294901760
    %2485 = vmatpush2.msra.mxu0 %v2484
    %v2486 = vand.u32 %v1387, 4294901760
    %v2487 = vsub.f32 %v1387, %v2486
    %v2488 = vand.u32 %v2487, 4294901760
    %2489 = vmatprep.subr.mxu0 %v2488
    %v2490 = vand.u32 %v1386, 4294901760
    %v2491 = vsub.f32 %v1386, %v2490
    %v2492 = vand.u32 %v2491, 4294901760
    %2493 = vmatpush2.msra.mxu0 %v2492
    %v2494 = vand.u32 %v1385, 4294901760
    %v2495 = vsub.f32 %v1385, %v2494
    %v2496 = vand.u32 %v2495, 4294901760
    %2497 = vmatprep.subr.mxu0 %v2496
    %v2498 = vand.u32 %v1384, 4294901760
    %v2499 = vsub.f32 %v1384, %v2498
    %v2500 = vand.u32 %v2499, 4294901760
    %2501 = vmatpush2.msra.mxu0 %v2500
    %v2502 = vand.u32 %v1383, 4294901760
    %v2503 = vsub.f32 %v1383, %v2502
    %v2504 = vand.u32 %v2503, 4294901760
    %2505 = vmatprep.subr.mxu0 %v2504
    %v2506 = vand.u32 %v1382, 4294901760
    %v2507 = vsub.f32 %v1382, %v2506
    %v2508 = vand.u32 %v2507, 4294901760
    %2509 = vmatpush2.msra.mxu0 %v2508
    %v2510 = vand.u32 %v1381, 4294901760
    %v2511 = vsub.f32 %v1381, %v2510
    %v2512 = vand.u32 %v2511, 4294901760
    %2513 = vmatprep.subr.mxu0 %v2512
    %v2514 = vand.u32 %v1380, 4294901760
    %v2515 = vsub.f32 %v1380, %v2514
    %v2516 = vand.u32 %v2515, 4294901760
    %2517 = vmatpush2.msra.mxu0 %v2516
    %v2518 = vand.u32 %v1379, 4294901760
    %v2519 = vsub.f32 %v1379, %v2518
    %v2520 = vand.u32 %v2519, 4294901760
    %2521 = vmatprep.subr.mxu0 %v2520
    %v2522 = vand.u32 %v1378, 4294901760
    %v2523 = vsub.f32 %v1378, %v2522
    %v2524 = vand.u32 %v2523, 4294901760
    %2525 = vmatpush2.msra.mxu0 %v2524
    %v2526 = vand.u32 %v1377, 4294901760
    %v2527 = vsub.f32 %v1377, %v2526
    %v2528 = vand.u32 %v2527, 4294901760
    %2529 = vmatprep.subr.mxu0 %v2528
    %v2530 = vand.u32 %v1376, 4294901760
    %v2531 = vsub.f32 %v1376, %v2530
    %v2532 = vand.u32 %v2531, 4294901760
    %2533 = vmatpush2.msra.mxu0 %v2532
    %v2534 = vand.u32 %v1375, 4294901760
    %v2535 = vsub.f32 %v1375, %v2534
    %v2536 = vand.u32 %v2535, 4294901760
    %2537 = vmatprep.subr.mxu0 %v2536
    %v2538 = vand.u32 %v1374, 4294901760
    %v2539 = vsub.f32 %v1374, %v2538
    %v2540 = vand.u32 %v2539, 4294901760
    %2541 = vmatpush2.msra.mxu0 %v2540
    %v2542 = vand.u32 %v1373, 4294901760
    %v2543 = vsub.f32 %v1373, %v2542
    %v2544 = vand.u32 %v2543, 4294901760
    %2545 = vmatprep.subr.mxu0 %v2544
    %v2546 = vand.u32 %v1372, 4294901760
    %v2547 = vsub.f32 %v1372, %v2546
    %v2548 = vand.u32 %v2547, 4294901760
    %2549 = vmatpush2.msra.mxu0 %v2548
    %v2550 = vand.u32 %v1409, 4294901760
    %2551 = vmatprep.mubr.f32.mxu0 %v2550
    %v2552 = vand.u32 %v1408, 4294901760
    %2553 = vmatmul.mubr.f32.gmra.mxu0 %v2552
    %v2554 = vpop.f32.mrf.mxu0
    %v2555 = vadd.f32 %v2290, %v2554
    %v2556 = vpop.f32.mrf.mxu0
    %v2557 = vadd.f32 %v2292, %v2556
    %2558 = vdwg.mxu0
    %v2559 = vand.u32 %v1371, 4294901760
    %2560 = vmatprep.subr.mxu0 %v2559
    %v2561 = vand.u32 %v1370, 4294901760
    %2562 = vmatpush1.msra.mxu0 %v2561
    %v2563 = vand.u32 %v1369, 4294901760
    %2564 = vmatprep.subr.mxu0 %v2563
    %v2565 = vand.u32 %v1368, 4294901760
    %2566 = vmatpush1.msra.mxu0 %v2565
    %v2567 = vand.u32 %v1367, 4294901760
    %2568 = vmatprep.subr.mxu0 %v2567
    %v2569 = vand.u32 %v1366, 4294901760
    %2570 = vmatpush1.msra.mxu0 %v2569
    %v2571 = vand.u32 %v1365, 4294901760
    %2572 = vmatprep.subr.mxu0 %v2571
    %v2573 = vand.u32 %v1364, 4294901760
    %2574 = vmatpush1.msra.mxu0 %v2573
    %v2575 = vand.u32 %v1363, 4294901760
    %2576 = vmatprep.subr.mxu0 %v2575
    %v2577 = vand.u32 %v1362, 4294901760
    %2578 = vmatpush1.msra.mxu0 %v2577
    %v2579 = vand.u32 %v1361, 4294901760
    %2580 = vmatprep.subr.mxu0 %v2579
    %v2581 = vand.u32 %v1360, 4294901760
    %2582 = vmatpush1.msra.mxu0 %v2581
    %v2583 = vand.u32 %v1359, 4294901760
    %2584 = vmatprep.subr.mxu0 %v2583
    %v2585 = vand.u32 %v1358, 4294901760
    %2586 = vmatpush1.msra.mxu0 %v2585
    %v2587 = vand.u32 %v1357, 4294901760
    %2588 = vmatprep.subr.mxu0 %v2587
    %v2589 = vand.u32 %v1356, 4294901760
    %2590 = vmatpush1.msra.mxu0 %v2589
    %v2591 = vand.u32 %v1355, 4294901760
    %2592 = vmatprep.subr.mxu0 %v2591
    %v2593 = vand.u32 %v1354, 4294901760
    %2594 = vmatpush1.msra.mxu0 %v2593
    %v2595 = vand.u32 %v1353, 4294901760
    %2596 = vmatprep.subr.mxu0 %v2595
    %v2597 = vand.u32 %v1352, 4294901760
    %2598 = vmatpush1.msra.mxu0 %v2597
    %v2599 = vand.u32 %v1351, 4294901760
    %2600 = vmatprep.subr.mxu0 %v2599
    %v2601 = vand.u32 %v1350, 4294901760
    %2602 = vmatpush1.msra.mxu0 %v2601
    %v2603 = vand.u32 %v1349, 4294901760
    %2604 = vmatprep.subr.mxu0 %v2603
    %v2605 = vand.u32 %v1348, 4294901760
    %2606 = vmatpush1.msra.mxu0 %v2605
    %v2607 = vand.u32 %v1347, 4294901760
    %2608 = vmatprep.subr.mxu0 %v2607
    %v2609 = vand.u32 %v1346, 4294901760
    %2610 = vmatpush1.msra.mxu0 %v2609
    %v2611 = vand.u32 %v1345, 4294901760
    %2612 = vmatprep.subr.mxu0 %v2611
    %v2613 = vand.u32 %v1344, 4294901760
    %2614 = vmatpush1.msra.mxu0 %v2613
    %v2615 = vand.u32 %v1343, 4294901760
    %2616 = vmatprep.subr.mxu0 %v2615
    %v2617 = vand.u32 %v1342, 4294901760
    %2618 = vmatpush1.msra.mxu0 %v2617
    %v2619 = vand.u32 %v1341, 4294901760
    %2620 = vmatprep.subr.mxu0 %v2619
    %v2621 = vand.u32 %v1340, 4294901760
    %2622 = vmatpush1.msra.mxu0 %v2621
    %v2623 = vand.u32 %v1403, 4294901760
    %2624 = vmatprep.subr.mxu0 %v2623
    %v2625 = vand.u32 %v1402, 4294901760
    %2626 = vmatpush2.msra.mxu0 %v2625
    %v2627 = vand.u32 %v1401, 4294901760
    %2628 = vmatprep.subr.mxu0 %v2627
    %v2629 = vand.u32 %v1400, 4294901760
    %2630 = vmatpush2.msra.mxu0 %v2629
    %v2631 = vand.u32 %v1399, 4294901760
    %2632 = vmatprep.subr.mxu0 %v2631
    %v2633 = vand.u32 %v1398, 4294901760
    %2634 = vmatpush2.msra.mxu0 %v2633
    %v2635 = vand.u32 %v1397, 4294901760
    %2636 = vmatprep.subr.mxu0 %v2635
    %v2637 = vand.u32 %v1396, 4294901760
    %2638 = vmatpush2.msra.mxu0 %v2637
    %v2639 = vand.u32 %v1395, 4294901760
    %2640 = vmatprep.subr.mxu0 %v2639
    %v2641 = vand.u32 %v1394, 4294901760
    %2642 = vmatpush2.msra.mxu0 %v2641
    %v2643 = vand.u32 %v1393, 4294901760
    %2644 = vmatprep.subr.mxu0 %v2643
    %v2645 = vand.u32 %v1392, 4294901760
    %2646 = vmatpush2.msra.mxu0 %v2645
    %v2647 = vand.u32 %v1391, 4294901760
    %2648 = vmatprep.subr.mxu0 %v2647
    %v2649 = vand.u32 %v1390, 4294901760
    %2650 = vmatpush2.msra.mxu0 %v2649
    %v2651 = vand.u32 %v1389, 4294901760
    %2652 = vmatprep.subr.mxu0 %v2651
    %v2653 = vand.u32 %v1388, 4294901760
    %2654 = vmatpush2.msra.mxu0 %v2653
    %v2655 = vand.u32 %v1387, 4294901760
    %2656 = vmatprep.subr.mxu0 %v2655
    %v2657 = vand.u32 %v1386, 4294901760
    %2658 = vmatpush2.msra.mxu0 %v2657
    %v2659 = vand.u32 %v1385, 4294901760
    %2660 = vmatprep.subr.mxu0 %v2659
    %v2661 = vand.u32 %v1384, 4294901760
    %2662 = vmatpush2.msra.mxu0 %v2661
    %v2663 = vand.u32 %v1383, 4294901760
    %2664 = vmatprep.subr.mxu0 %v2663
    %v2665 = vand.u32 %v1382, 4294901760
    %2666 = vmatpush2.msra.mxu0 %v2665
    %v2667 = vand.u32 %v1381, 4294901760
    %2668 = vmatprep.subr.mxu0 %v2667
    %v2669 = vand.u32 %v1380, 4294901760
    %2670 = vmatpush2.msra.mxu0 %v2669
    %v2671 = vand.u32 %v1379, 4294901760
    %2672 = vmatprep.subr.mxu0 %v2671
    %v2673 = vand.u32 %v1378, 4294901760
    %2674 = vmatpush2.msra.mxu0 %v2673
    %v2675 = vand.u32 %v1377, 4294901760
    %2676 = vmatprep.subr.mxu0 %v2675
    %v2677 = vand.u32 %v1376, 4294901760
    %2678 = vmatpush2.msra.mxu0 %v2677
    %v2679 = vand.u32 %v1375, 4294901760
    %2680 = vmatprep.subr.mxu0 %v2679
    %v2681 = vand.u32 %v1374, 4294901760
    %2682 = vmatpush2.msra.mxu0 %v2681
    %v2683 = vand.u32 %v1373, 4294901760
    %2684 = vmatprep.subr.mxu0 %v2683
    %v2685 = vand.u32 %v1372, 4294901760
    %2686 = vmatpush2.msra.mxu0 %v2685
    %v2687 = vand.u32 %v1409, 4294901760
    %2688 = vmatprep.mubr.f32.mxu0 %v2687
    %v2689 = vand.u32 %v1408, 4294901760
    %2690 = vmatmul.mubr.f32.gmra.mxu0 %v2689
    %v2691 = vpop.f32.mrf.mxu0
    %v2692 = vadd.f32 %v2555, %v2691
    %v2693 = vpop.f32.mrf.mxu0
    %v2694 = vadd.f32 %v2557, %v2693
    %2695 = vdwg.mxu0
    %v2700 = vsel %vm186, %v1225, %v1207
    %v2701 = vsel %vm186, %v1234, %v1216
    %v2704 = vand.u32 %v1307, 4294901760
    %2705 = vmatprep.subr.mxu0 %v2704
    %v2706 = vand.u32 %v1306, 4294901760
    %2707 = vmatpush1.msra.mxu0 %v2706
    %v2708 = vand.u32 %v1305, 4294901760
    %2709 = vmatprep.subr.mxu0 %v2708
    %v2710 = vand.u32 %v1304, 4294901760
    %2711 = vmatpush1.msra.mxu0 %v2710
    %v2712 = vand.u32 %v1303, 4294901760
    %2713 = vmatprep.subr.mxu0 %v2712
    %v2714 = vand.u32 %v1302, 4294901760
    %2715 = vmatpush1.msra.mxu0 %v2714
    %v2716 = vand.u32 %v1301, 4294901760
    %2717 = vmatprep.subr.mxu0 %v2716
    %v2718 = vand.u32 %v1300, 4294901760
    %2719 = vmatpush1.msra.mxu0 %v2718
    %v2720 = vand.u32 %v1299, 4294901760
    %2721 = vmatprep.subr.mxu0 %v2720
    %v2722 = vand.u32 %v1298, 4294901760
    %2723 = vmatpush1.msra.mxu0 %v2722
    %v2724 = vand.u32 %v1297, 4294901760
    %2725 = vmatprep.subr.mxu0 %v2724
    %v2726 = vand.u32 %v1296, 4294901760
    %2727 = vmatpush1.msra.mxu0 %v2726
    %v2728 = vand.u32 %v1295, 4294901760
    %2729 = vmatprep.subr.mxu0 %v2728
    %v2730 = vand.u32 %v1294, 4294901760
    %2731 = vmatpush1.msra.mxu0 %v2730
    %v2732 = vand.u32 %v1293, 4294901760
    %2733 = vmatprep.subr.mxu0 %v2732
    %v2734 = vand.u32 %v1292, 4294901760
    %2735 = vmatpush1.msra.mxu0 %v2734
    %v2736 = vand.u32 %v1291, 4294901760
    %2737 = vmatprep.subr.mxu0 %v2736
    %v2738 = vand.u32 %v1290, 4294901760
    %2739 = vmatpush1.msra.mxu0 %v2738
    %v2740 = vand.u32 %v1289, 4294901760
    %2741 = vmatprep.subr.mxu0 %v2740
    %v2742 = vand.u32 %v1288, 4294901760
    %2743 = vmatpush1.msra.mxu0 %v2742
    %v2744 = vand.u32 %v1287, 4294901760
    %2745 = vmatprep.subr.mxu0 %v2744
    %v2746 = vand.u32 %v1286, 4294901760
    %2747 = vmatpush1.msra.mxu0 %v2746
    %v2748 = vand.u32 %v1285, 4294901760
    %2749 = vmatprep.subr.mxu0 %v2748
    %v2750 = vand.u32 %v1284, 4294901760
    %2751 = vmatpush1.msra.mxu0 %v2750
    %v2752 = vand.u32 %v1283, 4294901760
    %2753 = vmatprep.subr.mxu0 %v2752
    %v2754 = vand.u32 %v1282, 4294901760
    %2755 = vmatpush1.msra.mxu0 %v2754
    %v2756 = vand.u32 %v1281, 4294901760
    %2757 = vmatprep.subr.mxu0 %v2756
    %v2758 = vand.u32 %v1280, 4294901760
    %2759 = vmatpush1.msra.mxu0 %v2758
    %v2760 = vand.u32 %v1279, 4294901760
    %2761 = vmatprep.subr.mxu0 %v2760
    %v2762 = vand.u32 %v1278, 4294901760
    %2763 = vmatpush1.msra.mxu0 %v2762
    %v2764 = vand.u32 %v1277, 4294901760
    %2765 = vmatprep.subr.mxu0 %v2764
    %v2766 = vand.u32 %v1276, 4294901760
    %2767 = vmatpush1.msra.mxu0 %v2766
    %v2768 = vand.u32 %v1339, 4294901760
    %2769 = vmatprep.subr.mxu0 %v2768
    %v2770 = vand.u32 %v1338, 4294901760
    %2771 = vmatpush2.msra.mxu0 %v2770
    %v2772 = vand.u32 %v1337, 4294901760
    %2773 = vmatprep.subr.mxu0 %v2772
    %v2774 = vand.u32 %v1336, 4294901760
    %2775 = vmatpush2.msra.mxu0 %v2774
    %v2776 = vand.u32 %v1335, 4294901760
    %2777 = vmatprep.subr.mxu0 %v2776
    %v2778 = vand.u32 %v1334, 4294901760
    %2779 = vmatpush2.msra.mxu0 %v2778
    %v2780 = vand.u32 %v1333, 4294901760
    %2781 = vmatprep.subr.mxu0 %v2780
    %v2782 = vand.u32 %v1332, 4294901760
    %2783 = vmatpush2.msra.mxu0 %v2782
    %v2784 = vand.u32 %v1331, 4294901760
    %2785 = vmatprep.subr.mxu0 %v2784
    %v2786 = vand.u32 %v1330, 4294901760
    %2787 = vmatpush2.msra.mxu0 %v2786
    %v2788 = vand.u32 %v1329, 4294901760
    %2789 = vmatprep.subr.mxu0 %v2788
    %v2790 = vand.u32 %v1328, 4294901760
    %2791 = vmatpush2.msra.mxu0 %v2790
    %v2792 = vand.u32 %v1327, 4294901760
    %2793 = vmatprep.subr.mxu0 %v2792
    %v2794 = vand.u32 %v1326, 4294901760
    %2795 = vmatpush2.msra.mxu0 %v2794
    %v2796 = vand.u32 %v1325, 4294901760
    %2797 = vmatprep.subr.mxu0 %v2796
    %v2798 = vand.u32 %v1324, 4294901760
    %2799 = vmatpush2.msra.mxu0 %v2798
    %v2800 = vand.u32 %v1323, 4294901760
    %2801 = vmatprep.subr.mxu0 %v2800
    %v2802 = vand.u32 %v1322, 4294901760
    %2803 = vmatpush2.msra.mxu0 %v2802
    %v2804 = vand.u32 %v1321, 4294901760
    %2805 = vmatprep.subr.mxu0 %v2804
    %v2806 = vand.u32 %v1320, 4294901760
    %2807 = vmatpush2.msra.mxu0 %v2806
    %v2808 = vand.u32 %v1319, 4294901760
    %2809 = vmatprep.subr.mxu0 %v2808
    %v2810 = vand.u32 %v1318, 4294901760
    %2811 = vmatpush2.msra.mxu0 %v2810
    %v2812 = vand.u32 %v1317, 4294901760
    %2813 = vmatprep.subr.mxu0 %v2812
    %v2814 = vand.u32 %v1316, 4294901760
    %2815 = vmatpush2.msra.mxu0 %v2814
    %v2816 = vand.u32 %v1315, 4294901760
    %2817 = vmatprep.subr.mxu0 %v2816
    %v2818 = vand.u32 %v1314, 4294901760
    %2819 = vmatpush2.msra.mxu0 %v2818
    %v2820 = vand.u32 %v1313, 4294901760
    %2821 = vmatprep.subr.mxu0 %v2820
    %v2822 = vand.u32 %v1312, 4294901760
    %2823 = vmatpush2.msra.mxu0 %v2822
    %v2824 = vand.u32 %v1311, 4294901760
    %2825 = vmatprep.subr.mxu0 %v2824
    %v2826 = vand.u32 %v1310, 4294901760
    %2827 = vmatpush2.msra.mxu0 %v2826
    %v2828 = vand.u32 %v1309, 4294901760
    %2829 = vmatprep.subr.mxu0 %v2828
    %v2830 = vand.u32 %v1308, 4294901760
    %2831 = vmatpush2.msra.mxu0 %v2830
    %v2832 = vand.u32 %v2701, 4294901760
    %v2833 = vsub.f32 %v2701, %v2832
    %v2834 = vand.u32 %v2833, 4294901760
    %v2835 = vsub.f32 %v2833, %v2834
    %v2836 = vand.u32 %v2835, 4294901760
    %2837 = vmatprep.mubr.f32.mxu0 %v2836
    %v2838 = vand.u32 %v2700, 4294901760
    %v2839 = vsub.f32 %v2700, %v2838
    %v2840 = vand.u32 %v2839, 4294901760
    %v2841 = vsub.f32 %v2839, %v2840
    %v2842 = vand.u32 %v2841, 4294901760
    %2843 = vmatmul.mubr.f32.gmra.mxu0 %v2842
    %v2844 = vpop.f32.mrf.mxu0
    %v2845 = vadd.f32 %v2692, %v2844
    %v2846 = vpop.f32.mrf.mxu0
    %v2847 = vadd.f32 %v2694, %v2846
    %2848 = vdwg.mxu0
    %v2849 = vand.u32 %v1307, 4294901760
    %v2850 = vsub.f32 %v1307, %v2849
    %v2851 = vand.u32 %v2850, 4294901760
    %v2852 = vsub.f32 %v2850, %v2851
    %v2853 = vand.u32 %v2852, 4294901760
    %2854 = vmatprep.subr.mxu0 %v2853
    %v2855 = vand.u32 %v1306, 4294901760
    %v2856 = vsub.f32 %v1306, %v2855
    %v2857 = vand.u32 %v2856, 4294901760
    %v2858 = vsub.f32 %v2856, %v2857
    %v2859 = vand.u32 %v2858, 4294901760
    %2860 = vmatpush1.msra.mxu0 %v2859
    %v2861 = vand.u32 %v1305, 4294901760
    %v2862 = vsub.f32 %v1305, %v2861
    %v2863 = vand.u32 %v2862, 4294901760
    %v2864 = vsub.f32 %v2862, %v2863
    %v2865 = vand.u32 %v2864, 4294901760
    %2866 = vmatprep.subr.mxu0 %v2865
    %v2867 = vand.u32 %v1304, 4294901760
    %v2868 = vsub.f32 %v1304, %v2867
    %v2869 = vand.u32 %v2868, 4294901760
    %v2870 = vsub.f32 %v2868, %v2869
    %v2871 = vand.u32 %v2870, 4294901760
    %2872 = vmatpush1.msra.mxu0 %v2871
    %v2873 = vand.u32 %v1303, 4294901760
    %v2874 = vsub.f32 %v1303, %v2873
    %v2875 = vand.u32 %v2874, 4294901760
    %v2876 = vsub.f32 %v2874, %v2875
    %v2877 = vand.u32 %v2876, 4294901760
    %2878 = vmatprep.subr.mxu0 %v2877
    %v2879 = vand.u32 %v1302, 4294901760
    %v2880 = vsub.f32 %v1302, %v2879
    %v2881 = vand.u32 %v2880, 4294901760
    %v2882 = vsub.f32 %v2880, %v2881
    %v2883 = vand.u32 %v2882, 4294901760
    %2884 = vmatpush1.msra.mxu0 %v2883
    %v2885 = vand.u32 %v1301, 4294901760
    %v2886 = vsub.f32 %v1301, %v2885
    %v2887 = vand.u32 %v2886, 4294901760
    %v2888 = vsub.f32 %v2886, %v2887
    %v2889 = vand.u32 %v2888, 4294901760
    %2890 = vmatprep.subr.mxu0 %v2889
    %v2891 = vand.u32 %v1300, 4294901760
    %v2892 = vsub.f32 %v1300, %v2891
    %v2893 = vand.u32 %v2892, 4294901760
    %v2894 = vsub.f32 %v2892, %v2893
    %v2895 = vand.u32 %v2894, 4294901760
    %2896 = vmatpush1.msra.mxu0 %v2895
    %v2897 = vand.u32 %v1299, 4294901760
    %v2898 = vsub.f32 %v1299, %v2897
    %v2899 = vand.u32 %v2898, 4294901760
    %v2900 = vsub.f32 %v2898, %v2899
    %v2901 = vand.u32 %v2900, 4294901760
    %2902 = vmatprep.subr.mxu0 %v2901
    %v2903 = vand.u32 %v1298, 4294901760
    %v2904 = vsub.f32 %v1298, %v2903
    %v2905 = vand.u32 %v2904, 4294901760
    %v2906 = vsub.f32 %v2904, %v2905
    %v2907 = vand.u32 %v2906, 4294901760
    %2908 = vmatpush1.msra.mxu0 %v2907
    %v2909 = vand.u32 %v1297, 4294901760
    %v2910 = vsub.f32 %v1297, %v2909
    %v2911 = vand.u32 %v2910, 4294901760
    %v2912 = vsub.f32 %v2910, %v2911
    %v2913 = vand.u32 %v2912, 4294901760
    %2914 = vmatprep.subr.mxu0 %v2913
    %v2915 = vand.u32 %v1296, 4294901760
    %v2916 = vsub.f32 %v1296, %v2915
    %v2917 = vand.u32 %v2916, 4294901760
    %v2918 = vsub.f32 %v2916, %v2917
    %v2919 = vand.u32 %v2918, 4294901760
    %2920 = vmatpush1.msra.mxu0 %v2919
    %v2921 = vand.u32 %v1295, 4294901760
    %v2922 = vsub.f32 %v1295, %v2921
    %v2923 = vand.u32 %v2922, 4294901760
    %v2924 = vsub.f32 %v2922, %v2923
    %v2925 = vand.u32 %v2924, 4294901760
    %2926 = vmatprep.subr.mxu0 %v2925
    %v2927 = vand.u32 %v1294, 4294901760
    %v2928 = vsub.f32 %v1294, %v2927
    %v2929 = vand.u32 %v2928, 4294901760
    %v2930 = vsub.f32 %v2928, %v2929
    %v2931 = vand.u32 %v2930, 4294901760
    %2932 = vmatpush1.msra.mxu0 %v2931
    %v2933 = vand.u32 %v1293, 4294901760
    %v2934 = vsub.f32 %v1293, %v2933
    %v2935 = vand.u32 %v2934, 4294901760
    %v2936 = vsub.f32 %v2934, %v2935
    %v2937 = vand.u32 %v2936, 4294901760
    %2938 = vmatprep.subr.mxu0 %v2937
    %v2939 = vand.u32 %v1292, 4294901760
    %v2940 = vsub.f32 %v1292, %v2939
    %v2941 = vand.u32 %v2940, 4294901760
    %v2942 = vsub.f32 %v2940, %v2941
    %v2943 = vand.u32 %v2942, 4294901760
    %2944 = vmatpush1.msra.mxu0 %v2943
    %v2945 = vand.u32 %v1291, 4294901760
    %v2946 = vsub.f32 %v1291, %v2945
    %v2947 = vand.u32 %v2946, 4294901760
    %v2948 = vsub.f32 %v2946, %v2947
    %v2949 = vand.u32 %v2948, 4294901760
    %2950 = vmatprep.subr.mxu0 %v2949
    %v2951 = vand.u32 %v1290, 4294901760
    %v2952 = vsub.f32 %v1290, %v2951
    %v2953 = vand.u32 %v2952, 4294901760
    %v2954 = vsub.f32 %v2952, %v2953
    %v2955 = vand.u32 %v2954, 4294901760
    %2956 = vmatpush1.msra.mxu0 %v2955
    %v2957 = vand.u32 %v1289, 4294901760
    %v2958 = vsub.f32 %v1289, %v2957
    %v2959 = vand.u32 %v2958, 4294901760
    %v2960 = vsub.f32 %v2958, %v2959
    %v2961 = vand.u32 %v2960, 4294901760
    %2962 = vmatprep.subr.mxu0 %v2961
    %v2963 = vand.u32 %v1288, 4294901760
    %v2964 = vsub.f32 %v1288, %v2963
    %v2965 = vand.u32 %v2964, 4294901760
    %v2966 = vsub.f32 %v2964, %v2965
    %v2967 = vand.u32 %v2966, 4294901760
    %2968 = vmatpush1.msra.mxu0 %v2967
    %v2969 = vand.u32 %v1287, 4294901760
    %v2970 = vsub.f32 %v1287, %v2969
    %v2971 = vand.u32 %v2970, 4294901760
    %v2972 = vsub.f32 %v2970, %v2971
    %v2973 = vand.u32 %v2972, 4294901760
    %2974 = vmatprep.subr.mxu0 %v2973
    %v2975 = vand.u32 %v1286, 4294901760
    %v2976 = vsub.f32 %v1286, %v2975
    %v2977 = vand.u32 %v2976, 4294901760
    %v2978 = vsub.f32 %v2976, %v2977
    %v2979 = vand.u32 %v2978, 4294901760
    %2980 = vmatpush1.msra.mxu0 %v2979
    %v2981 = vand.u32 %v1285, 4294901760
    %v2982 = vsub.f32 %v1285, %v2981
    %v2983 = vand.u32 %v2982, 4294901760
    %v2984 = vsub.f32 %v2982, %v2983
    %v2985 = vand.u32 %v2984, 4294901760
    %2986 = vmatprep.subr.mxu0 %v2985
    %v2987 = vand.u32 %v1284, 4294901760
    %v2988 = vsub.f32 %v1284, %v2987
    %v2989 = vand.u32 %v2988, 4294901760
    %v2990 = vsub.f32 %v2988, %v2989
    %v2991 = vand.u32 %v2990, 4294901760
    %2992 = vmatpush1.msra.mxu0 %v2991
    %v2993 = vand.u32 %v1283, 4294901760
    %v2994 = vsub.f32 %v1283, %v2993
    %v2995 = vand.u32 %v2994, 4294901760
    %v2996 = vsub.f32 %v2994, %v2995
    %v2997 = vand.u32 %v2996, 4294901760
    %2998 = vmatprep.subr.mxu0 %v2997
    %v2999 = vand.u32 %v1282, 4294901760
    %v3000 = vsub.f32 %v1282, %v2999
    %v3001 = vand.u32 %v3000, 4294901760
    %v3002 = vsub.f32 %v3000, %v3001
    %v3003 = vand.u32 %v3002, 4294901760
    %3004 = vmatpush1.msra.mxu0 %v3003
    %v3005 = vand.u32 %v1281, 4294901760
    %v3006 = vsub.f32 %v1281, %v3005
    %v3007 = vand.u32 %v3006, 4294901760
    %v3008 = vsub.f32 %v3006, %v3007
    %v3009 = vand.u32 %v3008, 4294901760
    %3010 = vmatprep.subr.mxu0 %v3009
    %v3011 = vand.u32 %v1280, 4294901760
    %v3012 = vsub.f32 %v1280, %v3011
    %v3013 = vand.u32 %v3012, 4294901760
    %v3014 = vsub.f32 %v3012, %v3013
    %v3015 = vand.u32 %v3014, 4294901760
    %3016 = vmatpush1.msra.mxu0 %v3015
    %v3017 = vand.u32 %v1279, 4294901760
    %v3018 = vsub.f32 %v1279, %v3017
    %v3019 = vand.u32 %v3018, 4294901760
    %v3020 = vsub.f32 %v3018, %v3019
    %v3021 = vand.u32 %v3020, 4294901760
    %3022 = vmatprep.subr.mxu0 %v3021
    %v3023 = vand.u32 %v1278, 4294901760
    %v3024 = vsub.f32 %v1278, %v3023
    %v3025 = vand.u32 %v3024, 4294901760
    %v3026 = vsub.f32 %v3024, %v3025
    %v3027 = vand.u32 %v3026, 4294901760
    %3028 = vmatpush1.msra.mxu0 %v3027
    %v3029 = vand.u32 %v1277, 4294901760
    %v3030 = vsub.f32 %v1277, %v3029
    %v3031 = vand.u32 %v3030, 4294901760
    %v3032 = vsub.f32 %v3030, %v3031
    %v3033 = vand.u32 %v3032, 4294901760
    %3034 = vmatprep.subr.mxu0 %v3033
    %v3035 = vand.u32 %v1276, 4294901760
    %v3036 = vsub.f32 %v1276, %v3035
    %v3037 = vand.u32 %v3036, 4294901760
    %v3038 = vsub.f32 %v3036, %v3037
    %v3039 = vand.u32 %v3038, 4294901760
    %3040 = vmatpush1.msra.mxu0 %v3039
    %v3041 = vand.u32 %v1339, 4294901760
    %v3042 = vsub.f32 %v1339, %v3041
    %v3043 = vand.u32 %v3042, 4294901760
    %v3044 = vsub.f32 %v3042, %v3043
    %v3045 = vand.u32 %v3044, 4294901760
    %3046 = vmatprep.subr.mxu0 %v3045
    %v3047 = vand.u32 %v1338, 4294901760
    %v3048 = vsub.f32 %v1338, %v3047
    %v3049 = vand.u32 %v3048, 4294901760
    %v3050 = vsub.f32 %v3048, %v3049
    %v3051 = vand.u32 %v3050, 4294901760
    %3052 = vmatpush2.msra.mxu0 %v3051
    %v3053 = vand.u32 %v1337, 4294901760
    %v3054 = vsub.f32 %v1337, %v3053
    %v3055 = vand.u32 %v3054, 4294901760
    %v3056 = vsub.f32 %v3054, %v3055
    %v3057 = vand.u32 %v3056, 4294901760
    %3058 = vmatprep.subr.mxu0 %v3057
    %v3059 = vand.u32 %v1336, 4294901760
    %v3060 = vsub.f32 %v1336, %v3059
    %v3061 = vand.u32 %v3060, 4294901760
    %v3062 = vsub.f32 %v3060, %v3061
    %v3063 = vand.u32 %v3062, 4294901760
    %3064 = vmatpush2.msra.mxu0 %v3063
    %v3065 = vand.u32 %v1335, 4294901760
    %v3066 = vsub.f32 %v1335, %v3065
    %v3067 = vand.u32 %v3066, 4294901760
    %v3068 = vsub.f32 %v3066, %v3067
    %v3069 = vand.u32 %v3068, 4294901760
    %3070 = vmatprep.subr.mxu0 %v3069
    %v3071 = vand.u32 %v1334, 4294901760
    %v3072 = vsub.f32 %v1334, %v3071
    %v3073 = vand.u32 %v3072, 4294901760
    %v3074 = vsub.f32 %v3072, %v3073
    %v3075 = vand.u32 %v3074, 4294901760
    %3076 = vmatpush2.msra.mxu0 %v3075
    %v3077 = vand.u32 %v1333, 4294901760
    %v3078 = vsub.f32 %v1333, %v3077
    %v3079 = vand.u32 %v3078, 4294901760
    %v3080 = vsub.f32 %v3078, %v3079
    %v3081 = vand.u32 %v3080, 4294901760
    %3082 = vmatprep.subr.mxu0 %v3081
    %v3083 = vand.u32 %v1332, 4294901760
    %v3084 = vsub.f32 %v1332, %v3083
    %v3085 = vand.u32 %v3084, 4294901760
    %v3086 = vsub.f32 %v3084, %v3085
    %v3087 = vand.u32 %v3086, 4294901760
    %3088 = vmatpush2.msra.mxu0 %v3087
    %v3089 = vand.u32 %v1331, 4294901760
    %v3090 = vsub.f32 %v1331, %v3089
    %v3091 = vand.u32 %v3090, 4294901760
    %v3092 = vsub.f32 %v3090, %v3091
    %v3093 = vand.u32 %v3092, 4294901760
    %3094 = vmatprep.subr.mxu0 %v3093
    %v3095 = vand.u32 %v1330, 4294901760
    %v3096 = vsub.f32 %v1330, %v3095
    %v3097 = vand.u32 %v3096, 4294901760
    %v3098 = vsub.f32 %v3096, %v3097
    %v3099 = vand.u32 %v3098, 4294901760
    %3100 = vmatpush2.msra.mxu0 %v3099
    %v3101 = vand.u32 %v1329, 4294901760
    %v3102 = vsub.f32 %v1329, %v3101
    %v3103 = vand.u32 %v3102, 4294901760
    %v3104 = vsub.f32 %v3102, %v3103
    %v3105 = vand.u32 %v3104, 4294901760
    %3106 = vmatprep.subr.mxu0 %v3105
    %v3107 = vand.u32 %v1328, 4294901760
    %v3108 = vsub.f32 %v1328, %v3107
    %v3109 = vand.u32 %v3108, 4294901760
    %v3110 = vsub.f32 %v3108, %v3109
    %v3111 = vand.u32 %v3110, 4294901760
    %3112 = vmatpush2.msra.mxu0 %v3111
    %v3113 = vand.u32 %v1327, 4294901760
    %v3114 = vsub.f32 %v1327, %v3113
    %v3115 = vand.u32 %v3114, 4294901760
    %v3116 = vsub.f32 %v3114, %v3115
    %v3117 = vand.u32 %v3116, 4294901760
    %3118 = vmatprep.subr.mxu0 %v3117
    %v3119 = vand.u32 %v1326, 4294901760
    %v3120 = vsub.f32 %v1326, %v3119
    %v3121 = vand.u32 %v3120, 4294901760
    %v3122 = vsub.f32 %v3120, %v3121
    %v3123 = vand.u32 %v3122, 4294901760
    %3124 = vmatpush2.msra.mxu0 %v3123
    %v3125 = vand.u32 %v1325, 4294901760
    %v3126 = vsub.f32 %v1325, %v3125
    %v3127 = vand.u32 %v3126, 4294901760
    %v3128 = vsub.f32 %v3126, %v3127
    %v3129 = vand.u32 %v3128, 4294901760
    %3130 = vmatprep.subr.mxu0 %v3129
    %v3131 = vand.u32 %v1324, 4294901760
    %v3132 = vsub.f32 %v1324, %v3131
    %v3133 = vand.u32 %v3132, 4294901760
    %v3134 = vsub.f32 %v3132, %v3133
    %v3135 = vand.u32 %v3134, 4294901760
    %3136 = vmatpush2.msra.mxu0 %v3135
    %v3137 = vand.u32 %v1323, 4294901760
    %v3138 = vsub.f32 %v1323, %v3137
    %v3139 = vand.u32 %v3138, 4294901760
    %v3140 = vsub.f32 %v3138, %v3139
    %v3141 = vand.u32 %v3140, 4294901760
    %3142 = vmatprep.subr.mxu0 %v3141
    %v3143 = vand.u32 %v1322, 4294901760
    %v3144 = vsub.f32 %v1322, %v3143
    %v3145 = vand.u32 %v3144, 4294901760
    %v3146 = vsub.f32 %v3144, %v3145
    %v3147 = vand.u32 %v3146, 4294901760
    %3148 = vmatpush2.msra.mxu0 %v3147
    %v3149 = vand.u32 %v1321, 4294901760
    %v3150 = vsub.f32 %v1321, %v3149
    %v3151 = vand.u32 %v3150, 4294901760
    %v3152 = vsub.f32 %v3150, %v3151
    %v3153 = vand.u32 %v3152, 4294901760
    %3154 = vmatprep.subr.mxu0 %v3153
    %v3155 = vand.u32 %v1320, 4294901760
    %v3156 = vsub.f32 %v1320, %v3155
    %v3157 = vand.u32 %v3156, 4294901760
    %v3158 = vsub.f32 %v3156, %v3157
    %v3159 = vand.u32 %v3158, 4294901760
    %3160 = vmatpush2.msra.mxu0 %v3159
    %v3161 = vand.u32 %v1319, 4294901760
    %v3162 = vsub.f32 %v1319, %v3161
    %v3163 = vand.u32 %v3162, 4294901760
    %v3164 = vsub.f32 %v3162, %v3163
    %v3165 = vand.u32 %v3164, 4294901760
    %3166 = vmatprep.subr.mxu0 %v3165
    %v3167 = vand.u32 %v1318, 4294901760
    %v3168 = vsub.f32 %v1318, %v3167
    %v3169 = vand.u32 %v3168, 4294901760
    %v3170 = vsub.f32 %v3168, %v3169
    %v3171 = vand.u32 %v3170, 4294901760
    %3172 = vmatpush2.msra.mxu0 %v3171
    %v3173 = vand.u32 %v1317, 4294901760
    %v3174 = vsub.f32 %v1317, %v3173
    %v3175 = vand.u32 %v3174, 4294901760
    %v3176 = vsub.f32 %v3174, %v3175
    %v3177 = vand.u32 %v3176, 4294901760
    %3178 = vmatprep.subr.mxu0 %v3177
    %v3179 = vand.u32 %v1316, 4294901760
    %v3180 = vsub.f32 %v1316, %v3179
    %v3181 = vand.u32 %v3180, 4294901760
    %v3182 = vsub.f32 %v3180, %v3181
    %v3183 = vand.u32 %v3182, 4294901760
    %3184 = vmatpush2.msra.mxu0 %v3183
    %v3185 = vand.u32 %v1315, 4294901760
    %v3186 = vsub.f32 %v1315, %v3185
    %v3187 = vand.u32 %v3186, 4294901760
    %v3188 = vsub.f32 %v3186, %v3187
    %v3189 = vand.u32 %v3188, 4294901760
    %3190 = vmatprep.subr.mxu0 %v3189
    %v3191 = vand.u32 %v1314, 4294901760
    %v3192 = vsub.f32 %v1314, %v3191
    %v3193 = vand.u32 %v3192, 4294901760
    %v3194 = vsub.f32 %v3192, %v3193
    %v3195 = vand.u32 %v3194, 4294901760
    %3196 = vmatpush2.msra.mxu0 %v3195
    %v3197 = vand.u32 %v1313, 4294901760
    %v3198 = vsub.f32 %v1313, %v3197
    %v3199 = vand.u32 %v3198, 4294901760
    %v3200 = vsub.f32 %v3198, %v3199
    %v3201 = vand.u32 %v3200, 4294901760
    %3202 = vmatprep.subr.mxu0 %v3201
    %v3203 = vand.u32 %v1312, 4294901760
    %v3204 = vsub.f32 %v1312, %v3203
    %v3205 = vand.u32 %v3204, 4294901760
    %v3206 = vsub.f32 %v3204, %v3205
    %v3207 = vand.u32 %v3206, 4294901760
    %3208 = vmatpush2.msra.mxu0 %v3207
    %v3209 = vand.u32 %v1311, 4294901760
    %v3210 = vsub.f32 %v1311, %v3209
    %v3211 = vand.u32 %v3210, 4294901760
    %v3212 = vsub.f32 %v3210, %v3211
    %v3213 = vand.u32 %v3212, 4294901760
    %3214 = vmatprep.subr.mxu0 %v3213
    %v3215 = vand.u32 %v1310, 4294901760
    %v3216 = vsub.f32 %v1310, %v3215
    %v3217 = vand.u32 %v3216, 4294901760
    %v3218 = vsub.f32 %v3216, %v3217
    %v3219 = vand.u32 %v3218, 4294901760
    %3220 = vmatpush2.msra.mxu0 %v3219
    %v3221 = vand.u32 %v1309, 4294901760
    %v3222 = vsub.f32 %v1309, %v3221
    %v3223 = vand.u32 %v3222, 4294901760
    %v3224 = vsub.f32 %v3222, %v3223
    %v3225 = vand.u32 %v3224, 4294901760
    %3226 = vmatprep.subr.mxu0 %v3225
    %v3227 = vand.u32 %v1308, 4294901760
    %v3228 = vsub.f32 %v1308, %v3227
    %v3229 = vand.u32 %v3228, 4294901760
    %v3230 = vsub.f32 %v3228, %v3229
    %v3231 = vand.u32 %v3230, 4294901760
    %3232 = vmatpush2.msra.mxu0 %v3231
    %v3233 = vand.u32 %v2701, 4294901760
    %3234 = vmatprep.mubr.f32.mxu0 %v3233
    %v3235 = vand.u32 %v2700, 4294901760
    %3236 = vmatmul.mubr.f32.gmra.mxu0 %v3235
    %v3237 = vpop.f32.mrf.mxu0
    %v3238 = vadd.f32 %v2845, %v3237
    %v3239 = vpop.f32.mrf.mxu0
    %v3240 = vadd.f32 %v2847, %v3239
    %3241 = vdwg.mxu0
    %v3242 = vand.u32 %v1307, 4294901760
    %v3243 = vsub.f32 %v1307, %v3242
    %3244 = vmatprep.subr.mxu0 %v3243
    %v3245 = vand.u32 %v1306, 4294901760
    %v3246 = vsub.f32 %v1306, %v3245
    %3247 = vmatpush1.msra.mxu0 %v3246
    %v3248 = vand.u32 %v1305, 4294901760
    %v3249 = vsub.f32 %v1305, %v3248
    %3250 = vmatprep.subr.mxu0 %v3249
    %v3251 = vand.u32 %v1304, 4294901760
    %v3252 = vsub.f32 %v1304, %v3251
    %3253 = vmatpush1.msra.mxu0 %v3252
    %v3254 = vand.u32 %v1303, 4294901760
    %v3255 = vsub.f32 %v1303, %v3254
    %3256 = vmatprep.subr.mxu0 %v3255
    %v3257 = vand.u32 %v1302, 4294901760
    %v3258 = vsub.f32 %v1302, %v3257
    %3259 = vmatpush1.msra.mxu0 %v3258
    %v3260 = vand.u32 %v1301, 4294901760
    %v3261 = vsub.f32 %v1301, %v3260
    %3262 = vmatprep.subr.mxu0 %v3261
    %v3263 = vand.u32 %v1300, 4294901760
    %v3264 = vsub.f32 %v1300, %v3263
    %3265 = vmatpush1.msra.mxu0 %v3264
    %v3266 = vand.u32 %v1299, 4294901760
    %v3267 = vsub.f32 %v1299, %v3266
    %3268 = vmatprep.subr.mxu0 %v3267
    %v3269 = vand.u32 %v1298, 4294901760
    %v3270 = vsub.f32 %v1298, %v3269
    %3271 = vmatpush1.msra.mxu0 %v3270
    %v3272 = vand.u32 %v1297, 4294901760
    %v3273 = vsub.f32 %v1297, %v3272
    %3274 = vmatprep.subr.mxu0 %v3273
    %v3275 = vand.u32 %v1296, 4294901760
    %v3276 = vsub.f32 %v1296, %v3275
    %3277 = vmatpush1.msra.mxu0 %v3276
    %v3278 = vand.u32 %v1295, 4294901760
    %v3279 = vsub.f32 %v1295, %v3278
    %3280 = vmatprep.subr.mxu0 %v3279
    %v3281 = vand.u32 %v1294, 4294901760
    %v3282 = vsub.f32 %v1294, %v3281
    %3283 = vmatpush1.msra.mxu0 %v3282
    %v3284 = vand.u32 %v1293, 4294901760
    %v3285 = vsub.f32 %v1293, %v3284
    %3286 = vmatprep.subr.mxu0 %v3285
    %v3287 = vand.u32 %v1292, 4294901760
    %v3288 = vsub.f32 %v1292, %v3287
    %3289 = vmatpush1.msra.mxu0 %v3288
    %v3290 = vand.u32 %v1291, 4294901760
    %v3291 = vsub.f32 %v1291, %v3290
    %3292 = vmatprep.subr.mxu0 %v3291
    %v3293 = vand.u32 %v1290, 4294901760
    %v3294 = vsub.f32 %v1290, %v3293
    %3295 = vmatpush1.msra.mxu0 %v3294
    %v3296 = vand.u32 %v1289, 4294901760
    %v3297 = vsub.f32 %v1289, %v3296
    %3298 = vmatprep.subr.mxu0 %v3297
    %v3299 = vand.u32 %v1288, 4294901760
    %v3300 = vsub.f32 %v1288, %v3299
    %3301 = vmatpush1.msra.mxu0 %v3300
    %v3302 = vand.u32 %v1287, 4294901760
    %v3303 = vsub.f32 %v1287, %v3302
    %3304 = vmatprep.subr.mxu0 %v3303
    %v3305 = vand.u32 %v1286, 4294901760
    %v3306 = vsub.f32 %v1286, %v3305
    %3307 = vmatpush1.msra.mxu0 %v3306
    %v3308 = vand.u32 %v1285, 4294901760
    %v3309 = vsub.f32 %v1285, %v3308
    %3310 = vmatprep.subr.mxu0 %v3309
    %v3311 = vand.u32 %v1284, 4294901760
    %v3312 = vsub.f32 %v1284, %v3311
    %3313 = vmatpush1.msra.mxu0 %v3312
    %v3314 = vand.u32 %v1283, 4294901760
    %v3315 = vsub.f32 %v1283, %v3314
    %3316 = vmatprep.subr.mxu0 %v3315
    %v3317 = vand.u32 %v1282, 4294901760
    %v3318 = vsub.f32 %v1282, %v3317
    %3319 = vmatpush1.msra.mxu0 %v3318
    %v3320 = vand.u32 %v1281, 4294901760
    %v3321 = vsub.f32 %v1281, %v3320
    %3322 = vmatprep.subr.mxu0 %v3321
    %v3323 = vand.u32 %v1280, 4294901760
    %v3324 = vsub.f32 %v1280, %v3323
    %3325 = vmatpush1.msra.mxu0 %v3324
    %v3326 = vand.u32 %v1279, 4294901760
    %v3327 = vsub.f32 %v1279, %v3326
    %3328 = vmatprep.subr.mxu0 %v3327
    %v3329 = vand.u32 %v1278, 4294901760
    %v3330 = vsub.f32 %v1278, %v3329
    %3331 = vmatpush1.msra.mxu0 %v3330
    %v3332 = vand.u32 %v1277, 4294901760
    %v3333 = vsub.f32 %v1277, %v3332
    %3334 = vmatprep.subr.mxu0 %v3333
    %v3335 = vand.u32 %v1276, 4294901760
    %v3336 = vsub.f32 %v1276, %v3335
    %3337 = vmatpush1.msra.mxu0 %v3336
    %v3338 = vand.u32 %v1339, 4294901760
    %v3339 = vsub.f32 %v1339, %v3338
    %3340 = vmatprep.subr.mxu0 %v3339
    %v3341 = vand.u32 %v1338, 4294901760
    %v3342 = vsub.f32 %v1338, %v3341
    %3343 = vmatpush2.msra.mxu0 %v3342
    %v3344 = vand.u32 %v1337, 4294901760
    %v3345 = vsub.f32 %v1337, %v3344
    %3346 = vmatprep.subr.mxu0 %v3345
    %v3347 = vand.u32 %v1336, 4294901760
    %v3348 = vsub.f32 %v1336, %v3347
    %3349 = vmatpush2.msra.mxu0 %v3348
    %v3350 = vand.u32 %v1335, 4294901760
    %v3351 = vsub.f32 %v1335, %v3350
    %3352 = vmatprep.subr.mxu0 %v3351
    %v3353 = vand.u32 %v1334, 4294901760
    %v3354 = vsub.f32 %v1334, %v3353
    %3355 = vmatpush2.msra.mxu0 %v3354
    %v3356 = vand.u32 %v1333, 4294901760
    %v3357 = vsub.f32 %v1333, %v3356
    %3358 = vmatprep.subr.mxu0 %v3357
    %v3359 = vand.u32 %v1332, 4294901760
    %v3360 = vsub.f32 %v1332, %v3359
    %3361 = vmatpush2.msra.mxu0 %v3360
    %v3362 = vand.u32 %v1331, 4294901760
    %v3363 = vsub.f32 %v1331, %v3362
    %3364 = vmatprep.subr.mxu0 %v3363
    %v3365 = vand.u32 %v1330, 4294901760
    %v3366 = vsub.f32 %v1330, %v3365
    %3367 = vmatpush2.msra.mxu0 %v3366
    %v3368 = vand.u32 %v1329, 4294901760
    %v3369 = vsub.f32 %v1329, %v3368
    %3370 = vmatprep.subr.mxu0 %v3369
    %v3371 = vand.u32 %v1328, 4294901760
    %v3372 = vsub.f32 %v1328, %v3371
    %3373 = vmatpush2.msra.mxu0 %v3372
    %v3374 = vand.u32 %v1327, 4294901760
    %v3375 = vsub.f32 %v1327, %v3374
    %3376 = vmatprep.subr.mxu0 %v3375
    %v3377 = vand.u32 %v1326, 4294901760
    %v3378 = vsub.f32 %v1326, %v3377
    %3379 = vmatpush2.msra.mxu0 %v3378
    %v3380 = vand.u32 %v1325, 4294901760
    %v3381 = vsub.f32 %v1325, %v3380
    %3382 = vmatprep.subr.mxu0 %v3381
    %v3383 = vand.u32 %v1324, 4294901760
    %v3384 = vsub.f32 %v1324, %v3383
    %3385 = vmatpush2.msra.mxu0 %v3384
    %v3386 = vand.u32 %v1323, 4294901760
    %v3387 = vsub.f32 %v1323, %v3386
    %3388 = vmatprep.subr.mxu0 %v3387
    %v3389 = vand.u32 %v1322, 4294901760
    %v3390 = vsub.f32 %v1322, %v3389
    %3391 = vmatpush2.msra.mxu0 %v3390
    %v3392 = vand.u32 %v1321, 4294901760
    %v3393 = vsub.f32 %v1321, %v3392
    %3394 = vmatprep.subr.mxu0 %v3393
    %v3395 = vand.u32 %v1320, 4294901760
    %v3396 = vsub.f32 %v1320, %v3395
    %3397 = vmatpush2.msra.mxu0 %v3396
    %v3398 = vand.u32 %v1319, 4294901760
    %v3399 = vsub.f32 %v1319, %v3398
    %3400 = vmatprep.subr.mxu0 %v3399
    %v3401 = vand.u32 %v1318, 4294901760
    %v3402 = vsub.f32 %v1318, %v3401
    %3403 = vmatpush2.msra.mxu0 %v3402
    %v3404 = vand.u32 %v1317, 4294901760
    %v3405 = vsub.f32 %v1317, %v3404
    %3406 = vmatprep.subr.mxu0 %v3405
    %v3407 = vand.u32 %v1316, 4294901760
    %v3408 = vsub.f32 %v1316, %v3407
    %3409 = vmatpush2.msra.mxu0 %v3408
    %v3410 = vand.u32 %v1315, 4294901760
    %v3411 = vsub.f32 %v1315, %v3410
    %3412 = vmatprep.subr.mxu0 %v3411
    %v3413 = vand.u32 %v1314, 4294901760
    %v3414 = vsub.f32 %v1314, %v3413
    %3415 = vmatpush2.msra.mxu0 %v3414
    %v3416 = vand.u32 %v1313, 4294901760
    %v3417 = vsub.f32 %v1313, %v3416
    %3418 = vmatprep.subr.mxu0 %v3417
    %v3419 = vand.u32 %v1312, 4294901760
    %v3420 = vsub.f32 %v1312, %v3419
    %3421 = vmatpush2.msra.mxu0 %v3420
    %v3422 = vand.u32 %v1311, 4294901760
    %v3423 = vsub.f32 %v1311, %v3422
    %3424 = vmatprep.subr.mxu0 %v3423
    %v3425 = vand.u32 %v1310, 4294901760
    %v3426 = vsub.f32 %v1310, %v3425
    %3427 = vmatpush2.msra.mxu0 %v3426
    %v3428 = vand.u32 %v1309, 4294901760
    %v3429 = vsub.f32 %v1309, %v3428
    %3430 = vmatprep.subr.mxu0 %v3429
    %v3431 = vand.u32 %v1308, 4294901760
    %v3432 = vsub.f32 %v1308, %v3431
    %3433 = vmatpush2.msra.mxu0 %v3432
    %v3434 = vand.u32 %v2701, 4294901760
    %v3435 = vsub.f32 %v2701, %v3434
    %3436 = vmatprep.mubr.f32.mxu0 %v3435
    %v3437 = vand.u32 %v2700, 4294901760
    %v3438 = vsub.f32 %v2700, %v3437
    %3439 = vmatmul.mubr.f32.gmra.mxu0 %v3438
    %v3440 = vpop.f32.mrf.mxu0
    %v3441 = vadd.f32 %v3238, %v3440
    %v3442 = vpop.f32.mrf.mxu0
    %v3443 = vadd.f32 %v3240, %v3442
    %3444 = vdwg.mxu0
    %v3445 = vand.u32 %v1307, 4294901760
    %3446 = vmatprep.subr.mxu0 %v3445
    %v3447 = vand.u32 %v1306, 4294901760
    %3448 = vmatpush1.msra.mxu0 %v3447
    %v3449 = vand.u32 %v1305, 4294901760
    %3450 = vmatprep.subr.mxu0 %v3449
    %v3451 = vand.u32 %v1304, 4294901760
    %3452 = vmatpush1.msra.mxu0 %v3451
    %v3453 = vand.u32 %v1303, 4294901760
    %3454 = vmatprep.subr.mxu0 %v3453
    %v3455 = vand.u32 %v1302, 4294901760
    %3456 = vmatpush1.msra.mxu0 %v3455
    %v3457 = vand.u32 %v1301, 4294901760
    %3458 = vmatprep.subr.mxu0 %v3457
    %v3459 = vand.u32 %v1300, 4294901760
    %3460 = vmatpush1.msra.mxu0 %v3459
    %v3461 = vand.u32 %v1299, 4294901760
    %3462 = vmatprep.subr.mxu0 %v3461
    %v3463 = vand.u32 %v1298, 4294901760
    %3464 = vmatpush1.msra.mxu0 %v3463
    %v3465 = vand.u32 %v1297, 4294901760
    %3466 = vmatprep.subr.mxu0 %v3465
    %v3467 = vand.u32 %v1296, 4294901760
    %3468 = vmatpush1.msra.mxu0 %v3467
    %v3469 = vand.u32 %v1295, 4294901760
    %3470 = vmatprep.subr.mxu0 %v3469
    %v3471 = vand.u32 %v1294, 4294901760
    %3472 = vmatpush1.msra.mxu0 %v3471
    %v3473 = vand.u32 %v1293, 4294901760
    %3474 = vmatprep.subr.mxu0 %v3473
    %v3475 = vand.u32 %v1292, 4294901760
    %3476 = vmatpush1.msra.mxu0 %v3475
    %v3477 = vand.u32 %v1291, 4294901760
    %3478 = vmatprep.subr.mxu0 %v3477
    %v3479 = vand.u32 %v1290, 4294901760
    %3480 = vmatpush1.msra.mxu0 %v3479
    %v3481 = vand.u32 %v1289, 4294901760
    %3482 = vmatprep.subr.mxu0 %v3481
    %v3483 = vand.u32 %v1288, 4294901760
    %3484 = vmatpush1.msra.mxu0 %v3483
    %v3485 = vand.u32 %v1287, 4294901760
    %3486 = vmatprep.subr.mxu0 %v3485
    %v3487 = vand.u32 %v1286, 4294901760
    %3488 = vmatpush1.msra.mxu0 %v3487
    %v3489 = vand.u32 %v1285, 4294901760
    %3490 = vmatprep.subr.mxu0 %v3489
    %v3491 = vand.u32 %v1284, 4294901760
    %3492 = vmatpush1.msra.mxu0 %v3491
    %v3493 = vand.u32 %v1283, 4294901760
    %3494 = vmatprep.subr.mxu0 %v3493
    %v3495 = vand.u32 %v1282, 4294901760
    %3496 = vmatpush1.msra.mxu0 %v3495
    %v3497 = vand.u32 %v1281, 4294901760
    %3498 = vmatprep.subr.mxu0 %v3497
    %v3499 = vand.u32 %v1280, 4294901760
    %3500 = vmatpush1.msra.mxu0 %v3499
    %v3501 = vand.u32 %v1279, 4294901760
    %3502 = vmatprep.subr.mxu0 %v3501
    %v3503 = vand.u32 %v1278, 4294901760
    %3504 = vmatpush1.msra.mxu0 %v3503
    %v3505 = vand.u32 %v1277, 4294901760
    %3506 = vmatprep.subr.mxu0 %v3505
    %v3507 = vand.u32 %v1276, 4294901760
    %3508 = vmatpush1.msra.mxu0 %v3507
    %v3509 = vand.u32 %v1339, 4294901760
    %3510 = vmatprep.subr.mxu0 %v3509
    %v3511 = vand.u32 %v1338, 4294901760
    %3512 = vmatpush2.msra.mxu0 %v3511
    %v3513 = vand.u32 %v1337, 4294901760
    %3514 = vmatprep.subr.mxu0 %v3513
    %v3515 = vand.u32 %v1336, 4294901760
    %3516 = vmatpush2.msra.mxu0 %v3515
    %v3517 = vand.u32 %v1335, 4294901760
    %3518 = vmatprep.subr.mxu0 %v3517
    %v3519 = vand.u32 %v1334, 4294901760
    %3520 = vmatpush2.msra.mxu0 %v3519
    %v3521 = vand.u32 %v1333, 4294901760
    %3522 = vmatprep.subr.mxu0 %v3521
    %v3523 = vand.u32 %v1332, 4294901760
    %3524 = vmatpush2.msra.mxu0 %v3523
    %v3525 = vand.u32 %v1331, 4294901760
    %3526 = vmatprep.subr.mxu0 %v3525
    %v3527 = vand.u32 %v1330, 4294901760
    %3528 = vmatpush2.msra.mxu0 %v3527
    %v3529 = vand.u32 %v1329, 4294901760
    %3530 = vmatprep.subr.mxu0 %v3529
    %v3531 = vand.u32 %v1328, 4294901760
    %3532 = vmatpush2.msra.mxu0 %v3531
    %v3533 = vand.u32 %v1327, 4294901760
    %3534 = vmatprep.subr.mxu0 %v3533
    %v3535 = vand.u32 %v1326, 4294901760
    %3536 = vmatpush2.msra.mxu0 %v3535
    %v3537 = vand.u32 %v1325, 4294901760
    %3538 = vmatprep.subr.mxu0 %v3537
    %v3539 = vand.u32 %v1324, 4294901760
    %3540 = vmatpush2.msra.mxu0 %v3539
    %v3541 = vand.u32 %v1323, 4294901760
    %3542 = vmatprep.subr.mxu0 %v3541
    %v3543 = vand.u32 %v1322, 4294901760
    %3544 = vmatpush2.msra.mxu0 %v3543
    %v3545 = vand.u32 %v1321, 4294901760
    %3546 = vmatprep.subr.mxu0 %v3545
    %v3547 = vand.u32 %v1320, 4294901760
    %3548 = vmatpush2.msra.mxu0 %v3547
    %v3549 = vand.u32 %v1319, 4294901760
    %3550 = vmatprep.subr.mxu0 %v3549
    %v3551 = vand.u32 %v1318, 4294901760
    %3552 = vmatpush2.msra.mxu0 %v3551
    %v3553 = vand.u32 %v1317, 4294901760
    %3554 = vmatprep.subr.mxu0 %v3553
    %v3555 = vand.u32 %v1316, 4294901760
    %3556 = vmatpush2.msra.mxu0 %v3555
    %v3557 = vand.u32 %v1315, 4294901760
    %3558 = vmatprep.subr.mxu0 %v3557
    %v3559 = vand.u32 %v1314, 4294901760
    %3560 = vmatpush2.msra.mxu0 %v3559
    %v3561 = vand.u32 %v1313, 4294901760
    %3562 = vmatprep.subr.mxu0 %v3561
    %v3563 = vand.u32 %v1312, 4294901760
    %3564 = vmatpush2.msra.mxu0 %v3563
    %v3565 = vand.u32 %v1311, 4294901760
    %3566 = vmatprep.subr.mxu0 %v3565
    %v3567 = vand.u32 %v1310, 4294901760
    %3568 = vmatpush2.msra.mxu0 %v3567
    %v3569 = vand.u32 %v1309, 4294901760
    %3570 = vmatprep.subr.mxu0 %v3569
    %v3571 = vand.u32 %v1308, 4294901760
    %3572 = vmatpush2.msra.mxu0 %v3571
    %v3573 = vand.u32 %v2701, 4294901760
    %v3574 = vsub.f32 %v2701, %v3573
    %v3575 = vand.u32 %v3574, 4294901760
    %3576 = vmatprep.mubr.f32.mxu0 %v3575
    %v3577 = vand.u32 %v2700, 4294901760
    %v3578 = vsub.f32 %v2700, %v3577
    %v3579 = vand.u32 %v3578, 4294901760
    %3580 = vmatmul.mubr.f32.gmra.mxu0 %v3579
    %v3581 = vpop.f32.mrf.mxu0
    %v3582 = vadd.f32 %v3441, %v3581
    %v3583 = vpop.f32.mrf.mxu0
    %v3584 = vadd.f32 %v3443, %v3583
    %3585 = vdwg.mxu0
    %v3586 = vand.u32 %v1307, 4294901760
    %v3587 = vsub.f32 %v1307, %v3586
    %v3588 = vand.u32 %v3587, 4294901760
    %3589 = vmatprep.subr.mxu0 %v3588
    %v3590 = vand.u32 %v1306, 4294901760
    %v3591 = vsub.f32 %v1306, %v3590
    %v3592 = vand.u32 %v3591, 4294901760
    %3593 = vmatpush1.msra.mxu0 %v3592
    %v3594 = vand.u32 %v1305, 4294901760
    %v3595 = vsub.f32 %v1305, %v3594
    %v3596 = vand.u32 %v3595, 4294901760
    %3597 = vmatprep.subr.mxu0 %v3596
    %v3598 = vand.u32 %v1304, 4294901760
    %v3599 = vsub.f32 %v1304, %v3598
    %v3600 = vand.u32 %v3599, 4294901760
    %3601 = vmatpush1.msra.mxu0 %v3600
    %v3602 = vand.u32 %v1303, 4294901760
    %v3603 = vsub.f32 %v1303, %v3602
    %v3604 = vand.u32 %v3603, 4294901760
    %3605 = vmatprep.subr.mxu0 %v3604
    %v3606 = vand.u32 %v1302, 4294901760
    %v3607 = vsub.f32 %v1302, %v3606
    %v3608 = vand.u32 %v3607, 4294901760
    %3609 = vmatpush1.msra.mxu0 %v3608
    %v3610 = vand.u32 %v1301, 4294901760
    %v3611 = vsub.f32 %v1301, %v3610
    %v3612 = vand.u32 %v3611, 4294901760
    %3613 = vmatprep.subr.mxu0 %v3612
    %v3614 = vand.u32 %v1300, 4294901760
    %v3615 = vsub.f32 %v1300, %v3614
    %v3616 = vand.u32 %v3615, 4294901760
    %3617 = vmatpush1.msra.mxu0 %v3616
    %v3618 = vand.u32 %v1299, 4294901760
    %v3619 = vsub.f32 %v1299, %v3618
    %v3620 = vand.u32 %v3619, 4294901760
    %3621 = vmatprep.subr.mxu0 %v3620
    %v3622 = vand.u32 %v1298, 4294901760
    %v3623 = vsub.f32 %v1298, %v3622
    %v3624 = vand.u32 %v3623, 4294901760
    %3625 = vmatpush1.msra.mxu0 %v3624
    %v3626 = vand.u32 %v1297, 4294901760
    %v3627 = vsub.f32 %v1297, %v3626
    %v3628 = vand.u32 %v3627, 4294901760
    %3629 = vmatprep.subr.mxu0 %v3628
    %v3630 = vand.u32 %v1296, 4294901760
    %v3631 = vsub.f32 %v1296, %v3630
    %v3632 = vand.u32 %v3631, 4294901760
    %3633 = vmatpush1.msra.mxu0 %v3632
    %v3634 = vand.u32 %v1295, 4294901760
    %v3635 = vsub.f32 %v1295, %v3634
    %v3636 = vand.u32 %v3635, 4294901760
    %3637 = vmatprep.subr.mxu0 %v3636
    %v3638 = vand.u32 %v1294, 4294901760
    %v3639 = vsub.f32 %v1294, %v3638
    %v3640 = vand.u32 %v3639, 4294901760
    %3641 = vmatpush1.msra.mxu0 %v3640
    %v3642 = vand.u32 %v1293, 4294901760
    %v3643 = vsub.f32 %v1293, %v3642
    %v3644 = vand.u32 %v3643, 4294901760
    %3645 = vmatprep.subr.mxu0 %v3644
    %v3646 = vand.u32 %v1292, 4294901760
    %v3647 = vsub.f32 %v1292, %v3646
    %v3648 = vand.u32 %v3647, 4294901760
    %3649 = vmatpush1.msra.mxu0 %v3648
    %v3650 = vand.u32 %v1291, 4294901760
    %v3651 = vsub.f32 %v1291, %v3650
    %v3652 = vand.u32 %v3651, 4294901760
    %3653 = vmatprep.subr.mxu0 %v3652
    %v3654 = vand.u32 %v1290, 4294901760
    %v3655 = vsub.f32 %v1290, %v3654
    %v3656 = vand.u32 %v3655, 4294901760
    %3657 = vmatpush1.msra.mxu0 %v3656
    %v3658 = vand.u32 %v1289, 4294901760
    %v3659 = vsub.f32 %v1289, %v3658
    %v3660 = vand.u32 %v3659, 4294901760
    %3661 = vmatprep.subr.mxu0 %v3660
    %v3662 = vand.u32 %v1288, 4294901760
    %v3663 = vsub.f32 %v1288, %v3662
    %v3664 = vand.u32 %v3663, 4294901760
    %3665 = vmatpush1.msra.mxu0 %v3664
    %v3666 = vand.u32 %v1287, 4294901760
    %v3667 = vsub.f32 %v1287, %v3666
    %v3668 = vand.u32 %v3667, 4294901760
    %3669 = vmatprep.subr.mxu0 %v3668
    %v3670 = vand.u32 %v1286, 4294901760
    %v3671 = vsub.f32 %v1286, %v3670
    %v3672 = vand.u32 %v3671, 4294901760
    %3673 = vmatpush1.msra.mxu0 %v3672
    %v3674 = vand.u32 %v1285, 4294901760
    %v3675 = vsub.f32 %v1285, %v3674
    %v3676 = vand.u32 %v3675, 4294901760
    %3677 = vmatprep.subr.mxu0 %v3676
    %v3678 = vand.u32 %v1284, 4294901760
    %v3679 = vsub.f32 %v1284, %v3678
    %v3680 = vand.u32 %v3679, 4294901760
    %3681 = vmatpush1.msra.mxu0 %v3680
    %v3682 = vand.u32 %v1283, 4294901760
    %v3683 = vsub.f32 %v1283, %v3682
    %v3684 = vand.u32 %v3683, 4294901760
    %3685 = vmatprep.subr.mxu0 %v3684
    %v3686 = vand.u32 %v1282, 4294901760
    %v3687 = vsub.f32 %v1282, %v3686
    %v3688 = vand.u32 %v3687, 4294901760
    %3689 = vmatpush1.msra.mxu0 %v3688
    %v3690 = vand.u32 %v1281, 4294901760
    %v3691 = vsub.f32 %v1281, %v3690
    %v3692 = vand.u32 %v3691, 4294901760
    %3693 = vmatprep.subr.mxu0 %v3692
    %v3694 = vand.u32 %v1280, 4294901760
    %v3695 = vsub.f32 %v1280, %v3694
    %v3696 = vand.u32 %v3695, 4294901760
    %3697 = vmatpush1.msra.mxu0 %v3696
    %v3698 = vand.u32 %v1279, 4294901760
    %v3699 = vsub.f32 %v1279, %v3698
    %v3700 = vand.u32 %v3699, 4294901760
    %3701 = vmatprep.subr.mxu0 %v3700
    %v3702 = vand.u32 %v1278, 4294901760
    %v3703 = vsub.f32 %v1278, %v3702
    %v3704 = vand.u32 %v3703, 4294901760
    %3705 = vmatpush1.msra.mxu0 %v3704
    %v3706 = vand.u32 %v1277, 4294901760
    %v3707 = vsub.f32 %v1277, %v3706
    %v3708 = vand.u32 %v3707, 4294901760
    %3709 = vmatprep.subr.mxu0 %v3708
    %v3710 = vand.u32 %v1276, 4294901760
    %v3711 = vsub.f32 %v1276, %v3710
    %v3712 = vand.u32 %v3711, 4294901760
    %3713 = vmatpush1.msra.mxu0 %v3712
    %v3714 = vand.u32 %v1339, 4294901760
    %v3715 = vsub.f32 %v1339, %v3714
    %v3716 = vand.u32 %v3715, 4294901760
    %3717 = vmatprep.subr.mxu0 %v3716
    %v3718 = vand.u32 %v1338, 4294901760
    %v3719 = vsub.f32 %v1338, %v3718
    %v3720 = vand.u32 %v3719, 4294901760
    %3721 = vmatpush2.msra.mxu0 %v3720
    %v3722 = vand.u32 %v1337, 4294901760
    %v3723 = vsub.f32 %v1337, %v3722
    %v3724 = vand.u32 %v3723, 4294901760
    %3725 = vmatprep.subr.mxu0 %v3724
    %v3726 = vand.u32 %v1336, 4294901760
    %v3727 = vsub.f32 %v1336, %v3726
    %v3728 = vand.u32 %v3727, 4294901760
    %3729 = vmatpush2.msra.mxu0 %v3728
    %v3730 = vand.u32 %v1335, 4294901760
    %v3731 = vsub.f32 %v1335, %v3730
    %v3732 = vand.u32 %v3731, 4294901760
    %3733 = vmatprep.subr.mxu0 %v3732
    %v3734 = vand.u32 %v1334, 4294901760
    %v3735 = vsub.f32 %v1334, %v3734
    %v3736 = vand.u32 %v3735, 4294901760
    %3737 = vmatpush2.msra.mxu0 %v3736
    %v3738 = vand.u32 %v1333, 4294901760
    %v3739 = vsub.f32 %v1333, %v3738
    %v3740 = vand.u32 %v3739, 4294901760
    %3741 = vmatprep.subr.mxu0 %v3740
    %v3742 = vand.u32 %v1332, 4294901760
    %v3743 = vsub.f32 %v1332, %v3742
    %v3744 = vand.u32 %v3743, 4294901760
    %3745 = vmatpush2.msra.mxu0 %v3744
    %v3746 = vand.u32 %v1331, 4294901760
    %v3747 = vsub.f32 %v1331, %v3746
    %v3748 = vand.u32 %v3747, 4294901760
    %3749 = vmatprep.subr.mxu0 %v3748
    %v3750 = vand.u32 %v1330, 4294901760
    %v3751 = vsub.f32 %v1330, %v3750
    %v3752 = vand.u32 %v3751, 4294901760
    %3753 = vmatpush2.msra.mxu0 %v3752
    %v3754 = vand.u32 %v1329, 4294901760
    %v3755 = vsub.f32 %v1329, %v3754
    %v3756 = vand.u32 %v3755, 4294901760
    %3757 = vmatprep.subr.mxu0 %v3756
    %v3758 = vand.u32 %v1328, 4294901760
    %v3759 = vsub.f32 %v1328, %v3758
    %v3760 = vand.u32 %v3759, 4294901760
    %3761 = vmatpush2.msra.mxu0 %v3760
    %v3762 = vand.u32 %v1327, 4294901760
    %v3763 = vsub.f32 %v1327, %v3762
    %v3764 = vand.u32 %v3763, 4294901760
    %3765 = vmatprep.subr.mxu0 %v3764
    %v3766 = vand.u32 %v1326, 4294901760
    %v3767 = vsub.f32 %v1326, %v3766
    %v3768 = vand.u32 %v3767, 4294901760
    %3769 = vmatpush2.msra.mxu0 %v3768
    %v3770 = vand.u32 %v1325, 4294901760
    %v3771 = vsub.f32 %v1325, %v3770
    %v3772 = vand.u32 %v3771, 4294901760
    %3773 = vmatprep.subr.mxu0 %v3772
    %v3774 = vand.u32 %v1324, 4294901760
    %v3775 = vsub.f32 %v1324, %v3774
    %v3776 = vand.u32 %v3775, 4294901760
    %3777 = vmatpush2.msra.mxu0 %v3776
    %v3778 = vand.u32 %v1323, 4294901760
    %v3779 = vsub.f32 %v1323, %v3778
    %v3780 = vand.u32 %v3779, 4294901760
    %3781 = vmatprep.subr.mxu0 %v3780
    %v3782 = vand.u32 %v1322, 4294901760
    %v3783 = vsub.f32 %v1322, %v3782
    %v3784 = vand.u32 %v3783, 4294901760
    %3785 = vmatpush2.msra.mxu0 %v3784
    %v3786 = vand.u32 %v1321, 4294901760
    %v3787 = vsub.f32 %v1321, %v3786
    %v3788 = vand.u32 %v3787, 4294901760
    %3789 = vmatprep.subr.mxu0 %v3788
    %v3790 = vand.u32 %v1320, 4294901760
    %v3791 = vsub.f32 %v1320, %v3790
    %v3792 = vand.u32 %v3791, 4294901760
    %3793 = vmatpush2.msra.mxu0 %v3792
    %v3794 = vand.u32 %v1319, 4294901760
    %v3795 = vsub.f32 %v1319, %v3794
    %v3796 = vand.u32 %v3795, 4294901760
    %3797 = vmatprep.subr.mxu0 %v3796
    %v3798 = vand.u32 %v1318, 4294901760
    %v3799 = vsub.f32 %v1318, %v3798
    %v3800 = vand.u32 %v3799, 4294901760
    %3801 = vmatpush2.msra.mxu0 %v3800
    %v3802 = vand.u32 %v1317, 4294901760
    %v3803 = vsub.f32 %v1317, %v3802
    %v3804 = vand.u32 %v3803, 4294901760
    %3805 = vmatprep.subr.mxu0 %v3804
    %v3806 = vand.u32 %v1316, 4294901760
    %v3807 = vsub.f32 %v1316, %v3806
    %v3808 = vand.u32 %v3807, 4294901760
    %3809 = vmatpush2.msra.mxu0 %v3808
    %v3810 = vand.u32 %v1315, 4294901760
    %v3811 = vsub.f32 %v1315, %v3810
    %v3812 = vand.u32 %v3811, 4294901760
    %3813 = vmatprep.subr.mxu0 %v3812
    %v3814 = vand.u32 %v1314, 4294901760
    %v3815 = vsub.f32 %v1314, %v3814
    %v3816 = vand.u32 %v3815, 4294901760
    %3817 = vmatpush2.msra.mxu0 %v3816
    %v3818 = vand.u32 %v1313, 4294901760
    %v3819 = vsub.f32 %v1313, %v3818
    %v3820 = vand.u32 %v3819, 4294901760
    %3821 = vmatprep.subr.mxu0 %v3820
    %v3822 = vand.u32 %v1312, 4294901760
    %v3823 = vsub.f32 %v1312, %v3822
    %v3824 = vand.u32 %v3823, 4294901760
    %3825 = vmatpush2.msra.mxu0 %v3824
    %v3826 = vand.u32 %v1311, 4294901760
    %v3827 = vsub.f32 %v1311, %v3826
    %v3828 = vand.u32 %v3827, 4294901760
    %3829 = vmatprep.subr.mxu0 %v3828
    %v3830 = vand.u32 %v1310, 4294901760
    %v3831 = vsub.f32 %v1310, %v3830
    %v3832 = vand.u32 %v3831, 4294901760
    %3833 = vmatpush2.msra.mxu0 %v3832
    %v3834 = vand.u32 %v1309, 4294901760
    %v3835 = vsub.f32 %v1309, %v3834
    %v3836 = vand.u32 %v3835, 4294901760
    %3837 = vmatprep.subr.mxu0 %v3836
    %v3838 = vand.u32 %v1308, 4294901760
    %v3839 = vsub.f32 %v1308, %v3838
    %v3840 = vand.u32 %v3839, 4294901760
    %3841 = vmatpush2.msra.mxu0 %v3840
    %v3842 = vand.u32 %v2701, 4294901760
    %3843 = vmatprep.mubr.f32.mxu0 %v3842
    %v3844 = vand.u32 %v2700, 4294901760
    %3845 = vmatmul.mubr.f32.gmra.mxu0 %v3844
    %v3846 = vpop.f32.mrf.mxu0
    %v3847 = vadd.f32 %v3582, %v3846
    %v3848 = vpop.f32.mrf.mxu0
    %v3849 = vadd.f32 %v3584, %v3848
    %3850 = vdwg.mxu0
    %v3851 = vand.u32 %v1307, 4294901760
    %3852 = vmatprep.subr.mxu0 %v3851
    %v3853 = vand.u32 %v1306, 4294901760
    %3854 = vmatpush1.msra.mxu0 %v3853
    %v3855 = vand.u32 %v1305, 4294901760
    %3856 = vmatprep.subr.mxu0 %v3855
    %v3857 = vand.u32 %v1304, 4294901760
    %3858 = vmatpush1.msra.mxu0 %v3857
    %v3859 = vand.u32 %v1303, 4294901760
    %3860 = vmatprep.subr.mxu0 %v3859
    %v3861 = vand.u32 %v1302, 4294901760
    %3862 = vmatpush1.msra.mxu0 %v3861
    %v3863 = vand.u32 %v1301, 4294901760
    %3864 = vmatprep.subr.mxu0 %v3863
    %v3865 = vand.u32 %v1300, 4294901760
    %3866 = vmatpush1.msra.mxu0 %v3865
    %v3867 = vand.u32 %v1299, 4294901760
    %3868 = vmatprep.subr.mxu0 %v3867
    %v3869 = vand.u32 %v1298, 4294901760
    %3870 = vmatpush1.msra.mxu0 %v3869
    %v3871 = vand.u32 %v1297, 4294901760
    %3872 = vmatprep.subr.mxu0 %v3871
    %v3873 = vand.u32 %v1296, 4294901760
    %3874 = vmatpush1.msra.mxu0 %v3873
    %v3875 = vand.u32 %v1295, 4294901760
    %3876 = vmatprep.subr.mxu0 %v3875
    %v3877 = vand.u32 %v1294, 4294901760
    %3878 = vmatpush1.msra.mxu0 %v3877
    %v3879 = vand.u32 %v1293, 4294901760
    %3880 = vmatprep.subr.mxu0 %v3879
    %v3881 = vand.u32 %v1292, 4294901760
    %3882 = vmatpush1.msra.mxu0 %v3881
    %v3883 = vand.u32 %v1291, 4294901760
    %3884 = vmatprep.subr.mxu0 %v3883
    %v3885 = vand.u32 %v1290, 4294901760
    %3886 = vmatpush1.msra.mxu0 %v3885
    %v3887 = vand.u32 %v1289, 4294901760
    %3888 = vmatprep.subr.mxu0 %v3887
    %v3889 = vand.u32 %v1288, 4294901760
    %3890 = vmatpush1.msra.mxu0 %v3889
    %v3891 = vand.u32 %v1287, 4294901760
    %3892 = vmatprep.subr.mxu0 %v3891
    %v3893 = vand.u32 %v1286, 4294901760
    %3894 = vmatpush1.msra.mxu0 %v3893
    %v3895 = vand.u32 %v1285, 4294901760
    %3896 = vmatprep.subr.mxu0 %v3895
    %v3897 = vand.u32 %v1284, 4294901760
    %3898 = vmatpush1.msra.mxu0 %v3897
    %v3899 = vand.u32 %v1283, 4294901760
    %3900 = vmatprep.subr.mxu0 %v3899
    %v3901 = vand.u32 %v1282, 4294901760
    %3902 = vmatpush1.msra.mxu0 %v3901
    %v3903 = vand.u32 %v1281, 4294901760
    %3904 = vmatprep.subr.mxu0 %v3903
    %v3905 = vand.u32 %v1280, 4294901760
    %3906 = vmatpush1.msra.mxu0 %v3905
    %v3907 = vand.u32 %v1279, 4294901760
    %3908 = vmatprep.subr.mxu0 %v3907
    %v3909 = vand.u32 %v1278, 4294901760
    %3910 = vmatpush1.msra.mxu0 %v3909
    %v3911 = vand.u32 %v1277, 4294901760
    %3912 = vmatprep.subr.mxu0 %v3911
    %v3913 = vand.u32 %v1276, 4294901760
    %3914 = vmatpush1.msra.mxu0 %v3913
    %v3915 = vand.u32 %v1339, 4294901760
    %3916 = vmatprep.subr.mxu0 %v3915
    %v3917 = vand.u32 %v1338, 4294901760
    %3918 = vmatpush2.msra.mxu0 %v3917
    %v3919 = vand.u32 %v1337, 4294901760
    %3920 = vmatprep.subr.mxu0 %v3919
    %v3921 = vand.u32 %v1336, 4294901760
    %3922 = vmatpush2.msra.mxu0 %v3921
    %v3923 = vand.u32 %v1335, 4294901760
    %3924 = vmatprep.subr.mxu0 %v3923
    %v3925 = vand.u32 %v1334, 4294901760
    %3926 = vmatpush2.msra.mxu0 %v3925
    %v3927 = vand.u32 %v1333, 4294901760
    %3928 = vmatprep.subr.mxu0 %v3927
    %v3929 = vand.u32 %v1332, 4294901760
    %3930 = vmatpush2.msra.mxu0 %v3929
    %v3931 = vand.u32 %v1331, 4294901760
    %3932 = vmatprep.subr.mxu0 %v3931
    %v3933 = vand.u32 %v1330, 4294901760
    %3934 = vmatpush2.msra.mxu0 %v3933
    %v3935 = vand.u32 %v1329, 4294901760
    %3936 = vmatprep.subr.mxu0 %v3935
    %v3937 = vand.u32 %v1328, 4294901760
    %3938 = vmatpush2.msra.mxu0 %v3937
    %v3939 = vand.u32 %v1327, 4294901760
    %3940 = vmatprep.subr.mxu0 %v3939
    %v3941 = vand.u32 %v1326, 4294901760
    %3942 = vmatpush2.msra.mxu0 %v3941
    %v3943 = vand.u32 %v1325, 4294901760
    %3944 = vmatprep.subr.mxu0 %v3943
    %v3945 = vand.u32 %v1324, 4294901760
    %3946 = vmatpush2.msra.mxu0 %v3945
    %v3947 = vand.u32 %v1323, 4294901760
    %3948 = vmatprep.subr.mxu0 %v3947
    %v3949 = vand.u32 %v1322, 4294901760
    %3950 = vmatpush2.msra.mxu0 %v3949
    %v3951 = vand.u32 %v1321, 4294901760
    %3952 = vmatprep.subr.mxu0 %v3951
    %v3953 = vand.u32 %v1320, 4294901760
    %3954 = vmatpush2.msra.mxu0 %v3953
    %v3955 = vand.u32 %v1319, 4294901760
    %3956 = vmatprep.subr.mxu0 %v3955
    %v3957 = vand.u32 %v1318, 4294901760
    %3958 = vmatpush2.msra.mxu0 %v3957
    %v3959 = vand.u32 %v1317, 4294901760
    %3960 = vmatprep.subr.mxu0 %v3959
    %v3961 = vand.u32 %v1316, 4294901760
    %3962 = vmatpush2.msra.mxu0 %v3961
    %v3963 = vand.u32 %v1315, 4294901760
    %3964 = vmatprep.subr.mxu0 %v3963
    %v3965 = vand.u32 %v1314, 4294901760
    %3966 = vmatpush2.msra.mxu0 %v3965
    %v3967 = vand.u32 %v1313, 4294901760
    %3968 = vmatprep.subr.mxu0 %v3967
    %v3969 = vand.u32 %v1312, 4294901760
    %3970 = vmatpush2.msra.mxu0 %v3969
    %v3971 = vand.u32 %v1311, 4294901760
    %3972 = vmatprep.subr.mxu0 %v3971
    %v3973 = vand.u32 %v1310, 4294901760
    %3974 = vmatpush2.msra.mxu0 %v3973
    %v3975 = vand.u32 %v1309, 4294901760
    %3976 = vmatprep.subr.mxu0 %v3975
    %v3977 = vand.u32 %v1308, 4294901760
    %3978 = vmatpush2.msra.mxu0 %v3977
    %v3979 = vand.u32 %v2701, 4294901760
    %3980 = vmatprep.mubr.f32.mxu0 %v3979
    %v3981 = vand.u32 %v2700, 4294901760
    %3982 = vmatmul.mubr.f32.gmra.mxu0 %v3981
    %v3983 = vpop.f32.mrf.mxu0
    %v3984 = vadd.f32 %v3847, %v3983
    %v3985 = vpop.f32.mrf.mxu0
    %v3986 = vadd.f32 %v3849, %v3985
    %3987 = vdwg.mxu0
    %s3988 = sld [smem:[#allocation2]]
    %v3989 = vstv %s3988
    %v3990 = vadd.f32 %v3984, %v3989
    %v3991 = vadd.f32 %v3986, %v3989
    %v3992 = vxor.u32 %v3990, 2147483648
    %v3993 = vxor.u32 %v3991, 2147483648
    %v3994 = vmul.f32 %v3992, 1.442695
    %v3995 = vpow.pop %v3994
    %v3996 = vmul.f32 %v3993, 1.442695
    %v3997 = vpow.pop %v3996
    %v3998 = vadd.f32 %v3995, 1.0
    %v3999 = vadd.f32 %v3997, 1.0
    %v4000 = vrcp.pop %v3998
    %v4001 = vmul.f32 1.0, %v4000
    %v4002 = vrcp.pop %v3999
    %v4003 = vmul.f32 1.0, %v4002
    %v4006 = vcombine.low %v4001, %v4003
    %v4008 = vunpack.c.l.s4 1966171168
    %v4009 = vunpack.c.0.s8 %v4008
    %v4010 = vlaneseq
    %v4011 = vshrl.u32 %v4010, 7
    %v4012 = vsub.s32 %v4009, %v4011
    %v4013 = vrot.slane %v4006, %v4012
    %v4014 = vcombine.high %v4013, %v4013
    %v4016 = vunpack.c.l.s4 1966171168
    %v4017 = vunpack.c.0.s8 %v4016
    %v4018 = vlaneseq
    %v4019 = vshrl.u32 %v4018, 7
    %v4020 = vsub.s32 %v4017, %v4019
    %v4021 = vrot.slane %v4013, %v4020
    %v4023 = vunpack.c.l.s4 1966171168
    %v4024 = vunpack.c.0.s8 %v4023
    %v4025 = vlaneseq
    %v4026 = vshrl.u32 %v4025, 7
    %v4027 = vsub.s32 %v4024, %v4026
    %v4028 = vrot.slane %v4014, %v4027
    %v4029 = vlaneseq
    %v4030 = vshrl.u32 %v4029, 7
    %v4031 = vsub.s32 0, %v4030
    %v4032 = vrot.slane %v4021, %v4031
    %v4033 = vlaneseq
    %v4034 = vshrl.u32 %v4033, 7
    %v4035 = vsub.s32 1, %v4034
    %v4036 = vrot.slane %v4021, %v4035
    %v4037 = vlaneseq
    %v4038 = vshrl.u32 %v4037, 7
    %v4039 = vsub.s32 0, %v4038
    %v4040 = vrot.slane %v4028, %v4039
    %v4041 = vlaneseq
    %v4042 = vshrl.u32 %v4041, 7
    %v4043 = vsub.s32 1, %v4042
    %v4044 = vrot.slane %v4028, %v4043
    %v4049 = vmul.f32 %v4032, %v1183
    %v4050 = vmul.f32 %v4036, %v1184
    %v4051 = vmul.f32 %v4032, %v1185
    %v4052 = vmul.f32 %v4036, %v1186
    %v4053 = vmul.f32 %v4032, %v1187
    %v4054 = vmul.f32 %v4036, %v1188
    %v4055 = vmul.f32 %v4032, %v1189
    %v4056 = vmul.f32 %v4036, %v1190
    %v4057 = vmul.f32 %v4040, %v1191
    %v4058 = vmul.f32 %v4044, %v1192
    %v4059 = vmul.f32 %v4040, %v1193
    %v4060 = vmul.f32 %v4044, %v1194
    %v4061 = vmul.f32 %v4040, %v1195
    %v4062 = vmul.f32 %v4044, %v1196
    %v4063 = vmul.f32 %v4040, %v1197
    %v4064 = vmul.f32 %v4044, %v1198
    %4065 = vst [vmem:[#allocation9] sm:$0xff] %v4049
    %4066 = vst [vmem:[#allocation9 + $0x8] sm:$0xff] %v4050
    %4067 = vst [vmem:[#allocation9 + $0x10] sm:$0xff] %v4051
    %4068 = vst [vmem:[#allocation9 + $0x18] sm:$0xff] %v4052
    %4069 = vst [vmem:[#allocation9 + $0x20] sm:$0xff] %v4053
    %4070 = vst [vmem:[#allocation9 + $0x28] sm:$0xff] %v4054
    %4071 = vst [vmem:[#allocation9 + $0x30] sm:$0xff] %v4055
    %4072 = vst [vmem:[#allocation9 + $0x38] sm:$0xff] %v4056
    %4073 = vst [vmem:[#allocation9 + $0x40] sm:$0xff] %v4057
    %4074 = vst [vmem:[#allocation9 + $0x48] sm:$0xff] %v4058
    %4075 = vst [vmem:[#allocation9 + $0x50] sm:$0xff] %v4059
    %4076 = vst [vmem:[#allocation9 + $0x58] sm:$0xff] %v4060
    %4077 = vst [vmem:[#allocation9 + $0x60] sm:$0xff] %v4061
    %4078 = vst [vmem:[#allocation9 + $0x68] sm:$0xff] %v4062
    %4079 = vst [vmem:[#allocation9 + $0x70] sm:$0xff] %v4063
    %4080 = vst [vmem:[#allocation9 + $0x78] sm:$0xff] %v4064
    // Predicated region
    $region46: #{tpu_custom_call.1} parent=1 // pred_check
      _
    $region47: #{tpu_custom_call.1} parent=1 // pred_check_branch
      %4082 = sbr.rel (0) target = $region49
    $region48: #{tpu_custom_call.1} parent=1 // pred_region
      %s4084 = ssub.s32 2048, 2048
      %4085 = vsyncadd [#allocation5], %s4084
      %s4086 = sshll.u32 [#allocation9], 4
      %s4087 = int_to_ptr.vmem [resolvable:$true] %s4086
      %4092 = dma.vmem_to_hbm [thread:$0]  %s4087, 2048, %s8, [#allocation5], 256, 256, 16
    $region49: #{tpu_custom_call.1} parent=1 // pred_fallthru
      _
    // Predicated region
    $region50: #{tpu_custom_call.1} parent=1 // pred_check
      _
    $region51: #{tpu_custom_call.1} parent=1 // pred_check_branch
      %4094 = sbr.rel (0) target = $region53
    $region52: #{tpu_custom_call.1} parent=1 // pred_region
      %4095 = dma.done [#allocation5], 2048
    $region53: #{tpu_custom_call.1} parent=1 // pred_fallthru
      _
    %4096 = vsyncpa [#allocation4], 1
    %4097 = vsyncpa [#allocation7], 1
    %4098 = vsyncpa [#allocation5], 1

</llo_original>
